<compile_context>
chip_gen: v5e
topology: v5e:2x2
jax: 0.10.0
libtpu: 0.0.40
codegen_flags: <defaults>
</compile_context>

<pallas_src>
import numpy as np

import jax
import jax.numpy as jnp
from jax import lax
from jax.experimental import pallas as pl
from jax.experimental.pallas import tpu as pltpu


# ------------------------------ Pallas kernel -------------------------------

def _make_encoder_kernel(chans, latent):
    """Kernel factory; chans = (c0, c1, c2, c3) output channels of conv0..3."""
    c0, c1, c2, c3 = chans
    offs = {}
    o = 0
    for name, num in (("b0", c0), ("g0", c0), ("bb0", c0),
                      ("b1", c1), ("g1", c1), ("bb1", c1),
                      ("b2", c2), ("g2", c2), ("bb2", c2),
                      ("b3", c3), ("fcb", latent)):
        offs[name] = (o, num)
        o += num

    def kernel(c0_ref, w0_ref, s1_ref, w1_ref, s2_ref, w2_ref,
               s3_ref, w3_ref, fcw_ref, pv_ref, out_ref):
        f32 = jnp.float32
        cdt = w0_ref.dtype            # MXU-input dtype: f32, or bf16 when use_bf16

        def param(name):              # packed per-channel params, one operand
            off, num = offs[name]
            return pv_ref[pl.ds(off, num), :]                    # [num, 1] f32

        def leaky_relu(y):
            return jnp.where(y > 0, y, 0.2 * y)

        def batchnorm(y, g, b):
            # BatchNorm2d(track_running_stats=False): biased batch stats over the
            # N*H*W lane axis, eps=1e-5, affine.  Elementwise math stays f32.
            mean = jnp.mean(y, axis=1, keepdims=True)
            var = jnp.mean(jnp.square(y - mean), axis=1, keepdims=True)
            return (y - mean) * lax.rsqrt(var + 1e-5) * g + b

        def conv_bigk(x, s_ref, w_ref, b):
            # x:     [Cin, rows_in]               channels-first, rows on lanes
            # s_ref: [16, rows_in, rows_out]      0/1 tap-gather matrices (bf16)
            # w_ref: [Cout, 16*Cin]               host-prepacked, K ordered (kh,kw,Cin)
            # 16 tiny 0/1 gather dots, then ONE big-K MXU dot (K = 128/256/512).
            n_taps = s_ref.shape[0]
            xc = x.astype(cdt)
            taps = [jnp.dot(xc, s_ref[t].astype(cdt), preferred_element_type=f32)
                    for t in range(n_taps)]                      # each [Cin, rows_out]
            col = jnp.concatenate(taps, axis=0)                  # [16*Cin, rows_out]
            return jnp.dot(w_ref[...], col.astype(cdt),
                           preferred_element_type=f32) + b

        # --- block 0: Conv (im2col'd at the input boundary) -> LeakyReLU -> BN ---
        y = jnp.dot(w0_ref[...], c0_ref[...].astype(cdt),
                    preferred_element_type=f32) + param("b0")    # [c0, N*8*8]
        y = batchnorm(leaky_relu(y), param("g0"), param("bb0"))

        # --- blocks 1, 2: Conv -> LeakyReLU -> BN (in-kernel im2col, fused dot) ---
        y = batchnorm(leaky_relu(conv_bigk(y, s1_ref, w1_ref, param("b1"))),
                      param("g1"), param("bb1"))                 # [c1, N*4*4]
        y = batchnorm(leaky_relu(conv_bigk(y, s2_ref, w2_ref, param("b2"))),
                      param("g2"), param("bb2"))                 # [c2, N*2*2]

        # --- block 3: Conv -> Sigmoid (exp on EUP + pl.reciprocal) ----------------
        y = conv_bigk(y, s3_ref, w3_ref, param("b3"))            # [c3, N]
        y = pl.reciprocal(1.0 + jnp.exp(-y), approx=False)

        # --- flatten (final map is 1x1 so NCHW flatten == channel axis) + FC + tanh
        out_ref[...] = jnp.tanh(
            jnp.dot(fcw_ref[...], y.astype(cdt), preferred_element_type=f32)
            + param("fcb"))                                      # [latent, N]

    return kernel


# ------------------------- host-side operand packing ------------------------

def _conv_tap_selectors(n, hin, win, k=4, s=2, p=1):
    """0/1 gather matrices: sel[t, (n,h,w), (n,r,c)] = 1 iff (h,w) feeds tap t of
    output pixel (r,c).  X[Cin, rows_in] @ sel[t] == tap-t im2col slice."""
    ho = (hin + 2 * p - k) // s + 1
    wo = (win + 2 * p - k) // s + 1
    sel = np.zeros((k * k, n * hin * win, n * ho * wo), np.float32)
    for t in range(k * k):
        ki, kj = divmod(t, k)
        for b in range(n):
            for r in range(ho):
                h = s * r + ki - p
                if h < 0 or h >= hin:
                    continue
                for c in range(wo):
                    w = s * c + kj - p
                    if w < 0 or w >= win:
                        continue
                    sel[t, (b * hin + h) * win + w, (b * ho + r) * wo + c] = 1.0
    return sel, ho, wo


def prepare_encoder_operands(params, img_size, batch, use_bf16=False):
    """One-time repack of PyTorch-layout weights into the fused-kernel operand list.
    Conv weights become [Cout, 16*Cin] (K ordered (kh, kw, Cin)); all per-channel
    vectors are packed into one [P,1] operand; selectors are bf16 (0/1 exact) and
    specialized to (img_size, batch)."""
    h, w_sp, _ = img_size
    # TODO(synk): general (C,H,W) flatten ordering for images whose final feature
    # map is larger than 1x1; the fused flatten+FC below assumes a 16x16 input.
    assert h == 16 and w_sp == 16, "fused flatten+FC assumes a 1x1 final feature map"
    f32 = jnp.float32
    wdt = jnp.bfloat16 if use_bf16 else f32   # MXU-input dtype (bf16 behind a flag)

    def pack_conv(w):   # [Cout, Cin, kh, kw] -> [Cout, kh*kw*Cin]
        return jnp.transpose(w, (0, 2, 3, 1)).reshape(w.shape[0], -1).astype(wdt)

    ops = [pack_conv(params["conv0_w"])]
    hc, wc = h // 2, w_sp // 2                # spatial dims entering layer 1
    for l in (1, 2, 3):
        w = params[f"conv{l}_w"]
        kh = w.shape[2]
        sel, ho, wo = _conv_tap_selectors(batch, hc, wc, k=kh)
        ops += [jnp.asarray(sel, jnp.bfloat16), pack_conv(w)]
        hc, wc = ho, wo

    ops.append(jnp.asarray(params["fc_w"], wdt))          # native [latent, K] layout

    pvec = jnp.concatenate([
        params["conv0_b"], params["bn0_g"], params["bn0_b"],
        params["conv1_b"], params["bn1_g"], params["bn1_b"],
        params["conv2_b"], params["bn2_g"], params["bn2_b"],
        params["conv3_b"], params["fc_b"],
    ]).astype(f32).reshape(-1, 1)                          # ONE small param operand
    ops.append(pvec)
    return tuple(ops)


def im2col_T(x_nhwc, k=4, s=2, p=1):
    """Patch extraction for layer 0 only (input boundary): returns
    [k*k*Cin, N*Ho*Wo] with K ordered (kh, kw, Cin) and rows ordered (n, r, c)."""
    n, h, w, c = x_nhwc.shape
    xp = jnp.pad(x_nhwc, ((0, 0), (p, p), (p, p), (0, 0)))
    ho = (h + 2 * p - k) // s + 1
    wo = (w + 2 * p - k) // s + 1
    taps = [xp[:, i:i + s * ho:s, j:j + s * wo:s, :]
            for i in range(k) for j in range(k)]
    cols = jnp.stack(taps, axis=3).reshape(n * ho * wo, k * k * c)
    return cols.T


def _cost_numbers(operands, latent, n):
    (cols0, w0, s1, w1, s2, w2, s3, w3, fcw, pvec) = operands
    nbytes = sum(int(o.size) * o.dtype.itemsize for o in operands) + latent * n * 4
    flops = 2 * w0.shape[0] * w0.shape[1] * cols0.shape[1]
    for s, wb in ((s1, w1), (s2, w2), (s3, w3)):
        taps, rin, rout = s.shape
        cout, kdim = wb.shape
        cin = kdim // taps
        flops += 2 * taps * cin * rin * rout        # 0/1 gather dots
        flops += 2 * cout * kdim * rout             # fused big-K weight dot
    flops += 2 * fcw.shape[0] * fcw.shape[1] * n    # FC
    transcendentals = (2 * w3.shape[0] * n + latent * n
                       + w0.shape[0] + w1.shape[0] + w2.shape[0])
    return int(flops), int(transcendentals), int(nbytes)


def encoder_forward(ops, x_nchw):
    """Whole encoder forward = ONE fused Pallas kernel."""
    (w0, s1, w1, s2, w2, s3, w3, fcw, pvec) = ops
    n = x_nchw.shape[0]
    latent = int(fcw.shape[0])
    chans = (int(w0.shape[0]), int(w1.shape[0]), int(w2.shape[0]), int(w3.shape[0]))

    cols0_t = im2col_T(jnp.transpose(x_nchw, (0, 2, 3, 1)).astype(jnp.float32))
    operands = (cols0_t, w0, s1, w1, s2, w2, s3, w3, fcw, pvec)

    flops, transcendentals, nbytes = _cost_numbers(operands, latent, n)
    # Single block / no grid: every operand fits VMEM at these shapes and BatchNorm
    # needs full-batch statistics.  TODO(synk): at larger batch add a row grid with
    # dimension_semantics=("parallel",) (v7x 2nd TC), two-pass BN accumulation, and
    # per-generation VMEM-aware tiles (vmem_limit_bytes for v7x's 64 MiB).
    out_t = pl.pallas_call(
        _make_encoder_kernel(chans, latent),
        out_shape=jax.ShapeDtypeStruct((latent, n), jnp.float32),
        in_specs=[pl.BlockSpec(memory_space=pltpu.MemorySpace.VMEM)
                  for _ in operands],
        out_specs=pl.BlockSpec(memory_space=pltpu.MemorySpace.VMEM),
        cost_estimate=pl.CostEstimate(flops=flops, transcendentals=transcendentals,
                                      bytes_accessed=nbytes),
    )(*operands)
    # Kernel emits [latent, N] so in-kernel tensors stay lane-dense; flip it here.
    return out_t.T


# ------------------------ pure-JAX reference check --------------------------

def encoder_reference(params, x_nchw):
    hp = lax.Precision.HIGHEST
    dn = lax.conv_dimension_numbers(x_nchw.shape, params["conv0_w"].shape,
                                    ("NCHW", "OIHW", "NCHW"))
    x = x_nchw
    for idx in range(3):
        x = lax.conv_general_dilated(x, params[f"conv{idx}_w"], (2, 2),
                                     [(1, 1), (1, 1)], dimension_numbers=dn,
                                     precision=hp)
        x = x + params[f"conv{idx}_b"][None, :, None, None]
        x = jnp.where(x > 0, x, 0.2 * x)
        mean = jnp.mean(x, axis=(0, 2, 3), keepdims=True)
        var = jnp.mean(jnp.square(x - mean), axis=(0, 2, 3), keepdims=True)
        x = (x - mean) * lax.rsqrt(var + 1e-5)
        x = x * params[f"bn{idx}_g"][None, :, None, None] \
              + params[f"bn{idx}_b"][None, :, None, None]
    x = lax.conv_general_dilated(x, params["conv3_w"], (2, 2),
                                 [(1, 1), (1, 1)], dimension_numbers=dn,
                                 precision=hp)
    x = x + params["conv3_b"][None, :, None, None]
    x = jax.nn.sigmoid(x)
    flat = x.reshape(x.shape[0], -1)
    return jnp.tanh(jnp.dot(flat, params["fc_w"].T, precision=hp) + params["fc_b"])


# --------------------------------- driver -----------------------------------

def make_params(img_size, latent_dim, dim, key):
    h, w, cin = img_size
    chans = [cin, dim, 2 * dim, 4 * dim, 8 * dim]
    params = {}
    keys = jax.random.split(key, 16)
    k = 0
    for i in range(4):
        params[f"conv{i}_w"] = 0.1 * jax.random.normal(
            keys[k], (chans[i + 1], chans[i], 4, 4), jnp.float32); k += 1
        params[f"conv{i}_b"] = 0.1 * jax.random.normal(
            keys[k], (chans[i + 1],), jnp.float32); k += 1
    for i in range(3):
        params[f"bn{i}_g"] = jnp.ones((chans[i + 1],), jnp.float32)
        params[f"bn{i}_b"] = jnp.zeros((chans[i + 1],), jnp.float32)
    output_size = int(8 * dim * (h / 16) * (w / 16))
    params["fc_w"] = 0.1 * jax.random.normal(
        keys[k], (latent_dim, output_size), jnp.float32); k += 1
    params["fc_b"] = 0.1 * jax.random.normal(
        keys[k], (latent_dim,), jnp.float32); k += 1
    return params


if __name__ == "__main__":
    img_size = (16, 16, 1)   # H, W, C
    latent_dim = 8
    dim = 8                  # channels 8/16/32/64 -> sublane-aligned, conv K = 128/256/512
    batch = 2

    root = jax.random.PRNGKey(0)
    kx, kp = jax.random.split(root)
    x = jax.random.normal(kx, (batch, img_size[2], img_size[0], img_size[1]),
                          jnp.float32)                    # NCHW, like PyTorch
    params = make_params(img_size, latent_dim, dim, kp)

    fwd = jax.jit(encoder_forward)

    # f32 validation mode (review: keep an f32 mode for the reference check).
    ops_f32 = prepare_encoder_operands(params, img_size, batch, use_bf16=False)
    out = jax.block_until_ready(fwd(ops_f32, x))
    ref = jax.block_until_ready(encoder_reference(params, x))
    assert out.shape == (batch, latent_dim), out.shape
    assert bool(jnp.all(jnp.isfinite(out)))
    # Tolerance covers MXU default-precision matmuls vs. the HIGHEST-precision XLA
    # reference; a semantic bug (tap ordering / BN / flatten) would be O(0.1..1).
    assert jnp.allclose(out, ref, rtol=1e-2, atol=1e-3), (np.asarray(out),
                                                          np.asarray(ref))

    # bf16 MXU-input mode behind the flag (looser tolerance, per the review).
    ops_bf16 = prepare_encoder_operands(params, img_size, batch, use_bf16=True)
    out_bf16 = jax.block_until_ready(fwd(ops_bf16, x))
    assert bool(jnp.all(jnp.isfinite(out_bf16)))
    assert jnp.allclose(out_bf16, ref, rtol=5e-2, atol=5e-3)

    print("KERNEL_OK")
</pallas_src>

<mosaic_0001>
module attributes {stable_mosaic.version = 11 : i64} {
  func.func @kernel(%arg0: memref<16x128xf32, #tpu.memory_space<vmem>>, %arg1: memref<8x16xf32, #tpu.memory_space<vmem>>, %arg2: memref<16x128x32xbf16, #tpu.memory_space<vmem>>, %arg3: memref<16x128xf32, #tpu.memory_space<vmem>>, %arg4: memref<16x32x8xbf16, #tpu.memory_space<vmem>>, %arg5: memref<32x256xf32, #tpu.memory_space<vmem>>, %arg6: memref<16x8x2xbf16, #tpu.memory_space<vmem>>, %arg7: memref<64x512xf32, #tpu.memory_space<vmem>>, %arg8: memref<8x64xf32, #tpu.memory_space<vmem>>, %arg9: memref<240x1xf32, #tpu.memory_space<vmem>>, %arg10: memref<8x2xf32, #tpu.memory_space<vmem>>) attributes {dimension_semantics = [], scalar_prefetch = 0 : i64, scratch_operands = 0 : i64, tpu.core_type = #tpu.core_type<tc>} {
    %c0 = arith.constant 0 : index
    %c0_0 = arith.constant 0 : index
    %0 = vector.load %arg1[%c0, %c0_0] : memref<8x16xf32, #tpu.memory_space<vmem>>, vector<8x16xf32>
    %c0_1 = arith.constant 0 : index
    %c0_2 = arith.constant 0 : index
    %1 = vector.load %arg0[%c0_1, %c0_2] : memref<16x128xf32, #tpu.memory_space<vmem>>, vector<16x128xf32>
    %cst = arith.constant dense<0.000000e+00> : vector<8x128xf32>
    %2 = tpu.matmul %0, %1, %cst {dimension_numbers = #tpu.dot_dimension_numbers<[1], [0], [0], [1], [0, 0, 1, 1], [], []>} : vector<8x16xf32>, vector<16x128xf32>, vector<8x128xf32> -> vector<8x128xf32>
    %c0_3 = arith.constant 0 : index
    %c0_4 = arith.constant 0 : index
    %3 = vector.load %arg9[%c0_3, %c0_4] : memref<240x1xf32, #tpu.memory_space<vmem>>, vector<8x1xf32>
    %4 = vector.broadcast %3 : vector<8x1xf32> to vector<8x128xf32>
    %5 = arith.addf %2, %4 : vector<8x128xf32>
    %cst_5 = arith.constant 0.000000e+00 : f32
    %6 = vector.broadcast %cst_5 : f32 to vector<8x128xf32>
    %7 = arith.cmpf ogt, %5, %6 : vector<8x128xf32>
    %cst_6 = arith.constant 2.000000e-01 : f32
    %8 = vector.broadcast %cst_6 : f32 to vector<8x128xf32>
    %9 = arith.mulf %8, %5 : vector<8x128xf32>
    %10 = arith.select %7, %5, %9 : vector<8x128xi1>, vector<8x128xf32>
    %c8 = arith.constant 8 : index
    %c0_7 = arith.constant 0 : index
    %11 = vector.load %arg9[%c8, %c0_7] : memref<240x1xf32, #tpu.memory_space<vmem>>, vector<8x1xf32>
    %c16 = arith.constant 16 : index
    %c0_8 = arith.constant 0 : index
    %12 = vector.load %arg9[%c16, %c0_8] : memref<240x1xf32, #tpu.memory_space<vmem>>, vector<8x1xf32>
    %cst_9 = arith.constant dense<0.000000e+00> : vector<8xf32>
    %13 = vector.multi_reduction <add>, %10, %cst_9 [1] : vector<8x128xf32> to vector<8xf32>
    %14 = vector.shape_cast %13 : vector<8xf32> to vector<8x1xf32>
    %cst_10 = arith.constant 1.280000e+02 : f32
    %15 = vector.broadcast %cst_10 : f32 to vector<8x1xf32>
    %16 = arith.divf %14, %15 : vector<8x1xf32>
    %17 = vector.broadcast %16 : vector<8x1xf32> to vector<8x128xf32>
    %18 = arith.subf %10, %17 : vector<8x128xf32>
    %19 = arith.mulf %18, %18 : vector<8x128xf32>
    %cst_11 = arith.constant dense<0.000000e+00> : vector<8xf32>
    %20 = vector.multi_reduction <add>, %19, %cst_11 [1] : vector<8x128xf32> to vector<8xf32>
    %21 = vector.shape_cast %20 : vector<8xf32> to vector<8x1xf32>
    %cst_12 = arith.constant 1.280000e+02 : f32
    %22 = vector.broadcast %cst_12 : f32 to vector<8x1xf32>
    %23 = arith.divf %21, %22 : vector<8x1xf32>
    %24 = vector.broadcast %16 : vector<8x1xf32> to vector<8x128xf32>
    %25 = arith.subf %10, %24 : vector<8x128xf32>
    %cst_13 = arith.constant 9.99999974E-6 : f32
    %26 = vector.broadcast %cst_13 : f32 to vector<8x1xf32>
    %27 = arith.addf %23, %26 : vector<8x1xf32>
    %28 = math.rsqrt %27 : vector<8x1xf32>
    %29 = vector.broadcast %28 : vector<8x1xf32> to vector<8x128xf32>
    %30 = arith.mulf %25, %29 : vector<8x128xf32>
    %31 = vector.broadcast %11 : vector<8x1xf32> to vector<8x128xf32>
    %32 = arith.mulf %30, %31 : vector<8x128xf32>
    %33 = vector.broadcast %12 : vector<8x1xf32> to vector<8x128xf32>
    %34 = arith.addf %32, %33 : vector<8x128xf32>
    %c24 = arith.constant 24 : index
    %c0_14 = arith.constant 0 : index
    %35 = vector.load %arg9[%c24, %c0_14] : memref<240x1xf32, #tpu.memory_space<vmem>>, vector<16x1xf32>
    %c0_15 = arith.constant 0 : index
    %c0_16 = arith.constant 0 : index
    %c0_17 = arith.constant 0 : index
    %36 = vector.load %arg2[%c0_15, %c0_16, %c0_17] : memref<16x128x32xbf16, #tpu.memory_space<vmem>>, vector<1x128x32xbf16>
    %37 = vector.shape_cast %36 : vector<1x128x32xbf16> to vector<128x32xbf16>
    %38 = arith.extf %37 : vector<128x32xbf16> to vector<128x32xf32>
    %cst_18 = arith.constant dense<0.000000e+00> : vector<8x32xf32>
    %39 = tpu.matmul %34, %38, %cst_18 {dimension_numbers = #tpu.dot_dimension_numbers<[1], [0], [0], [1], [0, 0, 1, 1], [], []>} : vector<8x128xf32>, vector<128x32xf32>, vector<8x32xf32> -> vector<8x32xf32>
    %c1 = arith.constant 1 : index
    %c0_19 = arith.constant 0 : index
    %c0_20 = arith.constant 0 : index
    %40 = vector.load %arg2[%c1, %c0_19, %c0_20] : memref<16x128x32xbf16, #tpu.memory_space<vmem>>, vector<1x128x32xbf16>
    %41 = vector.shape_cast %40 : vector<1x128x32xbf16> to vector<128x32xbf16>
    %42 = arith.extf %41 : vector<128x32xbf16> to vector<128x32xf32>
    %cst_21 = arith.constant dense<0.000000e+00> : vector<8x32xf32>
    %43 = tpu.matmul %34, %42, %cst_21 {dimension_numbers = #tpu.dot_dimension_numbers<[1], [0], [0], [1], [0, 0, 1, 1], [], []>} : vector<8x128xf32>, vector<128x32xf32>, vector<8x32xf32> -> vector<8x32xf32>
    %c2 = arith.constant 2 : index
    %c0_22 = arith.constant 0 : index
    %c0_23 = arith.constant 0 : index
    %44 = vector.load %arg2[%c2, %c0_22, %c0_23] : memref<16x128x32xbf16, #tpu.memory_space<vmem>>, vector<1x128x32xbf16>
    %45 = vector.shape_cast %44 : vector<1x128x32xbf16> to vector<128x32xbf16>
    %46 = arith.extf %45 : vector<128x32xbf16> to vector<128x32xf32>
    %cst_24 = arith.constant dense<0.000000e+00> : vector<8x32xf32>
    %47 = tpu.matmul %34, %46, %cst_24 {dimension_numbers = #tpu.dot_dimension_numbers<[1], [0], [0], [1], [0, 0, 1, 1], [], []>} : vector<8x128xf32>, vector<128x32xf32>, vector<8x32xf32> -> vector<8x32xf32>
    %c3 = arith.constant 3 : index
    %c0_25 = arith.constant 0 : index
    %c0_26 = arith.constant 0 : index
    %48 = vector.load %arg2[%c3, %c0_25, %c0_26] : memref<16x128x32xbf16, #tpu.memory_space<vmem>>, vector<1x128x32xbf16>
    %49 = vector.shape_cast %48 : vector<1x128x32xbf16> to vector<128x32xbf16>
    %50 = arith.extf %49 : vector<128x32xbf16> to vector<128x32xf32>
    %cst_27 = arith.constant dense<0.000000e+00> : vector<8x32xf32>
    %51 = tpu.matmul %34, %50, %cst_27 {dimension_numbers = #tpu.dot_dimension_numbers<[1], [0], [0], [1], [0, 0, 1, 1], [], []>} : vector<8x128xf32>, vector<128x32xf32>, vector<8x32xf32> -> vector<8x32xf32>
    %c4 = arith.constant 4 : index
    %c0_28 = arith.constant 0 : index
    %c0_29 = arith.constant 0 : index
    %52 = vector.load %arg2[%c4, %c0_28, %c0_29] : memref<16x128x32xbf16, #tpu.memory_space<vmem>>, vector<1x128x32xbf16>
    %53 = vector.shape_cast %52 : vector<1x128x32xbf16> to vector<128x32xbf16>
    %54 = arith.extf %53 : vector<128x32xbf16> to vector<128x32xf32>
    %cst_30 = arith.constant dense<0.000000e+00> : vector<8x32xf32>
    %55 = tpu.matmul %34, %54, %cst_30 {dimension_numbers = #tpu.dot_dimension_numbers<[1], [0], [0], [1], [0, 0, 1, 1], [], []>} : vector<8x128xf32>, vector<128x32xf32>, vector<8x32xf32> -> vector<8x32xf32>
    %c5 = arith.constant 5 : index
    %c0_31 = arith.constant 0 : index
    %c0_32 = arith.constant 0 : index
    %56 = vector.load %arg2[%c5, %c0_31, %c0_32] : memref<16x128x32xbf16, #tpu.memory_space<vmem>>, vector<1x128x32xbf16>
    %57 = vector.shape_cast %56 : vector<1x128x32xbf16> to vector<128x32xbf16>
    %58 = arith.extf %57 : vector<128x32xbf16> to vector<128x32xf32>
    %cst_33 = arith.constant dense<0.000000e+00> : vector<8x32xf32>
    %59 = tpu.matmul %34, %58, %cst_33 {dimension_numbers = #tpu.dot_dimension_numbers<[1], [0], [0], [1], [0, 0, 1, 1], [], []>} : vector<8x128xf32>, vector<128x32xf32>, vector<8x32xf32> -> vector<8x32xf32>
    %c6 = arith.constant 6 : index
    %c0_34 = arith.constant 0 : index
    %c0_35 = arith.constant 0 : index
    %60 = vector.load %arg2[%c6, %c0_34, %c0_35] : memref<16x128x32xbf16, #tpu.memory_space<vmem>>, vector<1x128x32xbf16>
    %61 = vector.shape_cast %60 : vector<1x128x32xbf16> to vector<128x32xbf16>
    %62 = arith.extf %61 : vector<128x32xbf16> to vector<128x32xf32>
    %cst_36 = arith.constant dense<0.000000e+00> : vector<8x32xf32>
    %63 = tpu.matmul %34, %62, %cst_36 {dimension_numbers = #tpu.dot_dimension_numbers<[1], [0], [0], [1], [0, 0, 1, 1], [], []>} : vector<8x128xf32>, vector<128x32xf32>, vector<8x32xf32> -> vector<8x32xf32>
    %c7 = arith.constant 7 : index
    %c0_37 = arith.constant 0 : index
    %c0_38 = arith.constant 0 : index
    %64 = vector.load %arg2[%c7, %c0_37, %c0_38] : memref<16x128x32xbf16, #tpu.memory_space<vmem>>, vector<1x128x32xbf16>
    %65 = vector.shape_cast %64 : vector<1x128x32xbf16> to vector<128x32xbf16>
    %66 = arith.extf %65 : vector<128x32xbf16> to vector<128x32xf32>
    %cst_39 = arith.constant dense<0.000000e+00> : vector<8x32xf32>
    %67 = tpu.matmul %34, %66, %cst_39 {dimension_numbers = #tpu.dot_dimension_numbers<[1], [0], [0], [1], [0, 0, 1, 1], [], []>} : vector<8x128xf32>, vector<128x32xf32>, vector<8x32xf32> -> vector<8x32xf32>
    %c8_40 = arith.constant 8 : index
    %c0_41 = arith.constant 0 : index
    %c0_42 = arith.constant 0 : index
    %68 = vector.load %arg2[%c8_40, %c0_41, %c0_42] : memref<16x128x32xbf16, #tpu.memory_space<vmem>>, vector<1x128x32xbf16>
    %69 = vector.shape_cast %68 : vector<1x128x32xbf16> to vector<128x32xbf16>
    %70 = arith.extf %69 : vector<128x32xbf16> to vector<128x32xf32>
    %cst_43 = arith.constant dense<0.000000e+00> : vector<8x32xf32>
    %71 = tpu.matmul %34, %70, %cst_43 {dimension_numbers = #tpu.dot_dimension_numbers<[1], [0], [0], [1], [0, 0, 1, 1], [], []>} : vector<8x128xf32>, vector<128x32xf32>, vector<8x32xf32> -> vector<8x32xf32>
    %c9 = arith.constant 9 : index
    %c0_44 = arith.constant 0 : index
    %c0_45 = arith.constant 0 : index
    %72 = vector.load %arg2[%c9, %c0_44, %c0_45] : memref<16x128x32xbf16, #tpu.memory_space<vmem>>, vector<1x128x32xbf16>
    %73 = vector.shape_cast %72 : vector<1x128x32xbf16> to vector<128x32xbf16>
    %74 = arith.extf %73 : vector<128x32xbf16> to vector<128x32xf32>
    %cst_46 = arith.constant dense<0.000000e+00> : vector<8x32xf32>
    %75 = tpu.matmul %34, %74, %cst_46 {dimension_numbers = #tpu.dot_dimension_numbers<[1], [0], [0], [1], [0, 0, 1, 1], [], []>} : vector<8x128xf32>, vector<128x32xf32>, vector<8x32xf32> -> vector<8x32xf32>
    %c10 = arith.constant 10 : index
    %c0_47 = arith.constant 0 : index
    %c0_48 = arith.constant 0 : index
    %76 = vector.load %arg2[%c10, %c0_47, %c0_48] : memref<16x128x32xbf16, #tpu.memory_space<vmem>>, vector<1x128x32xbf16>
    %77 = vector.shape_cast %76 : vector<1x128x32xbf16> to vector<128x32xbf16>
    %78 = arith.extf %77 : vector<128x32xbf16> to vector<128x32xf32>
    %cst_49 = arith.constant dense<0.000000e+00> : vector<8x32xf32>
    %79 = tpu.matmul %34, %78, %cst_49 {dimension_numbers = #tpu.dot_dimension_numbers<[1], [0], [0], [1], [0, 0, 1, 1], [], []>} : vector<8x128xf32>, vector<128x32xf32>, vector<8x32xf32> -> vector<8x32xf32>
    %c11 = arith.constant 11 : index
    %c0_50 = arith.constant 0 : index
    %c0_51 = arith.constant 0 : index
    %80 = vector.load %arg2[%c11, %c0_50, %c0_51] : memref<16x128x32xbf16, #tpu.memory_space<vmem>>, vector<1x128x32xbf16>
    %81 = vector.shape_cast %80 : vector<1x128x32xbf16> to vector<128x32xbf16>
    %82 = arith.extf %81 : vector<128x32xbf16> to vector<128x32xf32>
    %cst_52 = arith.constant dense<0.000000e+00> : vector<8x32xf32>
    %83 = tpu.matmul %34, %82, %cst_52 {dimension_numbers = #tpu.dot_dimension_numbers<[1], [0], [0], [1], [0, 0, 1, 1], [], []>} : vector<8x128xf32>, vector<128x32xf32>, vector<8x32xf32> -> vector<8x32xf32>
    %c12 = arith.constant 12 : index
    %c0_53 = arith.constant 0 : index
    %c0_54 = arith.constant 0 : index
    %84 = vector.load %arg2[%c12, %c0_53, %c0_54] : memref<16x128x32xbf16, #tpu.memory_space<vmem>>, vector<1x128x32xbf16>
    %85 = vector.shape_cast %84 : vector<1x128x32xbf16> to vector<128x32xbf16>
    %86 = arith.extf %85 : vector<128x32xbf16> to vector<128x32xf32>
    %cst_55 = arith.constant dense<0.000000e+00> : vector<8x32xf32>
    %87 = tpu.matmul %34, %86, %cst_55 {dimension_numbers = #tpu.dot_dimension_numbers<[1], [0], [0], [1], [0, 0, 1, 1], [], []>} : vector<8x128xf32>, vector<128x32xf32>, vector<8x32xf32> -> vector<8x32xf32>
    %c13 = arith.constant 13 : index
    %c0_56 = arith.constant 0 : index
    %c0_57 = arith.constant 0 : index
    %88 = vector.load %arg2[%c13, %c0_56, %c0_57] : memref<16x128x32xbf16, #tpu.memory_space<vmem>>, vector<1x128x32xbf16>
    %89 = vector.shape_cast %88 : vector<1x128x32xbf16> to vector<128x32xbf16>
    %90 = arith.extf %89 : vector<128x32xbf16> to vector<128x32xf32>
    %cst_58 = arith.constant dense<0.000000e+00> : vector<8x32xf32>
    %91 = tpu.matmul %34, %90, %cst_58 {dimension_numbers = #tpu.dot_dimension_numbers<[1], [0], [0], [1], [0, 0, 1, 1], [], []>} : vector<8x128xf32>, vector<128x32xf32>, vector<8x32xf32> -> vector<8x32xf32>
    %c14 = arith.constant 14 : index
    %c0_59 = arith.constant 0 : index
    %c0_60 = arith.constant 0 : index
    %92 = vector.load %arg2[%c14, %c0_59, %c0_60] : memref<16x128x32xbf16, #tpu.memory_space<vmem>>, vector<1x128x32xbf16>
    %93 = vector.shape_cast %92 : vector<1x128x32xbf16> to vector<128x32xbf16>
    %94 = arith.extf %93 : vector<128x32xbf16> to vector<128x32xf32>
    %cst_61 = arith.constant dense<0.000000e+00> : vector<8x32xf32>
    %95 = tpu.matmul %34, %94, %cst_61 {dimension_numbers = #tpu.dot_dimension_numbers<[1], [0], [0], [1], [0, 0, 1, 1], [], []>} : vector<8x128xf32>, vector<128x32xf32>, vector<8x32xf32> -> vector<8x32xf32>
    %c15 = arith.constant 15 : index
    %c0_62 = arith.constant 0 : index
    %c0_63 = arith.constant 0 : index
    %96 = vector.load %arg2[%c15, %c0_62, %c0_63] : memref<16x128x32xbf16, #tpu.memory_space<vmem>>, vector<1x128x32xbf16>
    %97 = vector.shape_cast %96 : vector<1x128x32xbf16> to vector<128x32xbf16>
    %98 = arith.extf %97 : vector<128x32xbf16> to vector<128x32xf32>
    %cst_64 = arith.constant dense<0.000000e+00> : vector<8x32xf32>
    %99 = tpu.matmul %34, %98, %cst_64 {dimension_numbers = #tpu.dot_dimension_numbers<[1], [0], [0], [1], [0, 0, 1, 1], [], []>} : vector<8x128xf32>, vector<128x32xf32>, vector<8x32xf32> -> vector<8x32xf32>
    %100 = tpu.concatenate %39, %43, %47, %51, %55, %59, %63, %67, %71, %75, %79, %83, %87, %91, %95, %99 in 0 : vector<8x32xf32>, vector<8x32xf32>, vector<8x32xf32>, vector<8x32xf32>, vector<8x32xf32>, vector<8x32xf32>, vector<8x32xf32>, vector<8x32xf32>, vector<8x32xf32>, vector<8x32xf32>, vector<8x32xf32>, vector<8x32xf32>, vector<8x32xf32>, vector<8x32xf32>, vector<8x32xf32>, vector<8x32xf32> -> vector<128x32xf32>
    %c0_65 = arith.constant 0 : index
    %c0_66 = arith.constant 0 : index
    %101 = vector.load %arg3[%c0_65, %c0_66] : memref<16x128xf32, #tpu.memory_space<vmem>>, vector<16x128xf32>
    %cst_67 = arith.constant dense<0.000000e+00> : vector<16x32xf32>
    %102 = tpu.matmul %101, %100, %cst_67 {dimension_numbers = #tpu.dot_dimension_numbers<[1], [0], [0], [1], [0, 0, 1, 1], [], []>} : vector<16x128xf32>, vector<128x32xf32>, vector<16x32xf32> -> vector<16x32xf32>
    %103 = vector.broadcast %35 : vector<16x1xf32> to vector<16x32xf32>
    %104 = arith.addf %102, %103 : vector<16x32xf32>
    %cst_68 = arith.constant 0.000000e+00 : f32
    %105 = vector.broadcast %cst_68 : f32 to vector<16x32xf32>
    %106 = arith.cmpf ogt, %104, %105 : vector<16x32xf32>
    %cst_69 = arith.constant 2.000000e-01 : f32
    %107 = vector.broadcast %cst_69 : f32 to vector<16x32xf32>
    %108 = arith.mulf %107, %104 : vector<16x32xf32>
    %109 = arith.select %106, %104, %108 : vector<16x32xi1>, vector<16x32xf32>
    %c40 = arith.constant 40 : index
    %c0_70 = arith.constant 0 : index
    %110 = vector.load %arg9[%c40, %c0_70] : memref<240x1xf32, #tpu.memory_space<vmem>>, vector<16x1xf32>
    %c56 = arith.constant 56 : index
    %c0_71 = arith.constant 0 : index
    %111 = vector.load %arg9[%c56, %c0_71] : memref<240x1xf32, #tpu.memory_space<vmem>>, vector<16x1xf32>
    %cst_72 = arith.constant dense<0.000000e+00> : vector<16xf32>
    %112 = vector.multi_reduction <add>, %109, %cst_72 [1] : vector<16x32xf32> to vector<16xf32>
    %113 = vector.shape_cast %112 : vector<16xf32> to vector<16x1xf32>
    %cst_73 = arith.constant 3.200000e+01 : f32
    %114 = vector.broadcast %cst_73 : f32 to vector<16x1xf32>
    %115 = arith.divf %113, %114 : vector<16x1xf32>
    %116 = vector.broadcast %115 : vector<16x1xf32> to vector<16x32xf32>
    %117 = arith.subf %109, %116 : vector<16x32xf32>
    %118 = arith.mulf %117, %117 : vector<16x32xf32>
    %cst_74 = arith.constant dense<0.000000e+00> : vector<16xf32>
    %119 = vector.multi_reduction <add>, %118, %cst_74 [1] : vector<16x32xf32> to vector<16xf32>
    %120 = vector.shape_cast %119 : vector<16xf32> to vector<16x1xf32>
    %cst_75 = arith.constant 3.200000e+01 : f32
    %121 = vector.broadcast %cst_75 : f32 to vector<16x1xf32>
    %122 = arith.divf %120, %121 : vector<16x1xf32>
    %123 = vector.broadcast %115 : vector<16x1xf32> to vector<16x32xf32>
    %124 = arith.subf %109, %123 : vector<16x32xf32>
    %cst_76 = arith.constant 9.99999974E-6 : f32
    %125 = vector.broadcast %cst_76 : f32 to vector<16x1xf32>
    %126 = arith.addf %122, %125 : vector<16x1xf32>
    %127 = math.rsqrt %126 : vector<16x1xf32>
    %128 = vector.broadcast %127 : vector<16x1xf32> to vector<16x32xf32>
    %129 = arith.mulf %124, %128 : vector<16x32xf32>
    %130 = vector.broadcast %110 : vector<16x1xf32> to vector<16x32xf32>
    %131 = arith.mulf %129, %130 : vector<16x32xf32>
    %132 = vector.broadcast %111 : vector<16x1xf32> to vector<16x32xf32>
    %133 = arith.addf %131, %132 : vector<16x32xf32>
    %c72 = arith.constant 72 : index
    %c0_77 = arith.constant 0 : index
    %134 = vector.load %arg9[%c72, %c0_77] : memref<240x1xf32, #tpu.memory_space<vmem>>, vector<32x1xf32>
    %c0_78 = arith.constant 0 : index
    %c0_79 = arith.constant 0 : index
    %c0_80 = arith.constant 0 : index
    %135 = vector.load %arg4[%c0_78, %c0_79, %c0_80] : memref<16x32x8xbf16, #tpu.memory_space<vmem>>, vector<1x32x8xbf16>
    %136 = vector.shape_cast %135 : vector<1x32x8xbf16> to vector<32x8xbf16>
    %137 = arith.extf %136 : vector<32x8xbf16> to vector<32x8xf32>
    %cst_81 = arith.constant dense<0.000000e+00> : vector<16x8xf32>
    %138 = tpu.matmul %133, %137, %cst_81 {dimension_numbers = #tpu.dot_dimension_numbers<[1], [0], [0], [1], [0, 0, 1, 1], [], []>} : vector<16x32xf32>, vector<32x8xf32>, vector<16x8xf32> -> vector<16x8xf32>
    %c1_82 = arith.constant 1 : index
    %c0_83 = arith.constant 0 : index
    %c0_84 = arith.constant 0 : index
    %139 = vector.load %arg4[%c1_82, %c0_83, %c0_84] : memref<16x32x8xbf16, #tpu.memory_space<vmem>>, vector<1x32x8xbf16>
    %140 = vector.shape_cast %139 : vector<1x32x8xbf16> to vector<32x8xbf16>
    %141 = arith.extf %140 : vector<32x8xbf16> to vector<32x8xf32>
    %cst_85 = arith.constant dense<0.000000e+00> : vector<16x8xf32>
    %142 = tpu.matmul %133, %141, %cst_85 {dimension_numbers = #tpu.dot_dimension_numbers<[1], [0], [0], [1], [0, 0, 1, 1], [], []>} : vector<16x32xf32>, vector<32x8xf32>, vector<16x8xf32> -> vector<16x8xf32>
    %c2_86 = arith.constant 2 : index
    %c0_87 = arith.constant 0 : index
    %c0_88 = arith.constant 0 : index
    %143 = vector.load %arg4[%c2_86, %c0_87, %c0_88] : memref<16x32x8xbf16, #tpu.memory_space<vmem>>, vector<1x32x8xbf16>
    %144 = vector.shape_cast %143 : vector<1x32x8xbf16> to vector<32x8xbf16>
    %145 = arith.extf %144 : vector<32x8xbf16> to vector<32x8xf32>
    %cst_89 = arith.constant dense<0.000000e+00> : vector<16x8xf32>
    %146 = tpu.matmul %133, %145, %cst_89 {dimension_numbers = #tpu.dot_dimension_numbers<[1], [0], [0], [1], [0, 0, 1, 1], [], []>} : vector<16x32xf32>, vector<32x8xf32>, vector<16x8xf32> -> vector<16x8xf32>
    %c3_90 = arith.constant 3 : index
    %c0_91 = arith.constant 0 : index
    %c0_92 = arith.constant 0 : index
    %147 = vector.load %arg4[%c3_90, %c0_91, %c0_92] : memref<16x32x8xbf16, #tpu.memory_space<vmem>>, vector<1x32x8xbf16>
    %148 = vector.shape_cast %147 : vector<1x32x8xbf16> to vector<32x8xbf16>
    %149 = arith.extf %148 : vector<32x8xbf16> to vector<32x8xf32>
    %cst_93 = arith.constant dense<0.000000e+00> : vector<16x8xf32>
    %150 = tpu.matmul %133, %149, %cst_93 {dimension_numbers = #tpu.dot_dimension_numbers<[1], [0], [0], [1], [0, 0, 1, 1], [], []>} : vector<16x32xf32>, vector<32x8xf32>, vector<16x8xf32> -> vector<16x8xf32>
    %c4_94 = arith.constant 4 : index
    %c0_95 = arith.constant 0 : index
    %c0_96 = arith.constant 0 : index
    %151 = vector.load %arg4[%c4_94, %c0_95, %c0_96] : memref<16x32x8xbf16, #tpu.memory_space<vmem>>, vector<1x32x8xbf16>
    %152 = vector.shape_cast %151 : vector<1x32x8xbf16> to vector<32x8xbf16>
    %153 = arith.extf %152 : vector<32x8xbf16> to vector<32x8xf32>
    %cst_97 = arith.constant dense<0.000000e+00> : vector<16x8xf32>
    %154 = tpu.matmul %133, %153, %cst_97 {dimension_numbers = #tpu.dot_dimension_numbers<[1], [0], [0], [1], [0, 0, 1, 1], [], []>} : vector<16x32xf32>, vector<32x8xf32>, vector<16x8xf32> -> vector<16x8xf32>
    %c5_98 = arith.constant 5 : index
    %c0_99 = arith.constant 0 : index
    %c0_100 = arith.constant 0 : index
    %155 = vector.load %arg4[%c5_98, %c0_99, %c0_100] : memref<16x32x8xbf16, #tpu.memory_space<vmem>>, vector<1x32x8xbf16>
    %156 = vector.shape_cast %155 : vector<1x32x8xbf16> to vector<32x8xbf16>
    %157 = arith.extf %156 : vector<32x8xbf16> to vector<32x8xf32>
    %cst_101 = arith.constant dense<0.000000e+00> : vector<16x8xf32>
    %158 = tpu.matmul %133, %157, %cst_101 {dimension_numbers = #tpu.dot_dimension_numbers<[1], [0], [0], [1], [0, 0, 1, 1], [], []>} : vector<16x32xf32>, vector<32x8xf32>, vector<16x8xf32> -> vector<16x8xf32>
    %c6_102 = arith.constant 6 : index
    %c0_103 = arith.constant 0 : index
    %c0_104 = arith.constant 0 : index
    %159 = vector.load %arg4[%c6_102, %c0_103, %c0_104] : memref<16x32x8xbf16, #tpu.memory_space<vmem>>, vector<1x32x8xbf16>
    %160 = vector.shape_cast %159 : vector<1x32x8xbf16> to vector<32x8xbf16>
    %161 = arith.extf %160 : vector<32x8xbf16> to vector<32x8xf32>
    %cst_105 = arith.constant dense<0.000000e+00> : vector<16x8xf32>
    %162 = tpu.matmul %133, %161, %cst_105 {dimension_numbers = #tpu.dot_dimension_numbers<[1], [0], [0], [1], [0, 0, 1, 1], [], []>} : vector<16x32xf32>, vector<32x8xf32>, vector<16x8xf32> -> vector<16x8xf32>
    %c7_106 = arith.constant 7 : index
    %c0_107 = arith.constant 0 : index
    %c0_108 = arith.constant 0 : index
    %163 = vector.load %arg4[%c7_106, %c0_107, %c0_108] : memref<16x32x8xbf16, #tpu.memory_space<vmem>>, vector<1x32x8xbf16>
    %164 = vector.shape_cast %163 : vector<1x32x8xbf16> to vector<32x8xbf16>
    %165 = arith.extf %164 : vector<32x8xbf16> to vector<32x8xf32>
    %cst_109 = arith.constant dense<0.000000e+00> : vector<16x8xf32>
    %166 = tpu.matmul %133, %165, %cst_109 {dimension_numbers = #tpu.dot_dimension_numbers<[1], [0], [0], [1], [0, 0, 1, 1], [], []>} : vector<16x32xf32>, vector<32x8xf32>, vector<16x8xf32> -> vector<16x8xf32>
    %c8_110 = arith.constant 8 : index
    %c0_111 = arith.constant 0 : index
    %c0_112 = arith.constant 0 : index
    %167 = vector.load %arg4[%c8_110, %c0_111, %c0_112] : memref<16x32x8xbf16, #tpu.memory_space<vmem>>, vector<1x32x8xbf16>
    %168 = vector.shape_cast %167 : vector<1x32x8xbf16> to vector<32x8xbf16>
    %169 = arith.extf %168 : vector<32x8xbf16> to vector<32x8xf32>
    %cst_113 = arith.constant dense<0.000000e+00> : vector<16x8xf32>
    %170 = tpu.matmul %133, %169, %cst_113 {dimension_numbers = #tpu.dot_dimension_numbers<[1], [0], [0], [1], [0, 0, 1, 1], [], []>} : vector<16x32xf32>, vector<32x8xf32>, vector<16x8xf32> -> vector<16x8xf32>
    %c9_114 = arith.constant 9 : index
    %c0_115 = arith.constant 0 : index
    %c0_116 = arith.constant 0 : index
    %171 = vector.load %arg4[%c9_114, %c0_115, %c0_116] : memref<16x32x8xbf16, #tpu.memory_space<vmem>>, vector<1x32x8xbf16>
    %172 = vector.shape_cast %171 : vector<1x32x8xbf16> to vector<32x8xbf16>
    %173 = arith.extf %172 : vector<32x8xbf16> to vector<32x8xf32>
    %cst_117 = arith.constant dense<0.000000e+00> : vector<16x8xf32>
    %174 = tpu.matmul %133, %173, %cst_117 {dimension_numbers = #tpu.dot_dimension_numbers<[1], [0], [0], [1], [0, 0, 1, 1], [], []>} : vector<16x32xf32>, vector<32x8xf32>, vector<16x8xf32> -> vector<16x8xf32>
    %c10_118 = arith.constant 10 : index
    %c0_119 = arith.constant 0 : index
    %c0_120 = arith.constant 0 : index
    %175 = vector.load %arg4[%c10_118, %c0_119, %c0_120] : memref<16x32x8xbf16, #tpu.memory_space<vmem>>, vector<1x32x8xbf16>
    %176 = vector.shape_cast %175 : vector<1x32x8xbf16> to vector<32x8xbf16>
    %177 = arith.extf %176 : vector<32x8xbf16> to vector<32x8xf32>
    %cst_121 = arith.constant dense<0.000000e+00> : vector<16x8xf32>
    %178 = tpu.matmul %133, %177, %cst_121 {dimension_numbers = #tpu.dot_dimension_numbers<[1], [0], [0], [1], [0, 0, 1, 1], [], []>} : vector<16x32xf32>, vector<32x8xf32>, vector<16x8xf32> -> vector<16x8xf32>
    %c11_122 = arith.constant 11 : index
    %c0_123 = arith.constant 0 : index
    %c0_124 = arith.constant 0 : index
    %179 = vector.load %arg4[%c11_122, %c0_123, %c0_124] : memref<16x32x8xbf16, #tpu.memory_space<vmem>>, vector<1x32x8xbf16>
    %180 = vector.shape_cast %179 : vector<1x32x8xbf16> to vector<32x8xbf16>
    %181 = arith.extf %180 : vector<32x8xbf16> to vector<32x8xf32>
    %cst_125 = arith.constant dense<0.000000e+00> : vector<16x8xf32>
    %182 = tpu.matmul %133, %181, %cst_125 {dimension_numbers = #tpu.dot_dimension_numbers<[1], [0], [0], [1], [0, 0, 1, 1], [], []>} : vector<16x32xf32>, vector<32x8xf32>, vector<16x8xf32> -> vector<16x8xf32>
    %c12_126 = arith.constant 12 : index
    %c0_127 = arith.constant 0 : index
    %c0_128 = arith.constant 0 : index
    %183 = vector.load %arg4[%c12_126, %c0_127, %c0_128] : memref<16x32x8xbf16, #tpu.memory_space<vmem>>, vector<1x32x8xbf16>
    %184 = vector.shape_cast %183 : vector<1x32x8xbf16> to vector<32x8xbf16>
    %185 = arith.extf %184 : vector<32x8xbf16> to vector<32x8xf32>
    %cst_129 = arith.constant dense<0.000000e+00> : vector<16x8xf32>
    %186 = tpu.matmul %133, %185, %cst_129 {dimension_numbers = #tpu.dot_dimension_numbers<[1], [0], [0], [1], [0, 0, 1, 1], [], []>} : vector<16x32xf32>, vector<32x8xf32>, vector<16x8xf32> -> vector<16x8xf32>
    %c13_130 = arith.constant 13 : index
    %c0_131 = arith.constant 0 : index
    %c0_132 = arith.constant 0 : index
    %187 = vector.load %arg4[%c13_130, %c0_131, %c0_132] : memref<16x32x8xbf16, #tpu.memory_space<vmem>>, vector<1x32x8xbf16>
    %188 = vector.shape_cast %187 : vector<1x32x8xbf16> to vector<32x8xbf16>
    %189 = arith.extf %188 : vector<32x8xbf16> to vector<32x8xf32>
    %cst_133 = arith.constant dense<0.000000e+00> : vector<16x8xf32>
    %190 = tpu.matmul %133, %189, %cst_133 {dimension_numbers = #tpu.dot_dimension_numbers<[1], [0], [0], [1], [0, 0, 1, 1], [], []>} : vector<16x32xf32>, vector<32x8xf32>, vector<16x8xf32> -> vector<16x8xf32>
    %c14_134 = arith.constant 14 : index
    %c0_135 = arith.constant 0 : index
    %c0_136 = arith.constant 0 : index
    %191 = vector.load %arg4[%c14_134, %c0_135, %c0_136] : memref<16x32x8xbf16, #tpu.memory_space<vmem>>, vector<1x32x8xbf16>
    %192 = vector.shape_cast %191 : vector<1x32x8xbf16> to vector<32x8xbf16>
    %193 = arith.extf %192 : vector<32x8xbf16> to vector<32x8xf32>
    %cst_137 = arith.constant dense<0.000000e+00> : vector<16x8xf32>
    %194 = tpu.matmul %133, %193, %cst_137 {dimension_numbers = #tpu.dot_dimension_numbers<[1], [0], [0], [1], [0, 0, 1, 1], [], []>} : vector<16x32xf32>, vector<32x8xf32>, vector<16x8xf32> -> vector<16x8xf32>
    %c15_138 = arith.constant 15 : index
    %c0_139 = arith.constant 0 : index
    %c0_140 = arith.constant 0 : index
    %195 = vector.load %arg4[%c15_138, %c0_139, %c0_140] : memref<16x32x8xbf16, #tpu.memory_space<vmem>>, vector<1x32x8xbf16>
    %196 = vector.shape_cast %195 : vector<1x32x8xbf16> to vector<32x8xbf16>
    %197 = arith.extf %196 : vector<32x8xbf16> to vector<32x8xf32>
    %cst_141 = arith.constant dense<0.000000e+00> : vector<16x8xf32>
    %198 = tpu.matmul %133, %197, %cst_141 {dimension_numbers = #tpu.dot_dimension_numbers<[1], [0], [0], [1], [0, 0, 1, 1], [], []>} : vector<16x32xf32>, vector<32x8xf32>, vector<16x8xf32> -> vector<16x8xf32>
    %199 = tpu.concatenate %138, %142, %146, %150, %154, %158, %162, %166, %170, %174, %178, %182, %186, %190, %194, %198 in 0 : vector<16x8xf32>, vector<16x8xf32>, vector<16x8xf32>, vector<16x8xf32>, vector<16x8xf32>, vector<16x8xf32>, vector<16x8xf32>, vector<16x8xf32>, vector<16x8xf32>, vector<16x8xf32>, vector<16x8xf32>, vector<16x8xf32>, vector<16x8xf32>, vector<16x8xf32>, vector<16x8xf32>, vector<16x8xf32> -> vector<256x8xf32>
    %c0_142 = arith.constant 0 : index
    %c0_143 = arith.constant 0 : index
    %200 = vector.load %arg5[%c0_142, %c0_143] : memref<32x256xf32, #tpu.memory_space<vmem>>, vector<32x256xf32>
    %cst_144 = arith.constant dense<0.000000e+00> : vector<32x8xf32>
    %201 = tpu.matmul %200, %199, %cst_144 {dimension_numbers = #tpu.dot_dimension_numbers<[1], [0], [0], [1], [0, 0, 1, 1], [], []>} : vector<32x256xf32>, vector<256x8xf32>, vector<32x8xf32> -> vector<32x8xf32>
    %202 = vector.broadcast %134 : vector<32x1xf32> to vector<32x8xf32>
    %203 = arith.addf %201, %202 : vector<32x8xf32>
    %cst_145 = arith.constant 0.000000e+00 : f32
    %204 = vector.broadcast %cst_145 : f32 to vector<32x8xf32>
    %205 = arith.cmpf ogt, %203, %204 : vector<32x8xf32>
    %cst_146 = arith.constant 2.000000e-01 : f32
    %206 = vector.broadcast %cst_146 : f32 to vector<32x8xf32>
    %207 = arith.mulf %206, %203 : vector<32x8xf32>
    %208 = arith.select %205, %203, %207 : vector<32x8xi1>, vector<32x8xf32>
    %c104 = arith.constant 104 : index
    %c0_147 = arith.constant 0 : index
    %209 = vector.load %arg9[%c104, %c0_147] : memref<240x1xf32, #tpu.memory_space<vmem>>, vector<32x1xf32>
    %c136 = arith.constant 136 : index
    %c0_148 = arith.constant 0 : index
    %210 = vector.load %arg9[%c136, %c0_148] : memref<240x1xf32, #tpu.memory_space<vmem>>, vector<32x1xf32>
    %cst_149 = arith.constant dense<0.000000e+00> : vector<32xf32>
    %211 = vector.multi_reduction <add>, %208, %cst_149 [1] : vector<32x8xf32> to vector<32xf32>
    %212 = vector.shape_cast %211 : vector<32xf32> to vector<32x1xf32>
    %cst_150 = arith.constant 8.000000e+00 : f32
    %213 = vector.broadcast %cst_150 : f32 to vector<32x1xf32>
    %214 = arith.divf %212, %213 : vector<32x1xf32>
    %215 = vector.broadcast %214 : vector<32x1xf32> to vector<32x8xf32>
    %216 = arith.subf %208, %215 : vector<32x8xf32>
    %217 = arith.mulf %216, %216 : vector<32x8xf32>
    %cst_151 = arith.constant dense<0.000000e+00> : vector<32xf32>
    %218 = vector.multi_reduction <add>, %217, %cst_151 [1] : vector<32x8xf32> to vector<32xf32>
    %219 = vector.shape_cast %218 : vector<32xf32> to vector<32x1xf32>
    %cst_152 = arith.constant 8.000000e+00 : f32
    %220 = vector.broadcast %cst_152 : f32 to vector<32x1xf32>
    %221 = arith.divf %219, %220 : vector<32x1xf32>
    %222 = vector.broadcast %214 : vector<32x1xf32> to vector<32x8xf32>
    %223 = arith.subf %208, %222 : vector<32x8xf32>
    %cst_153 = arith.constant 9.99999974E-6 : f32
    %224 = vector.broadcast %cst_153 : f32 to vector<32x1xf32>
    %225 = arith.addf %221, %224 : vector<32x1xf32>
    %226 = math.rsqrt %225 : vector<32x1xf32>
    %227 = vector.broadcast %226 : vector<32x1xf32> to vector<32x8xf32>
    %228 = arith.mulf %223, %227 : vector<32x8xf32>
    %229 = vector.broadcast %209 : vector<32x1xf32> to vector<32x8xf32>
    %230 = arith.mulf %228, %229 : vector<32x8xf32>
    %231 = vector.broadcast %210 : vector<32x1xf32> to vector<32x8xf32>
    %232 = arith.addf %230, %231 : vector<32x8xf32>
    %c168 = arith.constant 168 : index
    %c0_154 = arith.constant 0 : index
    %233 = vector.load %arg9[%c168, %c0_154] : memref<240x1xf32, #tpu.memory_space<vmem>>, vector<64x1xf32>
    %c0_155 = arith.constant 0 : index
    %c0_156 = arith.constant 0 : index
    %c0_157 = arith.constant 0 : index
    %234 = vector.load %arg6[%c0_155, %c0_156, %c0_157] : memref<16x8x2xbf16, #tpu.memory_space<vmem>>, vector<1x8x2xbf16>
    %235 = vector.shape_cast %234 : vector<1x8x2xbf16> to vector<8x2xbf16>
    %236 = arith.extf %235 : vector<8x2xbf16> to vector<8x2xf32>
    %cst_158 = arith.constant dense<0.000000e+00> : vector<32x2xf32>
    %237 = tpu.matmul %232, %236, %cst_158 {dimension_numbers = #tpu.dot_dimension_numbers<[1], [0], [0], [1], [0, 0, 1, 1], [], []>} : vector<32x8xf32>, vector<8x2xf32>, vector<32x2xf32> -> vector<32x2xf32>
    %c1_159 = arith.constant 1 : index
    %c0_160 = arith.constant 0 : index
    %c0_161 = arith.constant 0 : index
    %238 = vector.load %arg6[%c1_159, %c0_160, %c0_161] : memref<16x8x2xbf16, #tpu.memory_space<vmem>>, vector<1x8x2xbf16>
    %239 = vector.shape_cast %238 : vector<1x8x2xbf16> to vector<8x2xbf16>
    %240 = arith.extf %239 : vector<8x2xbf16> to vector<8x2xf32>
    %cst_162 = arith.constant dense<0.000000e+00> : vector<32x2xf32>
    %241 = tpu.matmul %232, %240, %cst_162 {dimension_numbers = #tpu.dot_dimension_numbers<[1], [0], [0], [1], [0, 0, 1, 1], [], []>} : vector<32x8xf32>, vector<8x2xf32>, vector<32x2xf32> -> vector<32x2xf32>
    %c2_163 = arith.constant 2 : index
    %c0_164 = arith.constant 0 : index
    %c0_165 = arith.constant 0 : index
    %242 = vector.load %arg6[%c2_163, %c0_164, %c0_165] : memref<16x8x2xbf16, #tpu.memory_space<vmem>>, vector<1x8x2xbf16>
    %243 = vector.shape_cast %242 : vector<1x8x2xbf16> to vector<8x2xbf16>
    %244 = arith.extf %243 : vector<8x2xbf16> to vector<8x2xf32>
    %cst_166 = arith.constant dense<0.000000e+00> : vector<32x2xf32>
    %245 = tpu.matmul %232, %244, %cst_166 {dimension_numbers = #tpu.dot_dimension_numbers<[1], [0], [0], [1], [0, 0, 1, 1], [], []>} : vector<32x8xf32>, vector<8x2xf32>, vector<32x2xf32> -> vector<32x2xf32>
    %c3_167 = arith.constant 3 : index
    %c0_168 = arith.constant 0 : index
    %c0_169 = arith.constant 0 : index
    %246 = vector.load %arg6[%c3_167, %c0_168, %c0_169] : memref<16x8x2xbf16, #tpu.memory_space<vmem>>, vector<1x8x2xbf16>
    %247 = vector.shape_cast %246 : vector<1x8x2xbf16> to vector<8x2xbf16>
    %248 = arith.extf %247 : vector<8x2xbf16> to vector<8x2xf32>
    %cst_170 = arith.constant dense<0.000000e+00> : vector<32x2xf32>
    %249 = tpu.matmul %232, %248, %cst_170 {dimension_numbers = #tpu.dot_dimension_numbers<[1], [0], [0], [1], [0, 0, 1, 1], [], []>} : vector<32x8xf32>, vector<8x2xf32>, vector<32x2xf32> -> vector<32x2xf32>
    %c4_171 = arith.constant 4 : index
    %c0_172 = arith.constant 0 : index
    %c0_173 = arith.constant 0 : index
    %250 = vector.load %arg6[%c4_171, %c0_172, %c0_173] : memref<16x8x2xbf16, #tpu.memory_space<vmem>>, vector<1x8x2xbf16>
    %251 = vector.shape_cast %250 : vector<1x8x2xbf16> to vector<8x2xbf16>
    %252 = arith.extf %251 : vector<8x2xbf16> to vector<8x2xf32>
    %cst_174 = arith.constant dense<0.000000e+00> : vector<32x2xf32>
    %253 = tpu.matmul %232, %252, %cst_174 {dimension_numbers = #tpu.dot_dimension_numbers<[1], [0], [0], [1], [0, 0, 1, 1], [], []>} : vector<32x8xf32>, vector<8x2xf32>, vector<32x2xf32> -> vector<32x2xf32>
    %c5_175 = arith.constant 5 : index
    %c0_176 = arith.constant 0 : index
    %c0_177 = arith.constant 0 : index
    %254 = vector.load %arg6[%c5_175, %c0_176, %c0_177] : memref<16x8x2xbf16, #tpu.memory_space<vmem>>, vector<1x8x2xbf16>
    %255 = vector.shape_cast %254 : vector<1x8x2xbf16> to vector<8x2xbf16>
    %256 = arith.extf %255 : vector<8x2xbf16> to vector<8x2xf32>
    %cst_178 = arith.constant dense<0.000000e+00> : vector<32x2xf32>
    %257 = tpu.matmul %232, %256, %cst_178 {dimension_numbers = #tpu.dot_dimension_numbers<[1], [0], [0], [1], [0, 0, 1, 1], [], []>} : vector<32x8xf32>, vector<8x2xf32>, vector<32x2xf32> -> vector<32x2xf32>
    %c6_179 = arith.constant 6 : index
    %c0_180 = arith.constant 0 : index
    %c0_181 = arith.constant 0 : index
    %258 = vector.load %arg6[%c6_179, %c0_180, %c0_181] : memref<16x8x2xbf16, #tpu.memory_space<vmem>>, vector<1x8x2xbf16>
    %259 = vector.shape_cast %258 : vector<1x8x2xbf16> to vector<8x2xbf16>
    %260 = arith.extf %259 : vector<8x2xbf16> to vector<8x2xf32>
    %cst_182 = arith.constant dense<0.000000e+00> : vector<32x2xf32>
    %261 = tpu.matmul %232, %260, %cst_182 {dimension_numbers = #tpu.dot_dimension_numbers<[1], [0], [0], [1], [0, 0, 1, 1], [], []>} : vector<32x8xf32>, vector<8x2xf32>, vector<32x2xf32> -> vector<32x2xf32>
    %c7_183 = arith.constant 7 : index
    %c0_184 = arith.constant 0 : index
    %c0_185 = arith.constant 0 : index
    %262 = vector.load %arg6[%c7_183, %c0_184, %c0_185] : memref<16x8x2xbf16, #tpu.memory_space<vmem>>, vector<1x8x2xbf16>
    %263 = vector.shape_cast %262 : vector<1x8x2xbf16> to vector<8x2xbf16>
    %264 = arith.extf %263 : vector<8x2xbf16> to vector<8x2xf32>
    %cst_186 = arith.constant dense<0.000000e+00> : vector<32x2xf32>
    %265 = tpu.matmul %232, %264, %cst_186 {dimension_numbers = #tpu.dot_dimension_numbers<[1], [0], [0], [1], [0, 0, 1, 1], [], []>} : vector<32x8xf32>, vector<8x2xf32>, vector<32x2xf32> -> vector<32x2xf32>
    %c8_187 = arith.constant 8 : index
    %c0_188 = arith.constant 0 : index
    %c0_189 = arith.constant 0 : index
    %266 = vector.load %arg6[%c8_187, %c0_188, %c0_189] : memref<16x8x2xbf16, #tpu.memory_space<vmem>>, vector<1x8x2xbf16>
    %267 = vector.shape_cast %266 : vector<1x8x2xbf16> to vector<8x2xbf16>
    %268 = arith.extf %267 : vector<8x2xbf16> to vector<8x2xf32>
    %cst_190 = arith.constant dense<0.000000e+00> : vector<32x2xf32>
    %269 = tpu.matmul %232, %268, %cst_190 {dimension_numbers = #tpu.dot_dimension_numbers<[1], [0], [0], [1], [0, 0, 1, 1], [], []>} : vector<32x8xf32>, vector<8x2xf32>, vector<32x2xf32> -> vector<32x2xf32>
    %c9_191 = arith.constant 9 : index
    %c0_192 = arith.constant 0 : index
    %c0_193 = arith.constant 0 : index
    %270 = vector.load %arg6[%c9_191, %c0_192, %c0_193] : memref<16x8x2xbf16, #tpu.memory_space<vmem>>, vector<1x8x2xbf16>
    %271 = vector.shape_cast %270 : vector<1x8x2xbf16> to vector<8x2xbf16>
    %272 = arith.extf %271 : vector<8x2xbf16> to vector<8x2xf32>
    %cst_194 = arith.constant dense<0.000000e+00> : vector<32x2xf32>
    %273 = tpu.matmul %232, %272, %cst_194 {dimension_numbers = #tpu.dot_dimension_numbers<[1], [0], [0], [1], [0, 0, 1, 1], [], []>} : vector<32x8xf32>, vector<8x2xf32>, vector<32x2xf32> -> vector<32x2xf32>
    %c10_195 = arith.constant 10 : index
    %c0_196 = arith.constant 0 : index
    %c0_197 = arith.constant 0 : index
    %274 = vector.load %arg6[%c10_195, %c0_196, %c0_197] : memref<16x8x2xbf16, #tpu.memory_space<vmem>>, vector<1x8x2xbf16>
    %275 = vector.shape_cast %274 : vector<1x8x2xbf16> to vector<8x2xbf16>
    %276 = arith.extf %275 : vector<8x2xbf16> to vector<8x2xf32>
    %cst_198 = arith.constant dense<0.000000e+00> : vector<32x2xf32>
    %277 = tpu.matmul %232, %276, %cst_198 {dimension_numbers = #tpu.dot_dimension_numbers<[1], [0], [0], [1], [0, 0, 1, 1], [], []>} : vector<32x8xf32>, vector<8x2xf32>, vector<32x2xf32> -> vector<32x2xf32>
    %c11_199 = arith.constant 11 : index
    %c0_200 = arith.constant 0 : index
    %c0_201 = arith.constant 0 : index
    %278 = vector.load %arg6[%c11_199, %c0_200, %c0_201] : memref<16x8x2xbf16, #tpu.memory_space<vmem>>, vector<1x8x2xbf16>
    %279 = vector.shape_cast %278 : vector<1x8x2xbf16> to vector<8x2xbf16>
    %280 = arith.extf %279 : vector<8x2xbf16> to vector<8x2xf32>
    %cst_202 = arith.constant dense<0.000000e+00> : vector<32x2xf32>
    %281 = tpu.matmul %232, %280, %cst_202 {dimension_numbers = #tpu.dot_dimension_numbers<[1], [0], [0], [1], [0, 0, 1, 1], [], []>} : vector<32x8xf32>, vector<8x2xf32>, vector<32x2xf32> -> vector<32x2xf32>
    %c12_203 = arith.constant 12 : index
    %c0_204 = arith.constant 0 : index
    %c0_205 = arith.constant 0 : index
    %282 = vector.load %arg6[%c12_203, %c0_204, %c0_205] : memref<16x8x2xbf16, #tpu.memory_space<vmem>>, vector<1x8x2xbf16>
    %283 = vector.shape_cast %282 : vector<1x8x2xbf16> to vector<8x2xbf16>
    %284 = arith.extf %283 : vector<8x2xbf16> to vector<8x2xf32>
    %cst_206 = arith.constant dense<0.000000e+00> : vector<32x2xf32>
    %285 = tpu.matmul %232, %284, %cst_206 {dimension_numbers = #tpu.dot_dimension_numbers<[1], [0], [0], [1], [0, 0, 1, 1], [], []>} : vector<32x8xf32>, vector<8x2xf32>, vector<32x2xf32> -> vector<32x2xf32>
    %c13_207 = arith.constant 13 : index
    %c0_208 = arith.constant 0 : index
    %c0_209 = arith.constant 0 : index
    %286 = vector.load %arg6[%c13_207, %c0_208, %c0_209] : memref<16x8x2xbf16, #tpu.memory_space<vmem>>, vector<1x8x2xbf16>
    %287 = vector.shape_cast %286 : vector<1x8x2xbf16> to vector<8x2xbf16>
    %288 = arith.extf %287 : vector<8x2xbf16> to vector<8x2xf32>
    %cst_210 = arith.constant dense<0.000000e+00> : vector<32x2xf32>
    %289 = tpu.matmul %232, %288, %cst_210 {dimension_numbers = #tpu.dot_dimension_numbers<[1], [0], [0], [1], [0, 0, 1, 1], [], []>} : vector<32x8xf32>, vector<8x2xf32>, vector<32x2xf32> -> vector<32x2xf32>
    %c14_211 = arith.constant 14 : index
    %c0_212 = arith.constant 0 : index
    %c0_213 = arith.constant 0 : index
    %290 = vector.load %arg6[%c14_211, %c0_212, %c0_213] : memref<16x8x2xbf16, #tpu.memory_space<vmem>>, vector<1x8x2xbf16>
    %291 = vector.shape_cast %290 : vector<1x8x2xbf16> to vector<8x2xbf16>
    %292 = arith.extf %291 : vector<8x2xbf16> to vector<8x2xf32>
    %cst_214 = arith.constant dense<0.000000e+00> : vector<32x2xf32>
    %293 = tpu.matmul %232, %292, %cst_214 {dimension_numbers = #tpu.dot_dimension_numbers<[1], [0], [0], [1], [0, 0, 1, 1], [], []>} : vector<32x8xf32>, vector<8x2xf32>, vector<32x2xf32> -> vector<32x2xf32>
    %c15_215 = arith.constant 15 : index
    %c0_216 = arith.constant 0 : index
    %c0_217 = arith.constant 0 : index
    %294 = vector.load %arg6[%c15_215, %c0_216, %c0_217] : memref<16x8x2xbf16, #tpu.memory_space<vmem>>, vector<1x8x2xbf16>
    %295 = vector.shape_cast %294 : vector<1x8x2xbf16> to vector<8x2xbf16>
    %296 = arith.extf %295 : vector<8x2xbf16> to vector<8x2xf32>
    %cst_218 = arith.constant dense<0.000000e+00> : vector<32x2xf32>
    %297 = tpu.matmul %232, %296, %cst_218 {dimension_numbers = #tpu.dot_dimension_numbers<[1], [0], [0], [1], [0, 0, 1, 1], [], []>} : vector<32x8xf32>, vector<8x2xf32>, vector<32x2xf32> -> vector<32x2xf32>
    %298 = tpu.concatenate %237, %241, %245, %249, %253, %257, %261, %265, %269, %273, %277, %281, %285, %289, %293, %297 in 0 : vector<32x2xf32>, vector<32x2xf32>, vector<32x2xf32>, vector<32x2xf32>, vector<32x2xf32>, vector<32x2xf32>, vector<32x2xf32>, vector<32x2xf32>, vector<32x2xf32>, vector<32x2xf32>, vector<32x2xf32>, vector<32x2xf32>, vector<32x2xf32>, vector<32x2xf32>, vector<32x2xf32>, vector<32x2xf32> -> vector<512x2xf32>
    %c0_219 = arith.constant 0 : index
    %c0_220 = arith.constant 0 : index
    %299 = vector.load %arg7[%c0_219, %c0_220] : memref<64x512xf32, #tpu.memory_space<vmem>>, vector<64x512xf32>
    %cst_221 = arith.constant dense<0.000000e+00> : vector<64x2xf32>
    %300 = tpu.matmul %299, %298, %cst_221 {dimension_numbers = #tpu.dot_dimension_numbers<[1], [0], [0], [1], [0, 0, 1, 1], [], []>} : vector<64x512xf32>, vector<512x2xf32>, vector<64x2xf32> -> vector<64x2xf32>
    %301 = vector.broadcast %233 : vector<64x1xf32> to vector<64x2xf32>
    %302 = arith.addf %300, %301 : vector<64x2xf32>
    %cst_222 = arith.constant 0.000000e+00 : f32
    %303 = vector.broadcast %cst_222 : f32 to vector<64x2xf32>
    %304 = arith.subf %303, %302 : vector<64x2xf32>
    %305 = math.exp %304 : vector<64x2xf32>
    %cst_223 = arith.constant 1.000000e+00 : f32
    %306 = vector.broadcast %cst_223 : f32 to vector<64x2xf32>
    %307 = arith.addf %306, %305 : vector<64x2xf32>
    %308 = tpu.reciprocal %307 : vector<64x2xf32> -> vector<64x2xf32>
    %c0_224 = arith.constant 0 : index
    %c0_225 = arith.constant 0 : index
    %309 = vector.load %arg8[%c0_224, %c0_225] : memref<8x64xf32, #tpu.memory_space<vmem>>, vector<8x64xf32>
    %cst_226 = arith.constant dense<0.000000e+00> : vector<8x2xf32>
    %310 = tpu.matmul %309, %308, %cst_226 {dimension_numbers = #tpu.dot_dimension_numbers<[1], [0], [0], [1], [0, 0, 1, 1], [], []>} : vector<8x64xf32>, vector<64x2xf32>, vector<8x2xf32> -> vector<8x2xf32>
    %c232 = arith.constant 232 : index
    %c0_227 = arith.constant 0 : index
    %311 = vector.load %arg9[%c232, %c0_227] : memref<240x1xf32, #tpu.memory_space<vmem>>, vector<8x1xf32>
    %312 = vector.broadcast %311 : vector<8x1xf32> to vector<8x2xf32>
    %313 = arith.addf %310, %312 : vector<8x2xf32>
    %314 = math.tanh %313 : vector<8x2xf32>
    %c0_228 = arith.constant 0 : index
    %c0_229 = arith.constant 0 : index
    %315 = vector.load %arg10[%c0_228, %c0_229] : memref<8x2xf32, #tpu.memory_space<vmem>>, vector<8x2xf32>
    tpu.vector_store %arg10[%c0_228, %c0_229], %314 {strides = array<i32>} : memref<8x2xf32, #tpu.memory_space<vmem>>, vector<8x2xf32>,
    return
  }
}

</mosaic_0001>

<llo_original>
// kernel: encoder_forward.1
$region0: #{encoder_forward.1}
  #allocation0 [shape = 'u32[]', space=smem, size = 0x4, offset = 0x4, fixed_abs, tag = 'smem constant byte address 0x4 - core index']
  #allocation1 [shape = 'u32[72,128]{1,0:T(1,128)}', space=vmem, size = 0x9000, scoped, tag = 'internal scratch']
  %s0 = inlined_call_operand.vmem [shape: f32[16,128], index: 0, kind: input, shape index: {}]
  %s1 = inlined_call_operand.vmem [shape: f32[8,16], index: 1, kind: input, shape index: {}]
  %s2 = inlined_call_operand.vmem [shape: bf16[16,128,32], index: 2, kind: input, shape index: {}]
  %s3 = inlined_call_operand.vmem [shape: f32[16,128], index: 3, kind: input, shape index: {}]
  %s4 = inlined_call_operand.vmem [shape: bf16[16,32,8], index: 4, kind: input, shape index: {}]
  %s5 = inlined_call_operand.vmem [shape: f32[32,256], index: 5, kind: input, shape index: {}]
  %s6 = inlined_call_operand.vmem [shape: bf16[16,8,2], index: 6, kind: input, shape index: {}]
  %s7 = inlined_call_operand.vmem [shape: f32[64,512], index: 7, kind: input, shape index: {}]
  %s8 = inlined_call_operand.vmem [shape: f32[8,64], index: 8, kind: input, shape index: {}]
  %s9 = inlined_call_operand.vmem [shape: f32[240,1], index: 9, kind: input, shape index: {}]
  %s10 = inlined_call_operand.vmem [shape: f32[8,2], index: 10, kind: output, shape index: {}]
  %s11 = sld [smem:[#allocation0]]
  $region50: #{encoder_forward.1} parent=0
    _
  %s13 = ssub.s32 1, %s11
  %s14 = scalar_select 0, %s13, %s11
  // Predicated region
  $region2: #{encoder_forward.1} parent=0 // pred_check
    _
  $region3: #{encoder_forward.1} parent=0 // pred_check_branch
    %16 = sbr.rel (0) target = $region5
  $region4: #{encoder_forward.1} parent=0 // pred_region
    _
  $region5: #{encoder_forward.1} parent=0 // pred_fallthru
    _
  // Predicated region
  $region6: #{encoder_forward.1} parent=0 // pred_check
    _
  $region7: #{encoder_forward.1} parent=0 // pred_check_branch
    %18 = sbr.rel (0) target = $region9
  $region8: #{encoder_forward.1} parent=0 // pred_region
    _
  $region9: #{encoder_forward.1} parent=0 // pred_fallthru
    _
  // Predicated region
  $region10: #{encoder_forward.1} parent=0 // pred_check
    _
  $region11: #{encoder_forward.1} parent=0 // pred_check_branch
    %20 = sbr.rel (0) target = $region13
  $region12: #{encoder_forward.1} parent=0 // pred_region
    _
  $region13: #{encoder_forward.1} parent=0 // pred_fallthru
    _
  // Predicated region
  $region14: #{encoder_forward.1} parent=0 // pred_check
    _
  $region15: #{encoder_forward.1} parent=0 // pred_check_branch
    %22 = sbr.rel (0) target = $region17
  $region16: #{encoder_forward.1} parent=0 // pred_region
    _
  $region17: #{encoder_forward.1} parent=0 // pred_fallthru
    _
  // Predicated region
  $region18: #{encoder_forward.1} parent=0 // pred_check
    _
  $region19: #{encoder_forward.1} parent=0 // pred_check_branch
    %24 = sbr.rel (0) target = $region21
  $region20: #{encoder_forward.1} parent=0 // pred_region
    _
  $region21: #{encoder_forward.1} parent=0 // pred_fallthru
    _
  // Predicated region
  $region22: #{encoder_forward.1} parent=0 // pred_check
    _
  $region23: #{encoder_forward.1} parent=0 // pred_check_branch
    %26 = sbr.rel (0) target = $region25
  $region24: #{encoder_forward.1} parent=0 // pred_region
    _
  $region25: #{encoder_forward.1} parent=0 // pred_fallthru
    _
  // Predicated region
  $region26: #{encoder_forward.1} parent=0 // pred_check
    _
  $region27: #{encoder_forward.1} parent=0 // pred_check_branch
    %28 = sbr.rel (0) target = $region29
  $region28: #{encoder_forward.1} parent=0 // pred_region
    _
  $region29: #{encoder_forward.1} parent=0 // pred_fallthru
    _
  // Predicated region
  $region30: #{encoder_forward.1} parent=0 // pred_check
    _
  $region31: #{encoder_forward.1} parent=0 // pred_check_branch
    %30 = sbr.rel (0) target = $region33
  $region32: #{encoder_forward.1} parent=0 // pred_region
    _
  $region33: #{encoder_forward.1} parent=0 // pred_fallthru
    _
  // Predicated region
  $region34: #{encoder_forward.1} parent=0 // pred_check
    _
  $region35: #{encoder_forward.1} parent=0 // pred_check_branch
    %32 = sbr.rel (0) target = $region37
  $region36: #{encoder_forward.1} parent=0 // pred_region
    _
  $region37: #{encoder_forward.1} parent=0 // pred_fallthru
    _
  // Predicated region
  $region38: #{encoder_forward.1} parent=0 // pred_check
    _
  $region39: #{encoder_forward.1} parent=0 // pred_check_branch
    %34 = sbr.rel (0) target = $region41
  $region40: #{encoder_forward.1} parent=0 // pred_region
    _
  $region41: #{encoder_forward.1} parent=0 // pred_fallthru
    _
  %v35 = vld [vmem:[%s1] sm:$0xff]
  %v36 = vld [vmem:[%s0] sm:$0xff]
  %v37 = vld [vmem:[%s0 + $0x8] sm:$0xff]
  %v38 = vld [vmem:[%s9] sm:$0xff]
  %40 = vset.pattern.permute.xlu0 0
  %41 = vperm.xlu0 %40, %v38
  %v42 = vpop.permute.xlu0 %41
  %vm44 = vcmask 130048
  %v46 = vsel %vm44, %v35, 0
  %48 = vmatpush.msra.mxu0 0.0
  %49 = vmatpush.msra.mxu0 0.0
  %50 = vmatpush.msra.mxu0 0.0
  %51 = vmatpush.msra.mxu0 0.0
  %52 = vmatpush.msra.mxu0 0.0
  %53 = vmatpush.msra.mxu0 0.0
  %54 = vmatpush.msra.mxu0 0.0
  %55 = vmatpush.msra.mxu0 0.0
  %56 = vmatpush.msra.mxu0 0.0
  %57 = vmatpush.msra.mxu0 0.0
  %58 = vmatpush.msra.mxu0 0.0
  %59 = vmatpush.msra.mxu0 0.0
  %60 = vmatpush.msra.mxu0 0.0
  %61 = vmatpush.msra.mxu0 0.0
  %62 = vmatpush.msra.mxu0 %v37
  %63 = vmatpush.msra.mxu0 %v36
  %64 = vmatmul.f32.gmra.mxu0 %v46
  %v65 = vpop.f32.mrf.mxu0
  %v66 = vadd.f32 %v42, %v65
  %67 = vdwg.mxu0
  %vm68 = vcmp.gt.f32.partialorder %v66, 0.0
  %v69 = vmul.f32 %v66, 0.2
  %v70 = vsel %vm68, %v66, %v69
  %v71 = vld [vmem:[%s9 + $0x8] sm:$0xff]
  %v72 = vld [vmem:[%s9 + $0x10] sm:$0xff]
  %73 = vadd.xlane.f32.xlu0 %v70
  %v74 = vpop.xlane.xlu0 %73
  %v75 = vrcp.pop 128.0
  %v76 = vmul.f32 128.0, %v75
  %v77 = vsub.f32 1.0, %v76
  %v78 = vmul.f32 %v75, %v77
  %v79 = vadd.f32 %v75, %v78
  %vm80 = vweird.f32 %v75
  %v81 = vsel %vm80, %v75, %v79
  %v82 = vmul.f32 %v74, %v81
  %v83 = vsub.f32 %v70, %v82
  %v84 = vmul.f32 %v83, %v83
  %85 = vadd.xlane.f32.xlu0 %v84
  %v86 = vpop.xlane.xlu0 %85
  %v87 = vmul.f32 %v86, %v81
  %v88 = vadd.f32 %v87, 1e-05
  %v89 = vrsqrt.pop %v88
  %v90 = vmul.f32 %v89, %v88
  %v91 = vmul.f32 %v90, %v89
  %v92 = vmul.f32 0.5, %v91
  %v93 = vsub.f32 1.5, %v92
  %v94 = vmul.f32 %v89, %v93
  %vm95 = vweird.f32 %v88
  %vm96 = vweird.f32 %v89
  %vm97 = vmor %vm95, %vm96
  %v98 = vsel %vm97, %v89, %v94
  %v99 = vmul.f32 %v83, %v98
  %101 = vset.pattern.permute.xlu0 0
  %102 = vperm.xlu0 %101, %v71
  %v103 = vpop.permute.xlu0 %102
  %v105 = vmul.f32 %v99, %v103
  %107 = vset.pattern.permute.xlu0 0
  %108 = vperm.xlu0 %107, %v72
  %v109 = vpop.permute.xlu0 %108
  %v111 = vadd.f32 %v105, %v109
  %v112 = vld [vmem:[%s9 + $0x18] sm:$0xff]
  %v113 = vld [vmem:[%s9 + $0x20] sm:$0xff]
  %v114 = vld [vmem:[%s2] sm:$0xf]
  %v115 = vld [vmem:[%s2 + $0x4] sm:$0xf]
  %v116 = vld [vmem:[%s2 + $0x8] sm:$0xf]
  %v117 = vld [vmem:[%s2 + $0xc] sm:$0xf]
  %v118 = vld [vmem:[%s2 + $0x10] sm:$0xf]
  %v119 = vld [vmem:[%s2 + $0x14] sm:$0xf]
  %v120 = vld [vmem:[%s2 + $0x18] sm:$0xf]
  %v121 = vld [vmem:[%s2 + $0x1c] sm:$0xf]
  %v122 = vld [vmem:[%s2 + $0x20] sm:$0xf]
  %v123 = vld [vmem:[%s2 + $0x24] sm:$0xf]
  %v124 = vld [vmem:[%s2 + $0x28] sm:$0xf]
  %v125 = vld [vmem:[%s2 + $0x2c] sm:$0xf]
  %v126 = vld [vmem:[%s2 + $0x30] sm:$0xf]
  %v127 = vld [vmem:[%s2 + $0x34] sm:$0xf]
  %v128 = vld [vmem:[%s2 + $0x38] sm:$0xf]
  %v129 = vld [vmem:[%s2 + $0x3c] sm:$0xf]
  %v130 = vunpack.c.l.bf16 %v114
  %v131 = vunpack.c.l.bf16 %v115
  %v132 = vunpack.c.l.bf16 %v116
  %v133 = vunpack.c.l.bf16 %v117
  %v134 = vunpack.c.l.bf16 %v118
  %v135 = vunpack.c.l.bf16 %v119
  %v136 = vunpack.c.l.bf16 %v120
  %v137 = vunpack.c.l.bf16 %v121
  %v138 = vunpack.c.l.bf16 %v122
  %v139 = vunpack.c.l.bf16 %v123
  %v140 = vunpack.c.l.bf16 %v124
  %v141 = vunpack.c.l.bf16 %v125
  %v142 = vunpack.c.l.bf16 %v126
  %v143 = vunpack.c.l.bf16 %v127
  %v144 = vunpack.c.l.bf16 %v128
  %v145 = vunpack.c.l.bf16 %v129
  %146 = vmatpush.msra.mxu0 %v145
  %147 = vmatpush.msra.mxu0 %v144
  %148 = vmatpush.msra.mxu0 %v143
  %149 = vmatpush.msra.mxu0 %v142
  %150 = vmatpush.msra.mxu0 %v141
  %151 = vmatpush.msra.mxu0 %v140
  %152 = vmatpush.msra.mxu0 %v139
  %153 = vmatpush.msra.mxu0 %v138
  %154 = vmatpush.msra.mxu0 %v137
  %155 = vmatpush.msra.mxu0 %v136
  %156 = vmatpush.msra.mxu0 %v135
  %157 = vmatpush.msra.mxu0 %v134
  %158 = vmatpush.msra.mxu0 %v133
  %159 = vmatpush.msra.mxu0 %v132
  %160 = vmatpush.msra.mxu0 %v131
  %161 = vmatpush.msra.mxu0 %v130
  %162 = vmatmul.f32.gmra.mxu0 %v111
  %v163 = vpop.f32.mrf.mxu0
  %v164 = vadd.f32 0.0, %v163
  %165 = vdwg.mxu0
  %s166 = scalar_lea.vmem %s2, 64
  %v167 = vld [vmem:[%s166] sm:$0xf]
  %v168 = vld [vmem:[%s166 + $0x4] sm:$0xf]
  %v169 = vld [vmem:[%s166 + $0x8] sm:$0xf]
  %v170 = vld [vmem:[%s166 + $0xc] sm:$0xf]
  %v171 = vld [vmem:[%s166 + $0x10] sm:$0xf]
  %v172 = vld [vmem:[%s166 + $0x14] sm:$0xf]
  %v173 = vld [vmem:[%s166 + $0x18] sm:$0xf]
  %v174 = vld [vmem:[%s166 + $0x1c] sm:$0xf]
  %v175 = vld [vmem:[%s166 + $0x20] sm:$0xf]
  %v176 = vld [vmem:[%s166 + $0x24] sm:$0xf]
  %v177 = vld [vmem:[%s166 + $0x28] sm:$0xf]
  %v178 = vld [vmem:[%s166 + $0x2c] sm:$0xf]
  %v179 = vld [vmem:[%s166 + $0x30] sm:$0xf]
  %v180 = vld [vmem:[%s166 + $0x34] sm:$0xf]
  %v181 = vld [vmem:[%s166 + $0x38] sm:$0xf]
  %v182 = vld [vmem:[%s166 + $0x3c] sm:$0xf]
  %v183 = vunpack.c.l.bf16 %v167
  %v184 = vunpack.c.l.bf16 %v168
  %v185 = vunpack.c.l.bf16 %v169
  %v186 = vunpack.c.l.bf16 %v170
  %v187 = vunpack.c.l.bf16 %v171
  %v188 = vunpack.c.l.bf16 %v172
  %v189 = vunpack.c.l.bf16 %v173
  %v190 = vunpack.c.l.bf16 %v174
  %v191 = vunpack.c.l.bf16 %v175
  %v192 = vunpack.c.l.bf16 %v176
  %v193 = vunpack.c.l.bf16 %v177
  %v194 = vunpack.c.l.bf16 %v178
  %v195 = vunpack.c.l.bf16 %v179
  %v196 = vunpack.c.l.bf16 %v180
  %v197 = vunpack.c.l.bf16 %v181
  %v198 = vunpack.c.l.bf16 %v182
  %199 = vmatpush.msra.mxu0 %v198
  %200 = vmatpush.msra.mxu0 %v197
  %201 = vmatpush.msra.mxu0 %v196
  %202 = vmatpush.msra.mxu0 %v195
  %203 = vmatpush.msra.mxu0 %v194
  %204 = vmatpush.msra.mxu0 %v193
  %205 = vmatpush.msra.mxu0 %v192
  %206 = vmatpush.msra.mxu0 %v191
  %207 = vmatpush.msra.mxu0 %v190
  %208 = vmatpush.msra.mxu0 %v189
  %209 = vmatpush.msra.mxu0 %v188
  %210 = vmatpush.msra.mxu0 %v187
  %211 = vmatpush.msra.mxu0 %v186
  %212 = vmatpush.msra.mxu0 %v185
  %213 = vmatpush.msra.mxu0 %v184
  %214 = vmatpush.msra.mxu0 %v183
  %215 = vmatmul.f32.gmra.mxu0 %v111
  %v216 = vpop.f32.mrf.mxu0
  %v217 = vadd.f32 0.0, %v216
  %218 = vdwg.mxu0
  %s219 = scalar_lea.vmem %s2, 128
  %v220 = vld [vmem:[%s219] sm:$0xf]
  %v221 = vld [vmem:[%s219 + $0x4] sm:$0xf]
  %v222 = vld [vmem:[%s219 + $0x8] sm:$0xf]
  %v223 = vld [vmem:[%s219 + $0xc] sm:$0xf]
  %v224 = vld [vmem:[%s219 + $0x10] sm:$0xf]
  %v225 = vld [vmem:[%s219 + $0x14] sm:$0xf]
  %v226 = vld [vmem:[%s219 + $0x18] sm:$0xf]
  %v227 = vld [vmem:[%s219 + $0x1c] sm:$0xf]
  %v228 = vld [vmem:[%s219 + $0x20] sm:$0xf]
  %v229 = vld [vmem:[%s219 + $0x24] sm:$0xf]
  %v230 = vld [vmem:[%s219 + $0x28] sm:$0xf]
  %v231 = vld [vmem:[%s219 + $0x2c] sm:$0xf]
  %v232 = vld [vmem:[%s219 + $0x30] sm:$0xf]
  %v233 = vld [vmem:[%s219 + $0x34] sm:$0xf]
  %v234 = vld [vmem:[%s219 + $0x38] sm:$0xf]
  %v235 = vld [vmem:[%s219 + $0x3c] sm:$0xf]
  %v236 = vunpack.c.l.bf16 %v220
  %v237 = vunpack.c.l.bf16 %v221
  %v238 = vunpack.c.l.bf16 %v222
  %v239 = vunpack.c.l.bf16 %v223
  %v240 = vunpack.c.l.bf16 %v224
  %v241 = vunpack.c.l.bf16 %v225
  %v242 = vunpack.c.l.bf16 %v226
  %v243 = vunpack.c.l.bf16 %v227
  %v244 = vunpack.c.l.bf16 %v228
  %v245 = vunpack.c.l.bf16 %v229
  %v246 = vunpack.c.l.bf16 %v230
  %v247 = vunpack.c.l.bf16 %v231
  %v248 = vunpack.c.l.bf16 %v232
  %v249 = vunpack.c.l.bf16 %v233
  %v250 = vunpack.c.l.bf16 %v234
  %v251 = vunpack.c.l.bf16 %v235
  %252 = vmatpush.msra.mxu0 %v251
  %253 = vmatpush.msra.mxu0 %v250
  %254 = vmatpush.msra.mxu0 %v249
  %255 = vmatpush.msra.mxu0 %v248
  %256 = vmatpush.msra.mxu0 %v247
  %257 = vmatpush.msra.mxu0 %v246
  %258 = vmatpush.msra.mxu0 %v245
  %259 = vmatpush.msra.mxu0 %v244
  %260 = vmatpush.msra.mxu0 %v243
  %261 = vmatpush.msra.mxu0 %v242
  %262 = vmatpush.msra.mxu0 %v241
  %263 = vmatpush.msra.mxu0 %v240
  %264 = vmatpush.msra.mxu0 %v239
  %265 = vmatpush.msra.mxu0 %v238
  %266 = vmatpush.msra.mxu0 %v237
  %267 = vmatpush.msra.mxu0 %v236
  %268 = vmatmul.f32.gmra.mxu0 %v111
  %v269 = vpop.f32.mrf.mxu0
  %v270 = vadd.f32 0.0, %v269
  %271 = vdwg.mxu0
  %s272 = scalar_lea.vmem %s2, 192
  %v273 = vld [vmem:[%s272] sm:$0xf]
  %v274 = vld [vmem:[%s272 + $0x4] sm:$0xf]
  %v275 = vld [vmem:[%s272 + $0x8] sm:$0xf]
  %v276 = vld [vmem:[%s272 + $0xc] sm:$0xf]
  %v277 = vld [vmem:[%s272 + $0x10] sm:$0xf]
  %v278 = vld [vmem:[%s272 + $0x14] sm:$0xf]
  %v279 = vld [vmem:[%s272 + $0x18] sm:$0xf]
  %v280 = vld [vmem:[%s272 + $0x1c] sm:$0xf]
  %v281 = vld [vmem:[%s272 + $0x20] sm:$0xf]
  %v282 = vld [vmem:[%s272 + $0x24] sm:$0xf]
  %v283 = vld [vmem:[%s272 + $0x28] sm:$0xf]
  %v284 = vld [vmem:[%s272 + $0x2c] sm:$0xf]
  %v285 = vld [vmem:[%s272 + $0x30] sm:$0xf]
  %v286 = vld [vmem:[%s272 + $0x34] sm:$0xf]
  %v287 = vld [vmem:[%s272 + $0x38] sm:$0xf]
  %v288 = vld [vmem:[%s272 + $0x3c] sm:$0xf]
  %v289 = vunpack.c.l.bf16 %v273
  %v290 = vunpack.c.l.bf16 %v274
  %v291 = vunpack.c.l.bf16 %v275
  %v292 = vunpack.c.l.bf16 %v276
  %v293 = vunpack.c.l.bf16 %v277
  %v294 = vunpack.c.l.bf16 %v278
  %v295 = vunpack.c.l.bf16 %v279
  %v296 = vunpack.c.l.bf16 %v280
  %v297 = vunpack.c.l.bf16 %v281
  %v298 = vunpack.c.l.bf16 %v282
  %v299 = vunpack.c.l.bf16 %v283
  %v300 = vunpack.c.l.bf16 %v284
  %v301 = vunpack.c.l.bf16 %v285
  %v302 = vunpack.c.l.bf16 %v286
  %v303 = vunpack.c.l.bf16 %v287
  %v304 = vunpack.c.l.bf16 %v288
  %305 = vmatpush.msra.mxu0 %v304
  %306 = vmatpush.msra.mxu0 %v303
  %307 = vmatpush.msra.mxu0 %v302
  %308 = vmatpush.msra.mxu0 %v301
  %309 = vmatpush.msra.mxu0 %v300
  %310 = vmatpush.msra.mxu0 %v299
  %311 = vmatpush.msra.mxu0 %v298
  %312 = vmatpush.msra.mxu0 %v297
  %313 = vmatpush.msra.mxu0 %v296
  %314 = vmatpush.msra.mxu0 %v295
  %315 = vmatpush.msra.mxu0 %v294
  %316 = vmatpush.msra.mxu0 %v293
  %317 = vmatpush.msra.mxu0 %v292
  %318 = vmatpush.msra.mxu0 %v291
  %319 = vmatpush.msra.mxu0 %v290
  %320 = vmatpush.msra.mxu0 %v289
  %321 = vmatmul.f32.gmra.mxu0 %v111
  %v322 = vpop.f32.mrf.mxu0
  %v323 = vadd.f32 0.0, %v322
  %324 = vdwg.mxu0
  %s325 = scalar_lea.vmem %s2, 256
  %v326 = vld [vmem:[%s325] sm:$0xf]
  %v327 = vld [vmem:[%s325 + $0x4] sm:$0xf]
  %v328 = vld [vmem:[%s325 + $0x8] sm:$0xf]
  %v329 = vld [vmem:[%s325 + $0xc] sm:$0xf]
  %v330 = vld [vmem:[%s325 + $0x10] sm:$0xf]
  %v331 = vld [vmem:[%s325 + $0x14] sm:$0xf]
  %v332 = vld [vmem:[%s325 + $0x18] sm:$0xf]
  %v333 = vld [vmem:[%s325 + $0x1c] sm:$0xf]
  %v334 = vld [vmem:[%s325 + $0x20] sm:$0xf]
  %v335 = vld [vmem:[%s325 + $0x24] sm:$0xf]
  %v336 = vld [vmem:[%s325 + $0x28] sm:$0xf]
  %v337 = vld [vmem:[%s325 + $0x2c] sm:$0xf]
  %v338 = vld [vmem:[%s325 + $0x30] sm:$0xf]
  %v339 = vld [vmem:[%s325 + $0x34] sm:$0xf]
  %v340 = vld [vmem:[%s325 + $0x38] sm:$0xf]
  %v341 = vld [vmem:[%s325 + $0x3c] sm:$0xf]
  %v342 = vunpack.c.l.bf16 %v326
  %v343 = vunpack.c.l.bf16 %v327
  %v344 = vunpack.c.l.bf16 %v328
  %v345 = vunpack.c.l.bf16 %v329
  %v346 = vunpack.c.l.bf16 %v330
  %v347 = vunpack.c.l.bf16 %v331
  %v348 = vunpack.c.l.bf16 %v332
  %v349 = vunpack.c.l.bf16 %v333
  %v350 = vunpack.c.l.bf16 %v334
  %v351 = vunpack.c.l.bf16 %v335
  %v352 = vunpack.c.l.bf16 %v336
  %v353 = vunpack.c.l.bf16 %v337
  %v354 = vunpack.c.l.bf16 %v338
  %v355 = vunpack.c.l.bf16 %v339
  %v356 = vunpack.c.l.bf16 %v340
  %v357 = vunpack.c.l.bf16 %v341
  %358 = vmatpush.msra.mxu0 %v357
  %359 = vmatpush.msra.mxu0 %v356
  %360 = vmatpush.msra.mxu0 %v355
  %361 = vmatpush.msra.mxu0 %v354
  %362 = vmatpush.msra.mxu0 %v353
  %363 = vmatpush.msra.mxu0 %v352
  %364 = vmatpush.msra.mxu0 %v351
  %365 = vmatpush.msra.mxu0 %v350
  %366 = vmatpush.msra.mxu0 %v349
  %367 = vmatpush.msra.mxu0 %v348
  %368 = vmatpush.msra.mxu0 %v347
  %369 = vmatpush.msra.mxu0 %v346
  %370 = vmatpush.msra.mxu0 %v345
  %371 = vmatpush.msra.mxu0 %v344
  %372 = vmatpush.msra.mxu0 %v343
  %373 = vmatpush.msra.mxu0 %v342
  %374 = vmatmul.f32.gmra.mxu0 %v111
  %v375 = vpop.f32.mrf.mxu0
  %v376 = vadd.f32 0.0, %v375
  %377 = vdwg.mxu0
  %s378 = scalar_lea.vmem %s2, 320
  %v379 = vld [vmem:[%s378] sm:$0xf]
  %v380 = vld [vmem:[%s378 + $0x4] sm:$0xf]
  %v381 = vld [vmem:[%s378 + $0x8] sm:$0xf]
  %v382 = vld [vmem:[%s378 + $0xc] sm:$0xf]
  %v383 = vld [vmem:[%s378 + $0x10] sm:$0xf]
  %v384 = vld [vmem:[%s378 + $0x14] sm:$0xf]
  %v385 = vld [vmem:[%s378 + $0x18] sm:$0xf]
  %v386 = vld [vmem:[%s378 + $0x1c] sm:$0xf]
  %v387 = vld [vmem:[%s378 + $0x20] sm:$0xf]
  %v388 = vld [vmem:[%s378 + $0x24] sm:$0xf]
  %v389 = vld [vmem:[%s378 + $0x28] sm:$0xf]
  %v390 = vld [vmem:[%s378 + $0x2c] sm:$0xf]
  %v391 = vld [vmem:[%s378 + $0x30] sm:$0xf]
  %v392 = vld [vmem:[%s378 + $0x34] sm:$0xf]
  %v393 = vld [vmem:[%s378 + $0x38] sm:$0xf]
  %v394 = vld [vmem:[%s378 + $0x3c] sm:$0xf]
  %v395 = vunpack.c.l.bf16 %v379
  %v396 = vunpack.c.l.bf16 %v380
  %v397 = vunpack.c.l.bf16 %v381
  %v398 = vunpack.c.l.bf16 %v382
  %v399 = vunpack.c.l.bf16 %v383
  %v400 = vunpack.c.l.bf16 %v384
  %v401 = vunpack.c.l.bf16 %v385
  %v402 = vunpack.c.l.bf16 %v386
  %v403 = vunpack.c.l.bf16 %v387
  %v404 = vunpack.c.l.bf16 %v388
  %v405 = vunpack.c.l.bf16 %v389
  %v406 = vunpack.c.l.bf16 %v390
  %v407 = vunpack.c.l.bf16 %v391
  %v408 = vunpack.c.l.bf16 %v392
  %v409 = vunpack.c.l.bf16 %v393
  %v410 = vunpack.c.l.bf16 %v394
  %411 = vmatpush.msra.mxu0 %v410
  %412 = vmatpush.msra.mxu0 %v409
  %413 = vmatpush.msra.mxu0 %v408
  %414 = vmatpush.msra.mxu0 %v407
  %415 = vmatpush.msra.mxu0 %v406
  %416 = vmatpush.msra.mxu0 %v405
  %417 = vmatpush.msra.mxu0 %v404
  %418 = vmatpush.msra.mxu0 %v403
  %419 = vmatpush.msra.mxu0 %v402
  %420 = vmatpush.msra.mxu0 %v401
  %421 = vmatpush.msra.mxu0 %v400
  %422 = vmatpush.msra.mxu0 %v399
  %423 = vmatpush.msra.mxu0 %v398
  %424 = vmatpush.msra.mxu0 %v397
  %425 = vmatpush.msra.mxu0 %v396
  %426 = vmatpush.msra.mxu0 %v395
  %427 = vmatmul.f32.gmra.mxu0 %v111
  %v428 = vpop.f32.mrf.mxu0
  %v429 = vadd.f32 0.0, %v428
  %430 = vdwg.mxu0
  %s431 = scalar_lea.vmem %s2, 384
  %v432 = vld [vmem:[%s431] sm:$0xf]
  %v433 = vld [vmem:[%s431 + $0x4] sm:$0xf]
  %v434 = vld [vmem:[%s431 + $0x8] sm:$0xf]
  %v435 = vld [vmem:[%s431 + $0xc] sm:$0xf]
  %v436 = vld [vmem:[%s431 + $0x10] sm:$0xf]
  %v437 = vld [vmem:[%s431 + $0x14] sm:$0xf]
  %v438 = vld [vmem:[%s431 + $0x18] sm:$0xf]
  %v439 = vld [vmem:[%s431 + $0x1c] sm:$0xf]
  %v440 = vld [vmem:[%s431 + $0x20] sm:$0xf]
  %v441 = vld [vmem:[%s431 + $0x24] sm:$0xf]
  %v442 = vld [vmem:[%s431 + $0x28] sm:$0xf]
  %v443 = vld [vmem:[%s431 + $0x2c] sm:$0xf]
  %v444 = vld [vmem:[%s431 + $0x30] sm:$0xf]
  %v445 = vld [vmem:[%s431 + $0x34] sm:$0xf]
  %v446 = vld [vmem:[%s431 + $0x38] sm:$0xf]
  %v447 = vld [vmem:[%s431 + $0x3c] sm:$0xf]
  %v448 = vunpack.c.l.bf16 %v432
  %v449 = vunpack.c.l.bf16 %v433
  %v450 = vunpack.c.l.bf16 %v434
  %v451 = vunpack.c.l.bf16 %v435
  %v452 = vunpack.c.l.bf16 %v436
  %v453 = vunpack.c.l.bf16 %v437
  %v454 = vunpack.c.l.bf16 %v438
  %v455 = vunpack.c.l.bf16 %v439
  %v456 = vunpack.c.l.bf16 %v440
  %v457 = vunpack.c.l.bf16 %v441
  %v458 = vunpack.c.l.bf16 %v442
  %v459 = vunpack.c.l.bf16 %v443
  %v460 = vunpack.c.l.bf16 %v444
  %v461 = vunpack.c.l.bf16 %v445
  %v462 = vunpack.c.l.bf16 %v446
  %v463 = vunpack.c.l.bf16 %v447
  %464 = vmatpush.msra.mxu0 %v463
  %465 = vmatpush.msra.mxu0 %v462
  %466 = vmatpush.msra.mxu0 %v461
  %467 = vmatpush.msra.mxu0 %v460
  %468 = vmatpush.msra.mxu0 %v459
  %469 = vmatpush.msra.mxu0 %v458
  %470 = vmatpush.msra.mxu0 %v457
  %471 = vmatpush.msra.mxu0 %v456
  %472 = vmatpush.msra.mxu0 %v455
  %473 = vmatpush.msra.mxu0 %v454
  %474 = vmatpush.msra.mxu0 %v453
  %475 = vmatpush.msra.mxu0 %v452
  %476 = vmatpush.msra.mxu0 %v451
  %477 = vmatpush.msra.mxu0 %v450
  %478 = vmatpush.msra.mxu0 %v449
  %479 = vmatpush.msra.mxu0 %v448
  %480 = vmatmul.f32.gmra.mxu0 %v111
  %v481 = vpop.f32.mrf.mxu0
  %v482 = vadd.f32 0.0, %v481
  %483 = vdwg.mxu0
  %s484 = scalar_lea.vmem %s2, 448
  %v485 = vld [vmem:[%s484] sm:$0xf]
  %v486 = vld [vmem:[%s484 + $0x4] sm:$0xf]
  %v487 = vld [vmem:[%s484 + $0x8] sm:$0xf]
  %v488 = vld [vmem:[%s484 + $0xc] sm:$0xf]
  %v489 = vld [vmem:[%s484 + $0x10] sm:$0xf]
  %v490 = vld [vmem:[%s484 + $0x14] sm:$0xf]
  %v491 = vld [vmem:[%s484 + $0x18] sm:$0xf]
  %v492 = vld [vmem:[%s484 + $0x1c] sm:$0xf]
  %v493 = vld [vmem:[%s484 + $0x20] sm:$0xf]
  %v494 = vld [vmem:[%s484 + $0x24] sm:$0xf]
  %v495 = vld [vmem:[%s484 + $0x28] sm:$0xf]
  %v496 = vld [vmem:[%s484 + $0x2c] sm:$0xf]
  %v497 = vld [vmem:[%s484 + $0x30] sm:$0xf]
  %v498 = vld [vmem:[%s484 + $0x34] sm:$0xf]
  %v499 = vld [vmem:[%s484 + $0x38] sm:$0xf]
  %v500 = vld [vmem:[%s484 + $0x3c] sm:$0xf]
  %v501 = vunpack.c.l.bf16 %v485
  %v502 = vunpack.c.l.bf16 %v486
  %v503 = vunpack.c.l.bf16 %v487
  %v504 = vunpack.c.l.bf16 %v488
  %v505 = vunpack.c.l.bf16 %v489
  %v506 = vunpack.c.l.bf16 %v490
  %v507 = vunpack.c.l.bf16 %v491
  %v508 = vunpack.c.l.bf16 %v492
  %v509 = vunpack.c.l.bf16 %v493
  %v510 = vunpack.c.l.bf16 %v494
  %v511 = vunpack.c.l.bf16 %v495
  %v512 = vunpack.c.l.bf16 %v496
  %v513 = vunpack.c.l.bf16 %v497
  %v514 = vunpack.c.l.bf16 %v498
  %v515 = vunpack.c.l.bf16 %v499
  %v516 = vunpack.c.l.bf16 %v500
  %517 = vmatpush.msra.mxu0 %v516
  %518 = vmatpush.msra.mxu0 %v515
  %519 = vmatpush.msra.mxu0 %v514
  %520 = vmatpush.msra.mxu0 %v513
  %521 = vmatpush.msra.mxu0 %v512
  %522 = vmatpush.msra.mxu0 %v511
  %523 = vmatpush.msra.mxu0 %v510
  %524 = vmatpush.msra.mxu0 %v509
  %525 = vmatpush.msra.mxu0 %v508
  %526 = vmatpush.msra.mxu0 %v507
  %527 = vmatpush.msra.mxu0 %v506
  %528 = vmatpush.msra.mxu0 %v505
  %529 = vmatpush.msra.mxu0 %v504
  %530 = vmatpush.msra.mxu0 %v503
  %531 = vmatpush.msra.mxu0 %v502
  %532 = vmatpush.msra.mxu0 %v501
  %533 = vmatmul.f32.gmra.mxu0 %v111
  %v534 = vpop.f32.mrf.mxu0
  %v535 = vadd.f32 0.0, %v534
  %536 = vdwg.mxu0
  %s537 = scalar_lea.vmem %s2, 512
  %v538 = vld [vmem:[%s537] sm:$0xf]
  %v539 = vld [vmem:[%s537 + $0x4] sm:$0xf]
  %v540 = vld [vmem:[%s537 + $0x8] sm:$0xf]
  %v541 = vld [vmem:[%s537 + $0xc] sm:$0xf]
  %v542 = vld [vmem:[%s537 + $0x10] sm:$0xf]
  %v543 = vld [vmem:[%s537 + $0x14] sm:$0xf]
  %v544 = vld [vmem:[%s537 + $0x18] sm:$0xf]
  %v545 = vld [vmem:[%s537 + $0x1c] sm:$0xf]
  %v546 = vld [vmem:[%s537 + $0x20] sm:$0xf]
  %v547 = vld [vmem:[%s537 + $0x24] sm:$0xf]
  %v548 = vld [vmem:[%s537 + $0x28] sm:$0xf]
  %v549 = vld [vmem:[%s537 + $0x2c] sm:$0xf]
  %v550 = vld [vmem:[%s537 + $0x30] sm:$0xf]
  %v551 = vld [vmem:[%s537 + $0x34] sm:$0xf]
  %v552 = vld [vmem:[%s537 + $0x38] sm:$0xf]
  %v553 = vld [vmem:[%s537 + $0x3c] sm:$0xf]
  %v554 = vunpack.c.l.bf16 %v538
  %v555 = vunpack.c.l.bf16 %v539
  %v556 = vunpack.c.l.bf16 %v540
  %v557 = vunpack.c.l.bf16 %v541
  %v558 = vunpack.c.l.bf16 %v542
  %v559 = vunpack.c.l.bf16 %v543
  %v560 = vunpack.c.l.bf16 %v544
  %v561 = vunpack.c.l.bf16 %v545
  %v562 = vunpack.c.l.bf16 %v546
  %v563 = vunpack.c.l.bf16 %v547
  %v564 = vunpack.c.l.bf16 %v548
  %v565 = vunpack.c.l.bf16 %v549
  %v566 = vunpack.c.l.bf16 %v550
  %v567 = vunpack.c.l.bf16 %v551
  %v568 = vunpack.c.l.bf16 %v552
  %v569 = vunpack.c.l.bf16 %v553
  %570 = vmatpush.msra.mxu0 %v569
  %571 = vmatpush.msra.mxu0 %v568
  %572 = vmatpush.msra.mxu0 %v567
  %573 = vmatpush.msra.mxu0 %v566
  %574 = vmatpush.msra.mxu0 %v565
  %575 = vmatpush.msra.mxu0 %v564
  %576 = vmatpush.msra.mxu0 %v563
  %577 = vmatpush.msra.mxu0 %v562
  %578 = vmatpush.msra.mxu0 %v561
  %579 = vmatpush.msra.mxu0 %v560
  %580 = vmatpush.msra.mxu0 %v559
  %581 = vmatpush.msra.mxu0 %v558
  %582 = vmatpush.msra.mxu0 %v557
  %583 = vmatpush.msra.mxu0 %v556
  %584 = vmatpush.msra.mxu0 %v555
  %585 = vmatpush.msra.mxu0 %v554
  %586 = vmatmul.f32.gmra.mxu0 %v111
  %v587 = vpop.f32.mrf.mxu0
  %v588 = vadd.f32 0.0, %v587
  %589 = vdwg.mxu0
  %s590 = scalar_lea.vmem %s2, 576
  %v591 = vld [vmem:[%s590] sm:$0xf]
  %v592 = vld [vmem:[%s590 + $0x4] sm:$0xf]
  %v593 = vld [vmem:[%s590 + $0x8] sm:$0xf]
  %v594 = vld [vmem:[%s590 + $0xc] sm:$0xf]
  %v595 = vld [vmem:[%s590 + $0x10] sm:$0xf]
  %v596 = vld [vmem:[%s590 + $0x14] sm:$0xf]
  %v597 = vld [vmem:[%s590 + $0x18] sm:$0xf]
  %v598 = vld [vmem:[%s590 + $0x1c] sm:$0xf]
  %v599 = vld [vmem:[%s590 + $0x20] sm:$0xf]
  %v600 = vld [vmem:[%s590 + $0x24] sm:$0xf]
  %v601 = vld [vmem:[%s590 + $0x28] sm:$0xf]
  %v602 = vld [vmem:[%s590 + $0x2c] sm:$0xf]
  %v603 = vld [vmem:[%s590 + $0x30] sm:$0xf]
  %v604 = vld [vmem:[%s590 + $0x34] sm:$0xf]
  %v605 = vld [vmem:[%s590 + $0x38] sm:$0xf]
  %v606 = vld [vmem:[%s590 + $0x3c] sm:$0xf]
  %v607 = vunpack.c.l.bf16 %v591
  %v608 = vunpack.c.l.bf16 %v592
  %v609 = vunpack.c.l.bf16 %v593
  %v610 = vunpack.c.l.bf16 %v594
  %v611 = vunpack.c.l.bf16 %v595
  %v612 = vunpack.c.l.bf16 %v596
  %v613 = vunpack.c.l.bf16 %v597
  %v614 = vunpack.c.l.bf16 %v598
  %v615 = vunpack.c.l.bf16 %v599
  %v616 = vunpack.c.l.bf16 %v600
  %v617 = vunpack.c.l.bf16 %v601
  %v618 = vunpack.c.l.bf16 %v602
  %v619 = vunpack.c.l.bf16 %v603
  %v620 = vunpack.c.l.bf16 %v604
  %v621 = vunpack.c.l.bf16 %v605
  %v622 = vunpack.c.l.bf16 %v606
  %623 = vmatpush.msra.mxu0 %v622
  %624 = vmatpush.msra.mxu0 %v621
  %625 = vmatpush.msra.mxu0 %v620
  %626 = vmatpush.msra.mxu0 %v619
  %627 = vmatpush.msra.mxu0 %v618
  %628 = vmatpush.msra.mxu0 %v617
  %629 = vmatpush.msra.mxu0 %v616
  %630 = vmatpush.msra.mxu0 %v615
  %631 = vmatpush.msra.mxu0 %v614
  %632 = vmatpush.msra.mxu0 %v613
  %633 = vmatpush.msra.mxu0 %v612
  %634 = vmatpush.msra.mxu0 %v611
  %635 = vmatpush.msra.mxu0 %v610
  %636 = vmatpush.msra.mxu0 %v609
  %637 = vmatpush.msra.mxu0 %v608
  %638 = vmatpush.msra.mxu0 %v607
  %639 = vmatmul.f32.gmra.mxu0 %v111
  %v640 = vpop.f32.mrf.mxu0
  %v641 = vadd.f32 0.0, %v640
  %642 = vdwg.mxu0
  %s643 = scalar_lea.vmem %s2, 640
  %v644 = vld [vmem:[%s643] sm:$0xf]
  %v645 = vld [vmem:[%s643 + $0x4] sm:$0xf]
  %v646 = vld [vmem:[%s643 + $0x8] sm:$0xf]
  %v647 = vld [vmem:[%s643 + $0xc] sm:$0xf]
  %v648 = vld [vmem:[%s643 + $0x10] sm:$0xf]
  %v649 = vld [vmem:[%s643 + $0x14] sm:$0xf]
  %v650 = vld [vmem:[%s643 + $0x18] sm:$0xf]
  %v651 = vld [vmem:[%s643 + $0x1c] sm:$0xf]
  %v652 = vld [vmem:[%s643 + $0x20] sm:$0xf]
  %v653 = vld [vmem:[%s643 + $0x24] sm:$0xf]
  %v654 = vld [vmem:[%s643 + $0x28] sm:$0xf]
  %v655 = vld [vmem:[%s643 + $0x2c] sm:$0xf]
  %v656 = vld [vmem:[%s643 + $0x30] sm:$0xf]
  %v657 = vld [vmem:[%s643 + $0x34] sm:$0xf]
  %v658 = vld [vmem:[%s643 + $0x38] sm:$0xf]
  %v659 = vld [vmem:[%s643 + $0x3c] sm:$0xf]
  %v660 = vunpack.c.l.bf16 %v644
  %v661 = vunpack.c.l.bf16 %v645
  %v662 = vunpack.c.l.bf16 %v646
  %v663 = vunpack.c.l.bf16 %v647
  %v664 = vunpack.c.l.bf16 %v648
  %v665 = vunpack.c.l.bf16 %v649
  %v666 = vunpack.c.l.bf16 %v650
  %v667 = vunpack.c.l.bf16 %v651
  %v668 = vunpack.c.l.bf16 %v652
  %v669 = vunpack.c.l.bf16 %v653
  %v670 = vunpack.c.l.bf16 %v654
  %v671 = vunpack.c.l.bf16 %v655
  %v672 = vunpack.c.l.bf16 %v656
  %v673 = vunpack.c.l.bf16 %v657
  %v674 = vunpack.c.l.bf16 %v658
  %v675 = vunpack.c.l.bf16 %v659
  %676 = vmatpush.msra.mxu0 %v675
  %677 = vmatpush.msra.mxu0 %v674
  %678 = vmatpush.msra.mxu0 %v673
  %679 = vmatpush.msra.mxu0 %v672
  %680 = vmatpush.msra.mxu0 %v671
  %681 = vmatpush.msra.mxu0 %v670
  %682 = vmatpush.msra.mxu0 %v669
  %683 = vmatpush.msra.mxu0 %v668
  %684 = vmatpush.msra.mxu0 %v667
  %685 = vmatpush.msra.mxu0 %v666
  %686 = vmatpush.msra.mxu0 %v665
  %687 = vmatpush.msra.mxu0 %v664
  %688 = vmatpush.msra.mxu0 %v663
  %689 = vmatpush.msra.mxu0 %v662
  %690 = vmatpush.msra.mxu0 %v661
  %691 = vmatpush.msra.mxu0 %v660
  %692 = vmatmul.f32.gmra.mxu0 %v111
  %v693 = vpop.f32.mrf.mxu0
  %v694 = vadd.f32 0.0, %v693
  %695 = vdwg.mxu0
  %s696 = scalar_lea.vmem %s2, 704
  %v697 = vld [vmem:[%s696] sm:$0xf]
  %v698 = vld [vmem:[%s696 + $0x4] sm:$0xf]
  %v699 = vld [vmem:[%s696 + $0x8] sm:$0xf]
  %v700 = vld [vmem:[%s696 + $0xc] sm:$0xf]
  %v701 = vld [vmem:[%s696 + $0x10] sm:$0xf]
  %v702 = vld [vmem:[%s696 + $0x14] sm:$0xf]
  %v703 = vld [vmem:[%s696 + $0x18] sm:$0xf]
  %v704 = vld [vmem:[%s696 + $0x1c] sm:$0xf]
  %v705 = vld [vmem:[%s696 + $0x20] sm:$0xf]
  %v706 = vld [vmem:[%s696 + $0x24] sm:$0xf]
  %v707 = vld [vmem:[%s696 + $0x28] sm:$0xf]
  %v708 = vld [vmem:[%s696 + $0x2c] sm:$0xf]
  %v709 = vld [vmem:[%s696 + $0x30] sm:$0xf]
  %v710 = vld [vmem:[%s696 + $0x34] sm:$0xf]
  %v711 = vld [vmem:[%s696 + $0x38] sm:$0xf]
  %v712 = vld [vmem:[%s696 + $0x3c] sm:$0xf]
  %v713 = vunpack.c.l.bf16 %v697
  %v714 = vunpack.c.l.bf16 %v698
  %v715 = vunpack.c.l.bf16 %v699
  %v716 = vunpack.c.l.bf16 %v700
  %v717 = vunpack.c.l.bf16 %v701
  %v718 = vunpack.c.l.bf16 %v702
  %v719 = vunpack.c.l.bf16 %v703
  %v720 = vunpack.c.l.bf16 %v704
  %v721 = vunpack.c.l.bf16 %v705
  %v722 = vunpack.c.l.bf16 %v706
  %v723 = vunpack.c.l.bf16 %v707
  %v724 = vunpack.c.l.bf16 %v708
  %v725 = vunpack.c.l.bf16 %v709
  %v726 = vunpack.c.l.bf16 %v710
  %v727 = vunpack.c.l.bf16 %v711
  %v728 = vunpack.c.l.bf16 %v712
  %729 = vmatpush.msra.mxu0 %v728
  %730 = vmatpush.msra.mxu0 %v727
  %731 = vmatpush.msra.mxu0 %v726
  %732 = vmatpush.msra.mxu0 %v725
  %733 = vmatpush.msra.mxu0 %v724
  %734 = vmatpush.msra.mxu0 %v723
  %735 = vmatpush.msra.mxu0 %v722
  %736 = vmatpush.msra.mxu0 %v721
  %737 = vmatpush.msra.mxu0 %v720
  %738 = vmatpush.msra.mxu0 %v719
  %739 = vmatpush.msra.mxu0 %v718
  %740 = vmatpush.msra.mxu0 %v717
  %741 = vmatpush.msra.mxu0 %v716
  %742 = vmatpush.msra.mxu0 %v715
  %743 = vmatpush.msra.mxu0 %v714
  %744 = vmatpush.msra.mxu0 %v713
  %745 = vmatmul.f32.gmra.mxu0 %v111
  %v746 = vpop.f32.mrf.mxu0
  %v747 = vadd.f32 0.0, %v746
  %748 = vdwg.mxu0
  %s749 = scalar_lea.vmem %s2, 768
  %v750 = vld [vmem:[%s749] sm:$0xf]
  %v751 = vld [vmem:[%s749 + $0x4] sm:$0xf]
  %v752 = vld [vmem:[%s749 + $0x8] sm:$0xf]
  %v753 = vld [vmem:[%s749 + $0xc] sm:$0xf]
  %v754 = vld [vmem:[%s749 + $0x10] sm:$0xf]
  %v755 = vld [vmem:[%s749 + $0x14] sm:$0xf]
  %v756 = vld [vmem:[%s749 + $0x18] sm:$0xf]
  %v757 = vld [vmem:[%s749 + $0x1c] sm:$0xf]
  %v758 = vld [vmem:[%s749 + $0x20] sm:$0xf]
  %v759 = vld [vmem:[%s749 + $0x24] sm:$0xf]
  %v760 = vld [vmem:[%s749 + $0x28] sm:$0xf]
  %v761 = vld [vmem:[%s749 + $0x2c] sm:$0xf]
  %v762 = vld [vmem:[%s749 + $0x30] sm:$0xf]
  %v763 = vld [vmem:[%s749 + $0x34] sm:$0xf]
  %v764 = vld [vmem:[%s749 + $0x38] sm:$0xf]
  %v765 = vld [vmem:[%s749 + $0x3c] sm:$0xf]
  %v766 = vunpack.c.l.bf16 %v750
  %v767 = vunpack.c.l.bf16 %v751
  %v768 = vunpack.c.l.bf16 %v752
  %v769 = vunpack.c.l.bf16 %v753
  %v770 = vunpack.c.l.bf16 %v754
  %v771 = vunpack.c.l.bf16 %v755
  %v772 = vunpack.c.l.bf16 %v756
  %v773 = vunpack.c.l.bf16 %v757
  %v774 = vunpack.c.l.bf16 %v758
  %v775 = vunpack.c.l.bf16 %v759
  %v776 = vunpack.c.l.bf16 %v760
  %v777 = vunpack.c.l.bf16 %v761
  %v778 = vunpack.c.l.bf16 %v762
  %v779 = vunpack.c.l.bf16 %v763
  %v780 = vunpack.c.l.bf16 %v764
  %v781 = vunpack.c.l.bf16 %v765
  %782 = vmatpush.msra.mxu0 %v781
  %783 = vmatpush.msra.mxu0 %v780
  %784 = vmatpush.msra.mxu0 %v779
  %785 = vmatpush.msra.mxu0 %v778
  %786 = vmatpush.msra.mxu0 %v777
  %787 = vmatpush.msra.mxu0 %v776
  %788 = vmatpush.msra.mxu0 %v775
  %789 = vmatpush.msra.mxu0 %v774
  %790 = vmatpush.msra.mxu0 %v773
  %791 = vmatpush.msra.mxu0 %v772
  %792 = vmatpush.msra.mxu0 %v771
  %793 = vmatpush.msra.mxu0 %v770
  %794 = vmatpush.msra.mxu0 %v769
  %795 = vmatpush.msra.mxu0 %v768
  %796 = vmatpush.msra.mxu0 %v767
  %797 = vmatpush.msra.mxu0 %v766
  %798 = vmatmul.f32.gmra.mxu0 %v111
  %v799 = vpop.f32.mrf.mxu0
  %v800 = vadd.f32 0.0, %v799
  %801 = vdwg.mxu0
  %s802 = scalar_lea.vmem %s2, 832
  %v803 = vld [vmem:[%s802] sm:$0xf]
  %v804 = vld [vmem:[%s802 + $0x4] sm:$0xf]
  %v805 = vld [vmem:[%s802 + $0x8] sm:$0xf]
  %v806 = vld [vmem:[%s802 + $0xc] sm:$0xf]
  %v807 = vld [vmem:[%s802 + $0x10] sm:$0xf]
  %v808 = vld [vmem:[%s802 + $0x14] sm:$0xf]
  %v809 = vld [vmem:[%s802 + $0x18] sm:$0xf]
  %v810 = vld [vmem:[%s802 + $0x1c] sm:$0xf]
  %v811 = vld [vmem:[%s802 + $0x20] sm:$0xf]
  %v812 = vld [vmem:[%s802 + $0x24] sm:$0xf]
  %v813 = vld [vmem:[%s802 + $0x28] sm:$0xf]
  %v814 = vld [vmem:[%s802 + $0x2c] sm:$0xf]
  %v815 = vld [vmem:[%s802 + $0x30] sm:$0xf]
  %v816 = vld [vmem:[%s802 + $0x34] sm:$0xf]
  %v817 = vld [vmem:[%s802 + $0x38] sm:$0xf]
  %v818 = vld [vmem:[%s802 + $0x3c] sm:$0xf]
  %v819 = vunpack.c.l.bf16 %v803
  %v820 = vunpack.c.l.bf16 %v804
  %v821 = vunpack.c.l.bf16 %v805
  %v822 = vunpack.c.l.bf16 %v806
  %v823 = vunpack.c.l.bf16 %v807
  %v824 = vunpack.c.l.bf16 %v808
  %v825 = vunpack.c.l.bf16 %v809
  %v826 = vunpack.c.l.bf16 %v810
  %v827 = vunpack.c.l.bf16 %v811
  %v828 = vunpack.c.l.bf16 %v812
  %v829 = vunpack.c.l.bf16 %v813
  %v830 = vunpack.c.l.bf16 %v814
  %v831 = vunpack.c.l.bf16 %v815
  %v832 = vunpack.c.l.bf16 %v816
  %v833 = vunpack.c.l.bf16 %v817
  %v834 = vunpack.c.l.bf16 %v818
  %835 = vmatpush.msra.mxu0 %v834
  %836 = vmatpush.msra.mxu0 %v833
  %837 = vmatpush.msra.mxu0 %v832
  %838 = vmatpush.msra.mxu0 %v831
  %839 = vmatpush.msra.mxu0 %v830
  %840 = vmatpush.msra.mxu0 %v829
  %841 = vmatpush.msra.mxu0 %v828
  %842 = vmatpush.msra.mxu0 %v827
  %843 = vmatpush.msra.mxu0 %v826
  %844 = vmatpush.msra.mxu0 %v825
  %845 = vmatpush.msra.mxu0 %v824
  %846 = vmatpush.msra.mxu0 %v823
  %847 = vmatpush.msra.mxu0 %v822
  %848 = vmatpush.msra.mxu0 %v821
  %849 = vmatpush.msra.mxu0 %v820
  %850 = vmatpush.msra.mxu0 %v819
  %851 = vmatmul.f32.gmra.mxu0 %v111
  %v852 = vpop.f32.mrf.mxu0
  %v853 = vadd.f32 0.0, %v852
  %854 = vdwg.mxu0
  %s855 = scalar_lea.vmem %s2, 896
  %v856 = vld [vmem:[%s855] sm:$0xf]
  %v857 = vld [vmem:[%s855 + $0x4] sm:$0xf]
  %v858 = vld [vmem:[%s855 + $0x8] sm:$0xf]
  %v859 = vld [vmem:[%s855 + $0xc] sm:$0xf]
  %v860 = vld [vmem:[%s855 + $0x10] sm:$0xf]
  %v861 = vld [vmem:[%s855 + $0x14] sm:$0xf]
  %v862 = vld [vmem:[%s855 + $0x18] sm:$0xf]
  %v863 = vld [vmem:[%s855 + $0x1c] sm:$0xf]
  %v864 = vld [vmem:[%s855 + $0x20] sm:$0xf]
  %v865 = vld [vmem:[%s855 + $0x24] sm:$0xf]
  %v866 = vld [vmem:[%s855 + $0x28] sm:$0xf]
  %v867 = vld [vmem:[%s855 + $0x2c] sm:$0xf]
  %v868 = vld [vmem:[%s855 + $0x30] sm:$0xf]
  %v869 = vld [vmem:[%s855 + $0x34] sm:$0xf]
  %v870 = vld [vmem:[%s855 + $0x38] sm:$0xf]
  %v871 = vld [vmem:[%s855 + $0x3c] sm:$0xf]
  %v872 = vunpack.c.l.bf16 %v856
  %v873 = vunpack.c.l.bf16 %v857
  %v874 = vunpack.c.l.bf16 %v858
  %v875 = vunpack.c.l.bf16 %v859
  %v876 = vunpack.c.l.bf16 %v860
  %v877 = vunpack.c.l.bf16 %v861
  %v878 = vunpack.c.l.bf16 %v862
  %v879 = vunpack.c.l.bf16 %v863
  %v880 = vunpack.c.l.bf16 %v864
  %v881 = vunpack.c.l.bf16 %v865
  %v882 = vunpack.c.l.bf16 %v866
  %v883 = vunpack.c.l.bf16 %v867
  %v884 = vunpack.c.l.bf16 %v868
  %v885 = vunpack.c.l.bf16 %v869
  %v886 = vunpack.c.l.bf16 %v870
  %v887 = vunpack.c.l.bf16 %v871
  %888 = vmatpush.msra.mxu0 %v887
  %889 = vmatpush.msra.mxu0 %v886
  %890 = vmatpush.msra.mxu0 %v885
  %891 = vmatpush.msra.mxu0 %v884
  %892 = vmatpush.msra.mxu0 %v883
  %893 = vmatpush.msra.mxu0 %v882
  %894 = vmatpush.msra.mxu0 %v881
  %895 = vmatpush.msra.mxu0 %v880
  %896 = vmatpush.msra.mxu0 %v879
  %897 = vmatpush.msra.mxu0 %v878
  %898 = vmatpush.msra.mxu0 %v877
  %899 = vmatpush.msra.mxu0 %v876
  %900 = vmatpush.msra.mxu0 %v875
  %901 = vmatpush.msra.mxu0 %v874
  %902 = vmatpush.msra.mxu0 %v873
  %903 = vmatpush.msra.mxu0 %v872
  %904 = vmatmul.f32.gmra.mxu0 %v111
  %v905 = vpop.f32.mrf.mxu0
  %v906 = vadd.f32 0.0, %v905
  %907 = vdwg.mxu0
  %s908 = scalar_lea.vmem %s2, 960
  %v909 = vld [vmem:[%s908] sm:$0xf]
  %v910 = vld [vmem:[%s908 + $0x4] sm:$0xf]
  %v911 = vld [vmem:[%s908 + $0x8] sm:$0xf]
  %v912 = vld [vmem:[%s908 + $0xc] sm:$0xf]
  %v913 = vld [vmem:[%s908 + $0x10] sm:$0xf]
  %v914 = vld [vmem:[%s908 + $0x14] sm:$0xf]
  %v915 = vld [vmem:[%s908 + $0x18] sm:$0xf]
  %v916 = vld [vmem:[%s908 + $0x1c] sm:$0xf]
  %v917 = vld [vmem:[%s908 + $0x20] sm:$0xf]
  %v918 = vld [vmem:[%s908 + $0x24] sm:$0xf]
  %v919 = vld [vmem:[%s908 + $0x28] sm:$0xf]
  %v920 = vld [vmem:[%s908 + $0x2c] sm:$0xf]
  %v921 = vld [vmem:[%s908 + $0x30] sm:$0xf]
  %v922 = vld [vmem:[%s908 + $0x34] sm:$0xf]
  %v923 = vld [vmem:[%s908 + $0x38] sm:$0xf]
  %v924 = vld [vmem:[%s908 + $0x3c] sm:$0xf]
  %v925 = vunpack.c.l.bf16 %v909
  %v926 = vunpack.c.l.bf16 %v910
  %v927 = vunpack.c.l.bf16 %v911
  %v928 = vunpack.c.l.bf16 %v912
  %v929 = vunpack.c.l.bf16 %v913
  %v930 = vunpack.c.l.bf16 %v914
  %v931 = vunpack.c.l.bf16 %v915
  %v932 = vunpack.c.l.bf16 %v916
  %v933 = vunpack.c.l.bf16 %v917
  %v934 = vunpack.c.l.bf16 %v918
  %v935 = vunpack.c.l.bf16 %v919
  %v936 = vunpack.c.l.bf16 %v920
  %v937 = vunpack.c.l.bf16 %v921
  %v938 = vunpack.c.l.bf16 %v922
  %v939 = vunpack.c.l.bf16 %v923
  %v940 = vunpack.c.l.bf16 %v924
  %941 = vmatpush.msra.mxu0 %v940
  %942 = vmatpush.msra.mxu0 %v939
  %943 = vmatpush.msra.mxu0 %v938
  %944 = vmatpush.msra.mxu0 %v937
  %945 = vmatpush.msra.mxu0 %v936
  %946 = vmatpush.msra.mxu0 %v935
  %947 = vmatpush.msra.mxu0 %v934
  %948 = vmatpush.msra.mxu0 %v933
  %949 = vmatpush.msra.mxu0 %v932
  %950 = vmatpush.msra.mxu0 %v931
  %951 = vmatpush.msra.mxu0 %v930
  %952 = vmatpush.msra.mxu0 %v929
  %953 = vmatpush.msra.mxu0 %v928
  %954 = vmatpush.msra.mxu0 %v927
  %955 = vmatpush.msra.mxu0 %v926
  %956 = vmatpush.msra.mxu0 %v925
  %957 = vmatmul.f32.gmra.mxu0 %v111
  %v958 = vpop.f32.mrf.mxu0
  %v959 = vadd.f32 0.0, %v958
  %960 = vdwg.mxu0
  %v961 = vld [vmem:[%s3] sm:$0xff]
  %v962 = vld [vmem:[%s3 + $0x8] sm:$0xff]
  %964 = vset.pattern.permute.xlu0 0
  %965 = vperm.xlu0 %964, %v112
  %v966 = vpop.permute.xlu0 %965
  %969 = vset.pattern.permute.xlu0 0
  %970 = vperm.xlu0 %969, %v113
  %v971 = vpop.permute.xlu0 %970
  %973 = vmatpush.msra.mxu0 %v959
  %974 = vmatpush.msra.mxu0 %v906
  %975 = vmatpush.msra.mxu0 %v853
  %976 = vmatpush.msra.mxu0 %v800
  %977 = vmatpush.msra.mxu0 %v747
  %978 = vmatpush.msra.mxu0 %v694
  %979 = vmatpush.msra.mxu0 %v641
  %980 = vmatpush.msra.mxu0 %v588
  %981 = vmatpush.msra.mxu0 %v535
  %982 = vmatpush.msra.mxu0 %v482
  %983 = vmatpush.msra.mxu0 %v429
  %984 = vmatpush.msra.mxu0 %v376
  %985 = vmatpush.msra.mxu0 %v323
  %986 = vmatpush.msra.mxu0 %v270
  %987 = vmatpush.msra.mxu0 %v217
  %988 = vmatpush.msra.mxu0 %v164
  %989 = vmatmul.f32.gmra.mxu0 %v961
  %v990 = vpop.f32.mrf.mxu0
  %v991 = vadd.f32 %v966, %v990
  %992 = vmatmul.f32.gmra.mxu0 %v962
  %v993 = vpop.f32.mrf.mxu0
  %v994 = vadd.f32 %v971, %v993
  %995 = vdwg.mxu0
  %vm996 = vcmp.gt.f32.partialorder %v991, 0.0
  %vm997 = vcmp.gt.f32.partialorder %v994, 0.0
  %v998 = vmul.f32 %v991, 0.2
  %v999 = vmul.f32 %v994, 0.2
  %v1000 = vsel %vm996, %v991, %v998
  %v1001 = vsel %vm997, %v994, %v999
  %v1002 = vld [vmem:[%s9 + $0x28] sm:$0xff]
  %v1003 = vld [vmem:[%s9 + $0x30] sm:$0xff]
  %v1004 = vld [vmem:[%s9 + $0x38] sm:$0xff]
  %v1005 = vld [vmem:[%s9 + $0x40] sm:$0xff]
  %vm1006 = vcmask 261120
  %v1007 = vsel %vm1006, %v1000, 0.0
  %1008 = vadd.xlane.f32.xlu0 %v1007
  %v1009 = vpop.xlane.xlu0 %1008
  %v1010 = vsel %vm1006, %v1001, 0.0
  %1011 = vadd.xlane.f32.xlu0 %v1010
  %v1012 = vpop.xlane.xlu0 %1011
  %v1013 = vrcp.pop 32.0
  %v1014 = vmul.f32 32.0, %v1013
  %v1015 = vsub.f32 1.0, %v1014
  %v1016 = vmul.f32 %v1013, %v1015
  %v1017 = vadd.f32 %v1013, %v1016
  %vm1018 = vweird.f32 %v1013
  %v1019 = vsel %vm1018, %v1013, %v1017
  %v1020 = vmul.f32 %v1009, %v1019
  %v1021 = vmul.f32 %v1012, %v1019
  %v1022 = vsub.f32 %v1000, %v1020
  %v1023 = vsub.f32 %v1001, %v1021
  %v1024 = vmul.f32 %v1022, %v1022
  %v1025 = vmul.f32 %v1023, %v1023
  %v1026 = vsel %vm1006, %v1024, 0.0
  %1027 = vadd.xlane.f32.xlu0 %v1026
  %v1028 = vpop.xlane.xlu0 %1027
  %v1029 = vsel %vm1006, %v1025, 0.0
  %1030 = vadd.xlane.f32.xlu0 %v1029
  %v1031 = vpop.xlane.xlu0 %1030
  %v1032 = vmul.f32 %v1028, %v1019
  %v1033 = vmul.f32 %v1031, %v1019
  %v1034 = vadd.f32 %v1032, 1e-05
  %v1035 = vadd.f32 %v1033, 1e-05
  %v1036 = vrsqrt.pop %v1034
  %v1037 = vmul.f32 %v1036, %v1034
  %v1038 = vmul.f32 %v1037, %v1036
  %v1039 = vmul.f32 0.5, %v1038
  %v1040 = vsub.f32 1.5, %v1039
  %v1041 = vmul.f32 %v1036, %v1040
  %vm1042 = vweird.f32 %v1034
  %vm1043 = vweird.f32 %v1036
  %vm1044 = vmor %vm1042, %vm1043
  %v1045 = vsel %vm1044, %v1036, %v1041
  %v1046 = vrsqrt.pop %v1035
  %v1047 = vmul.f32 %v1046, %v1035
  %v1048 = vmul.f32 %v1047, %v1046
  %v1049 = vmul.f32 0.5, %v1048
  %v1050 = vsub.f32 1.5, %v1049
  %v1051 = vmul.f32 %v1046, %v1050
  %vm1052 = vweird.f32 %v1035
  %vm1053 = vweird.f32 %v1046
  %vm1054 = vmor %vm1052, %vm1053
  %v1055 = vsel %vm1054, %v1046, %v1051
  %v1056 = vmul.f32 %v1022, %v1045
  %v1057 = vmul.f32 %v1023, %v1055
  %1059 = vset.pattern.permute.xlu0 0
  %1060 = vperm.xlu0 %1059, %v1002
  %v1061 = vpop.permute.xlu0 %1060
  %1064 = vset.pattern.permute.xlu0 0
  %1065 = vperm.xlu0 %1064, %v1003
  %v1066 = vpop.permute.xlu0 %1065
  %v1068 = vmul.f32 %v1056, %v1061
  %v1069 = vmul.f32 %v1057, %v1066
  %1071 = vset.pattern.permute.xlu0 0
  %1072 = vperm.xlu0 %1071, %v1004
  %v1073 = vpop.permute.xlu0 %1072
  %1076 = vset.pattern.permute.xlu0 0
  %1077 = vperm.xlu0 %1076, %v1005
  %v1078 = vpop.permute.xlu0 %1077
  %v1080 = vadd.f32 %v1068, %v1073
  %v1081 = vadd.f32 %v1069, %v1078
  %v1082 = vld [vmem:[%s9 + $0x48] sm:$0xff]
  %v1083 = vld [vmem:[%s9 + $0x50] sm:$0xff]
  %v1084 = vld [vmem:[%s9 + $0x58] sm:$0xff]
  %v1085 = vld [vmem:[%s9 + $0x60] sm:$0xff]
  %v1086 = vld [vmem:[%s4] sm:$0xf]
  %v1087 = vld [vmem:[%s4 + $0x4] sm:$0xf]
  %v1088 = vld [vmem:[%s4 + $0x8] sm:$0xf]
  %v1089 = vld [vmem:[%s4 + $0xc] sm:$0xf]
  %v1090 = vunpack.c.l.bf16 %v1086
  %v1091 = vunpack.c.l.bf16 %v1087
  %v1092 = vunpack.c.l.bf16 %v1088
  %v1093 = vunpack.c.l.bf16 %v1089
  %v1095 = vsel %vm1006, %v1080, 0
  %v1098 = vsel %vm1006, %v1081, 0
  %1100 = vmatpush.msra.mxu0 0.0
  %1101 = vmatpush.msra.mxu0 0.0
  %1102 = vmatpush.msra.mxu0 0.0
  %1103 = vmatpush.msra.mxu0 0.0
  %1104 = vmatpush.msra.mxu0 0.0
  %1105 = vmatpush.msra.mxu0 0.0
  %1106 = vmatpush.msra.mxu0 0.0
  %1107 = vmatpush.msra.mxu0 0.0
  %1108 = vmatpush.msra.mxu0 0.0
  %1109 = vmatpush.msra.mxu0 0.0
  %1110 = vmatpush.msra.mxu0 0.0
  %1111 = vmatpush.msra.mxu0 0.0
  %1112 = vmatpush.msra.mxu0 %v1093
  %1113 = vmatpush.msra.mxu0 %v1092
  %1114 = vmatpush.msra.mxu0 %v1091
  %1115 = vmatpush.msra.mxu0 %v1090
  %1116 = vmatmul.f32.gmra.mxu0 %v1095
  %v1117 = vpop.f32.mrf.mxu0
  %v1118 = vadd.f32 0.0, %v1117
  %1119 = vmatmul.f32.gmra.mxu0 %v1098
  %v1120 = vpop.f32.mrf.mxu0
  %v1121 = vadd.f32 0.0, %v1120
  %1122 = vdwg.mxu0
  %s1123 = scalar_lea.vmem %s4, 16
  %v1124 = vld [vmem:[%s1123] sm:$0xf]
  %v1125 = vld [vmem:[%s1123 + $0x4] sm:$0xf]
  %v1126 = vld [vmem:[%s1123 + $0x8] sm:$0xf]
  %v1127 = vld [vmem:[%s1123 + $0xc] sm:$0xf]
  %v1128 = vunpack.c.l.bf16 %v1124
  %v1129 = vunpack.c.l.bf16 %v1125
  %v1130 = vunpack.c.l.bf16 %v1126
  %v1131 = vunpack.c.l.bf16 %v1127
  %1132 = vmatpush.msra.mxu0 0.0
  %1133 = vmatpush.msra.mxu0 0.0
  %1134 = vmatpush.msra.mxu0 0.0
  %1135 = vmatpush.msra.mxu0 0.0
  %1136 = vmatpush.msra.mxu0 0.0
  %1137 = vmatpush.msra.mxu0 0.0
  %1138 = vmatpush.msra.mxu0 0.0
  %1139 = vmatpush.msra.mxu0 0.0
  %1140 = vmatpush.msra.mxu0 0.0
  %1141 = vmatpush.msra.mxu0 0.0
  %1142 = vmatpush.msra.mxu0 0.0
  %1143 = vmatpush.msra.mxu0 0.0
  %1144 = vmatpush.msra.mxu0 %v1131
  %1145 = vmatpush.msra.mxu0 %v1130
  %1146 = vmatpush.msra.mxu0 %v1129
  %1147 = vmatpush.msra.mxu0 %v1128
  %1148 = vmatmul.f32.gmra.mxu0 %v1095
  %v1149 = vpop.f32.mrf.mxu0
  %v1150 = vadd.f32 0.0, %v1149
  %1151 = vmatmul.f32.gmra.mxu0 %v1098
  %v1152 = vpop.f32.mrf.mxu0
  %v1153 = vadd.f32 0.0, %v1152
  %1154 = vdwg.mxu0
  %s1155 = scalar_lea.vmem %s4, 32
  %v1156 = vld [vmem:[%s1155] sm:$0xf]
  %v1157 = vld [vmem:[%s1155 + $0x4] sm:$0xf]
  %v1158 = vld [vmem:[%s1155 + $0x8] sm:$0xf]
  %v1159 = vld [vmem:[%s1155 + $0xc] sm:$0xf]
  %v1160 = vunpack.c.l.bf16 %v1156
  %v1161 = vunpack.c.l.bf16 %v1157
  %v1162 = vunpack.c.l.bf16 %v1158
  %v1163 = vunpack.c.l.bf16 %v1159
  %1164 = vmatpush.msra.mxu0 0.0
  %1165 = vmatpush.msra.mxu0 0.0
  %1166 = vmatpush.msra.mxu0 0.0
  %1167 = vmatpush.msra.mxu0 0.0
  %1168 = vmatpush.msra.mxu0 0.0
  %1169 = vmatpush.msra.mxu0 0.0
  %1170 = vmatpush.msra.mxu0 0.0
  %1171 = vmatpush.msra.mxu0 0.0
  %1172 = vmatpush.msra.mxu0 0.0
  %1173 = vmatpush.msra.mxu0 0.0
  %1174 = vmatpush.msra.mxu0 0.0
  %1175 = vmatpush.msra.mxu0 0.0
  %1176 = vmatpush.msra.mxu0 %v1163
  %1177 = vmatpush.msra.mxu0 %v1162
  %1178 = vmatpush.msra.mxu0 %v1161
  %1179 = vmatpush.msra.mxu0 %v1160
  %1180 = vmatmul.f32.gmra.mxu0 %v1095
  %v1181 = vpop.f32.mrf.mxu0
  %v1182 = vadd.f32 0.0, %v1181
  %1183 = vmatmul.f32.gmra.mxu0 %v1098
  %v1184 = vpop.f32.mrf.mxu0
  %v1185 = vadd.f32 0.0, %v1184
  %1186 = vdwg.mxu0
  %s1187 = scalar_lea.vmem %s4, 48
  %v1188 = vld [vmem:[%s1187] sm:$0xf]
  %v1189 = vld [vmem:[%s1187 + $0x4] sm:$0xf]
  %v1190 = vld [vmem:[%s1187 + $0x8] sm:$0xf]
  %v1191 = vld [vmem:[%s1187 + $0xc] sm:$0xf]
  %v1192 = vunpack.c.l.bf16 %v1188
  %v1193 = vunpack.c.l.bf16 %v1189
  %v1194 = vunpack.c.l.bf16 %v1190
  %v1195 = vunpack.c.l.bf16 %v1191
  %1196 = vmatpush.msra.mxu0 0.0
  %1197 = vmatpush.msra.mxu0 0.0
  %1198 = vmatpush.msra.mxu0 0.0
  %1199 = vmatpush.msra.mxu0 0.0
  %1200 = vmatpush.msra.mxu0 0.0
  %1201 = vmatpush.msra.mxu0 0.0
  %1202 = vmatpush.msra.mxu0 0.0
  %1203 = vmatpush.msra.mxu0 0.0
  %1204 = vmatpush.msra.mxu0 0.0
  %1205 = vmatpush.msra.mxu0 0.0
  %1206 = vmatpush.msra.mxu0 0.0
  %1207 = vmatpush.msra.mxu0 0.0
  %1208 = vmatpush.msra.mxu0 %v1195
  %1209 = vmatpush.msra.mxu0 %v1194
  %1210 = vmatpush.msra.mxu0 %v1193
  %1211 = vmatpush.msra.mxu0 %v1192
  %1212 = vmatmul.f32.gmra.mxu0 %v1095
  %v1213 = vpop.f32.mrf.mxu0
  %v1214 = vadd.f32 0.0, %v1213
  %1215 = vmatmul.f32.gmra.mxu0 %v1098
  %v1216 = vpop.f32.mrf.mxu0
  %v1217 = vadd.f32 0.0, %v1216
  %1218 = vdwg.mxu0
  %s1219 = scalar_lea.vmem %s4, 64
  %v1220 = vld [vmem:[%s1219] sm:$0xf]
  %v1221 = vld [vmem:[%s1219 + $0x4] sm:$0xf]
  %v1222 = vld [vmem:[%s1219 + $0x8] sm:$0xf]
  %v1223 = vld [vmem:[%s1219 + $0xc] sm:$0xf]
  %v1224 = vunpack.c.l.bf16 %v1220
  %v1225 = vunpack.c.l.bf16 %v1221
  %v1226 = vunpack.c.l.bf16 %v1222
  %v1227 = vunpack.c.l.bf16 %v1223
  %1228 = vmatpush.msra.mxu0 0.0
  %1229 = vmatpush.msra.mxu0 0.0
  %1230 = vmatpush.msra.mxu0 0.0
  %1231 = vmatpush.msra.mxu0 0.0
  %1232 = vmatpush.msra.mxu0 0.0
  %1233 = vmatpush.msra.mxu0 0.0
  %1234 = vmatpush.msra.mxu0 0.0
  %1235 = vmatpush.msra.mxu0 0.0
  %1236 = vmatpush.msra.mxu0 0.0
  %1237 = vmatpush.msra.mxu0 0.0
  %1238 = vmatpush.msra.mxu0 0.0
  %1239 = vmatpush.msra.mxu0 0.0
  %1240 = vmatpush.msra.mxu0 %v1227
  %1241 = vmatpush.msra.mxu0 %v1226
  %1242 = vmatpush.msra.mxu0 %v1225
  %1243 = vmatpush.msra.mxu0 %v1224
  %1244 = vmatmul.f32.gmra.mxu0 %v1095
  %v1245 = vpop.f32.mrf.mxu0
  %v1246 = vadd.f32 0.0, %v1245
  %1247 = vmatmul.f32.gmra.mxu0 %v1098
  %v1248 = vpop.f32.mrf.mxu0
  %v1249 = vadd.f32 0.0, %v1248
  %1250 = vdwg.mxu0
  %s1251 = scalar_lea.vmem %s4, 80
  %v1252 = vld [vmem:[%s1251] sm:$0xf]
  %v1253 = vld [vmem:[%s1251 + $0x4] sm:$0xf]
  %v1254 = vld [vmem:[%s1251 + $0x8] sm:$0xf]
  %v1255 = vld [vmem:[%s1251 + $0xc] sm:$0xf]
  %v1256 = vunpack.c.l.bf16 %v1252
  %v1257 = vunpack.c.l.bf16 %v1253
  %v1258 = vunpack.c.l.bf16 %v1254
  %v1259 = vunpack.c.l.bf16 %v1255
  %1260 = vmatpush.msra.mxu0 0.0
  %1261 = vmatpush.msra.mxu0 0.0
  %1262 = vmatpush.msra.mxu0 0.0
  %1263 = vmatpush.msra.mxu0 0.0
  %1264 = vmatpush.msra.mxu0 0.0
  %1265 = vmatpush.msra.mxu0 0.0
  %1266 = vmatpush.msra.mxu0 0.0
  %1267 = vmatpush.msra.mxu0 0.0
  %1268 = vmatpush.msra.mxu0 0.0
  %1269 = vmatpush.msra.mxu0 0.0
  %1270 = vmatpush.msra.mxu0 0.0
  %1271 = vmatpush.msra.mxu0 0.0
  %1272 = vmatpush.msra.mxu0 %v1259
  %1273 = vmatpush.msra.mxu0 %v1258
  %1274 = vmatpush.msra.mxu0 %v1257
  %1275 = vmatpush.msra.mxu0 %v1256
  %1276 = vmatmul.f32.gmra.mxu0 %v1095
  %v1277 = vpop.f32.mrf.mxu0
  %v1278 = vadd.f32 0.0, %v1277
  %1279 = vmatmul.f32.gmra.mxu0 %v1098
  %v1280 = vpop.f32.mrf.mxu0
  %v1281 = vadd.f32 0.0, %v1280
  %1282 = vdwg.mxu0
  %s1283 = scalar_lea.vmem %s4, 96
  %v1284 = vld [vmem:[%s1283] sm:$0xf]
  %v1285 = vld [vmem:[%s1283 + $0x4] sm:$0xf]
  %v1286 = vld [vmem:[%s1283 + $0x8] sm:$0xf]
  %v1287 = vld [vmem:[%s1283 + $0xc] sm:$0xf]
  %v1288 = vunpack.c.l.bf16 %v1284
  %v1289 = vunpack.c.l.bf16 %v1285
  %v1290 = vunpack.c.l.bf16 %v1286
  %v1291 = vunpack.c.l.bf16 %v1287
  %1292 = vmatpush.msra.mxu0 0.0
  %1293 = vmatpush.msra.mxu0 0.0
  %1294 = vmatpush.msra.mxu0 0.0
  %1295 = vmatpush.msra.mxu0 0.0
  %1296 = vmatpush.msra.mxu0 0.0
  %1297 = vmatpush.msra.mxu0 0.0
  %1298 = vmatpush.msra.mxu0 0.0
  %1299 = vmatpush.msra.mxu0 0.0
  %1300 = vmatpush.msra.mxu0 0.0
  %1301 = vmatpush.msra.mxu0 0.0
  %1302 = vmatpush.msra.mxu0 0.0
  %1303 = vmatpush.msra.mxu0 0.0
  %1304 = vmatpush.msra.mxu0 %v1291
  %1305 = vmatpush.msra.mxu0 %v1290
  %1306 = vmatpush.msra.mxu0 %v1289
  %1307 = vmatpush.msra.mxu0 %v1288
  %1308 = vmatmul.f32.gmra.mxu0 %v1095
  %v1309 = vpop.f32.mrf.mxu0
  %v1310 = vadd.f32 0.0, %v1309
  %1311 = vmatmul.f32.gmra.mxu0 %v1098
  %v1312 = vpop.f32.mrf.mxu0
  %v1313 = vadd.f32 0.0, %v1312
  %1314 = vdwg.mxu0
  %s1315 = scalar_lea.vmem %s4, 112
  %v1316 = vld [vmem:[%s1315] sm:$0xf]
  %v1317 = vld [vmem:[%s1315 + $0x4] sm:$0xf]
  %v1318 = vld [vmem:[%s1315 + $0x8] sm:$0xf]
  %v1319 = vld [vmem:[%s1315 + $0xc] sm:$0xf]
  %v1320 = vunpack.c.l.bf16 %v1316
  %v1321 = vunpack.c.l.bf16 %v1317
  %v1322 = vunpack.c.l.bf16 %v1318
  %v1323 = vunpack.c.l.bf16 %v1319
  %1324 = vmatpush.msra.mxu0 0.0
  %1325 = vmatpush.msra.mxu0 0.0
  %1326 = vmatpush.msra.mxu0 0.0
  %1327 = vmatpush.msra.mxu0 0.0
  %1328 = vmatpush.msra.mxu0 0.0
  %1329 = vmatpush.msra.mxu0 0.0
  %1330 = vmatpush.msra.mxu0 0.0
  %1331 = vmatpush.msra.mxu0 0.0
  %1332 = vmatpush.msra.mxu0 0.0
  %1333 = vmatpush.msra.mxu0 0.0
  %1334 = vmatpush.msra.mxu0 0.0
  %1335 = vmatpush.msra.mxu0 0.0
  %1336 = vmatpush.msra.mxu0 %v1323
  %1337 = vmatpush.msra.mxu0 %v1322
  %1338 = vmatpush.msra.mxu0 %v1321
  %1339 = vmatpush.msra.mxu0 %v1320
  %1340 = vmatmul.f32.gmra.mxu0 %v1095
  %v1341 = vpop.f32.mrf.mxu0
  %v1342 = vadd.f32 0.0, %v1341
  %1343 = vmatmul.f32.gmra.mxu0 %v1098
  %v1344 = vpop.f32.mrf.mxu0
  %v1345 = vadd.f32 0.0, %v1344
  %1346 = vdwg.mxu0
  %s1347 = scalar_lea.vmem %s4, 128
  %v1348 = vld [vmem:[%s1347] sm:$0xf]
  %v1349 = vld [vmem:[%s1347 + $0x4] sm:$0xf]
  %v1350 = vld [vmem:[%s1347 + $0x8] sm:$0xf]
  %v1351 = vld [vmem:[%s1347 + $0xc] sm:$0xf]
  %v1352 = vunpack.c.l.bf16 %v1348
  %v1353 = vunpack.c.l.bf16 %v1349
  %v1354 = vunpack.c.l.bf16 %v1350
  %v1355 = vunpack.c.l.bf16 %v1351
  %1356 = vmatpush.msra.mxu0 0.0
  %1357 = vmatpush.msra.mxu0 0.0
  %1358 = vmatpush.msra.mxu0 0.0
  %1359 = vmatpush.msra.mxu0 0.0
  %1360 = vmatpush.msra.mxu0 0.0
  %1361 = vmatpush.msra.mxu0 0.0
  %1362 = vmatpush.msra.mxu0 0.0
  %1363 = vmatpush.msra.mxu0 0.0
  %1364 = vmatpush.msra.mxu0 0.0
  %1365 = vmatpush.msra.mxu0 0.0
  %1366 = vmatpush.msra.mxu0 0.0
  %1367 = vmatpush.msra.mxu0 0.0
  %1368 = vmatpush.msra.mxu0 %v1355
  %1369 = vmatpush.msra.mxu0 %v1354
  %1370 = vmatpush.msra.mxu0 %v1353
  %1371 = vmatpush.msra.mxu0 %v1352
  %1372 = vmatmul.f32.gmra.mxu0 %v1095
  %v1373 = vpop.f32.mrf.mxu0
  %v1374 = vadd.f32 0.0, %v1373
  %1375 = vmatmul.f32.gmra.mxu0 %v1098
  %v1376 = vpop.f32.mrf.mxu0
  %v1377 = vadd.f32 0.0, %v1376
  %1378 = vdwg.mxu0
  %s1379 = scalar_lea.vmem %s4, 144
  %v1380 = vld [vmem:[%s1379] sm:$0xf]
  %v1381 = vld [vmem:[%s1379 + $0x4] sm:$0xf]
  %v1382 = vld [vmem:[%s1379 + $0x8] sm:$0xf]
  %v1383 = vld [vmem:[%s1379 + $0xc] sm:$0xf]
  %v1384 = vunpack.c.l.bf16 %v1380
  %v1385 = vunpack.c.l.bf16 %v1381
  %v1386 = vunpack.c.l.bf16 %v1382
  %v1387 = vunpack.c.l.bf16 %v1383
  %1388 = vmatpush.msra.mxu0 0.0
  %1389 = vmatpush.msra.mxu0 0.0
  %1390 = vmatpush.msra.mxu0 0.0
  %1391 = vmatpush.msra.mxu0 0.0
  %1392 = vmatpush.msra.mxu0 0.0
  %1393 = vmatpush.msra.mxu0 0.0
  %1394 = vmatpush.msra.mxu0 0.0
  %1395 = vmatpush.msra.mxu0 0.0
  %1396 = vmatpush.msra.mxu0 0.0
  %1397 = vmatpush.msra.mxu0 0.0
  %1398 = vmatpush.msra.mxu0 0.0
  %1399 = vmatpush.msra.mxu0 0.0
  %1400 = vmatpush.msra.mxu0 %v1387
  %1401 = vmatpush.msra.mxu0 %v1386
  %1402 = vmatpush.msra.mxu0 %v1385
  %1403 = vmatpush.msra.mxu0 %v1384
  %1404 = vmatmul.f32.gmra.mxu0 %v1095
  %v1405 = vpop.f32.mrf.mxu0
  %v1406 = vadd.f32 0.0, %v1405
  %1407 = vmatmul.f32.gmra.mxu0 %v1098
  %v1408 = vpop.f32.mrf.mxu0
  %v1409 = vadd.f32 0.0, %v1408
  %1410 = vdwg.mxu0
  %s1411 = scalar_lea.vmem %s4, 160
  %v1412 = vld [vmem:[%s1411] sm:$0xf]
  %v1413 = vld [vmem:[%s1411 + $0x4] sm:$0xf]
  %v1414 = vld [vmem:[%s1411 + $0x8] sm:$0xf]
  %v1415 = vld [vmem:[%s1411 + $0xc] sm:$0xf]
  %v1416 = vunpack.c.l.bf16 %v1412
  %v1417 = vunpack.c.l.bf16 %v1413
  %v1418 = vunpack.c.l.bf16 %v1414
  %v1419 = vunpack.c.l.bf16 %v1415
  %1420 = vmatpush.msra.mxu0 0.0
  %1421 = vmatpush.msra.mxu0 0.0
  %1422 = vmatpush.msra.mxu0 0.0
  %1423 = vmatpush.msra.mxu0 0.0
  %1424 = vmatpush.msra.mxu0 0.0
  %1425 = vmatpush.msra.mxu0 0.0
  %1426 = vmatpush.msra.mxu0 0.0
  %1427 = vmatpush.msra.mxu0 0.0
  %1428 = vmatpush.msra.mxu0 0.0
  %1429 = vmatpush.msra.mxu0 0.0
  %1430 = vmatpush.msra.mxu0 0.0
  %1431 = vmatpush.msra.mxu0 0.0
  %1432 = vmatpush.msra.mxu0 %v1419
  %1433 = vmatpush.msra.mxu0 %v1418
  %1434 = vmatpush.msra.mxu0 %v1417
  %1435 = vmatpush.msra.mxu0 %v1416
  %1436 = vmatmul.f32.gmra.mxu0 %v1095
  %v1437 = vpop.f32.mrf.mxu0
  %v1438 = vadd.f32 0.0, %v1437
  %1439 = vmatmul.f32.gmra.mxu0 %v1098
  %v1440 = vpop.f32.mrf.mxu0
  %v1441 = vadd.f32 0.0, %v1440
  %1442 = vdwg.mxu0
  %s1443 = scalar_lea.vmem %s4, 176
  %v1444 = vld [vmem:[%s1443] sm:$0xf]
  %v1445 = vld [vmem:[%s1443 + $0x4] sm:$0xf]
  %v1446 = vld [vmem:[%s1443 + $0x8] sm:$0xf]
  %v1447 = vld [vmem:[%s1443 + $0xc] sm:$0xf]
  %v1448 = vunpack.c.l.bf16 %v1444
  %v1449 = vunpack.c.l.bf16 %v1445
  %v1450 = vunpack.c.l.bf16 %v1446
  %v1451 = vunpack.c.l.bf16 %v1447
  %1452 = vmatpush.msra.mxu0 0.0
  %1453 = vmatpush.msra.mxu0 0.0
  %1454 = vmatpush.msra.mxu0 0.0
  %1455 = vmatpush.msra.mxu0 0.0
  %1456 = vmatpush.msra.mxu0 0.0
  %1457 = vmatpush.msra.mxu0 0.0
  %1458 = vmatpush.msra.mxu0 0.0
  %1459 = vmatpush.msra.mxu0 0.0
  %1460 = vmatpush.msra.mxu0 0.0
  %1461 = vmatpush.msra.mxu0 0.0
  %1462 = vmatpush.msra.mxu0 0.0
  %1463 = vmatpush.msra.mxu0 0.0
  %1464 = vmatpush.msra.mxu0 %v1451
  %1465 = vmatpush.msra.mxu0 %v1450
  %1466 = vmatpush.msra.mxu0 %v1449
  %1467 = vmatpush.msra.mxu0 %v1448
  %1468 = vmatmul.f32.gmra.mxu0 %v1095
  %v1469 = vpop.f32.mrf.mxu0
  %v1470 = vadd.f32 0.0, %v1469
  %1471 = vmatmul.f32.gmra.mxu0 %v1098
  %v1472 = vpop.f32.mrf.mxu0
  %v1473 = vadd.f32 0.0, %v1472
  %1474 = vdwg.mxu0
  %s1475 = scalar_lea.vmem %s4, 192
  %v1476 = vld [vmem:[%s1475] sm:$0xf]
  %v1477 = vld [vmem:[%s1475 + $0x4] sm:$0xf]
  %v1478 = vld [vmem:[%s1475 + $0x8] sm:$0xf]
  %v1479 = vld [vmem:[%s1475 + $0xc] sm:$0xf]
  %v1480 = vunpack.c.l.bf16 %v1476
  %v1481 = vunpack.c.l.bf16 %v1477
  %v1482 = vunpack.c.l.bf16 %v1478
  %v1483 = vunpack.c.l.bf16 %v1479
  %1484 = vmatpush.msra.mxu0 0.0
  %1485 = vmatpush.msra.mxu0 0.0
  %1486 = vmatpush.msra.mxu0 0.0
  %1487 = vmatpush.msra.mxu0 0.0
  %1488 = vmatpush.msra.mxu0 0.0
  %1489 = vmatpush.msra.mxu0 0.0
  %1490 = vmatpush.msra.mxu0 0.0
  %1491 = vmatpush.msra.mxu0 0.0
  %1492 = vmatpush.msra.mxu0 0.0
  %1493 = vmatpush.msra.mxu0 0.0
  %1494 = vmatpush.msra.mxu0 0.0
  %1495 = vmatpush.msra.mxu0 0.0
  %1496 = vmatpush.msra.mxu0 %v1483
  %1497 = vmatpush.msra.mxu0 %v1482
  %1498 = vmatpush.msra.mxu0 %v1481
  %1499 = vmatpush.msra.mxu0 %v1480
  %1500 = vmatmul.f32.gmra.mxu0 %v1095
  %v1501 = vpop.f32.mrf.mxu0
  %v1502 = vadd.f32 0.0, %v1501
  %1503 = vmatmul.f32.gmra.mxu0 %v1098
  %v1504 = vpop.f32.mrf.mxu0
  %v1505 = vadd.f32 0.0, %v1504
  %1506 = vdwg.mxu0
  %s1507 = scalar_lea.vmem %s4, 208
  %v1508 = vld [vmem:[%s1507] sm:$0xf]
  %v1509 = vld [vmem:[%s1507 + $0x4] sm:$0xf]
  %v1510 = vld [vmem:[%s1507 + $0x8] sm:$0xf]
  %v1511 = vld [vmem:[%s1507 + $0xc] sm:$0xf]
  %v1512 = vunpack.c.l.bf16 %v1508
  %v1513 = vunpack.c.l.bf16 %v1509
  %v1514 = vunpack.c.l.bf16 %v1510
  %v1515 = vunpack.c.l.bf16 %v1511
  %1516 = vmatpush.msra.mxu0 0.0
  %1517 = vmatpush.msra.mxu0 0.0
  %1518 = vmatpush.msra.mxu0 0.0
  %1519 = vmatpush.msra.mxu0 0.0
  %1520 = vmatpush.msra.mxu0 0.0
  %1521 = vmatpush.msra.mxu0 0.0
  %1522 = vmatpush.msra.mxu0 0.0
  %1523 = vmatpush.msra.mxu0 0.0
  %1524 = vmatpush.msra.mxu0 0.0
  %1525 = vmatpush.msra.mxu0 0.0
  %1526 = vmatpush.msra.mxu0 0.0
  %1527 = vmatpush.msra.mxu0 0.0
  %1528 = vmatpush.msra.mxu0 %v1515
  %1529 = vmatpush.msra.mxu0 %v1514
  %1530 = vmatpush.msra.mxu0 %v1513
  %1531 = vmatpush.msra.mxu0 %v1512
  %1532 = vmatmul.f32.gmra.mxu0 %v1095
  %v1533 = vpop.f32.mrf.mxu0
  %v1534 = vadd.f32 0.0, %v1533
  %1535 = vmatmul.f32.gmra.mxu0 %v1098
  %v1536 = vpop.f32.mrf.mxu0
  %v1537 = vadd.f32 0.0, %v1536
  %1538 = vdwg.mxu0
  %s1539 = scalar_lea.vmem %s4, 224
  %v1540 = vld [vmem:[%s1539] sm:$0xf]
  %v1541 = vld [vmem:[%s1539 + $0x4] sm:$0xf]
  %v1542 = vld [vmem:[%s1539 + $0x8] sm:$0xf]
  %v1543 = vld [vmem:[%s1539 + $0xc] sm:$0xf]
  %v1544 = vunpack.c.l.bf16 %v1540
  %v1545 = vunpack.c.l.bf16 %v1541
  %v1546 = vunpack.c.l.bf16 %v1542
  %v1547 = vunpack.c.l.bf16 %v1543
  %1548 = vmatpush.msra.mxu0 0.0
  %1549 = vmatpush.msra.mxu0 0.0
  %1550 = vmatpush.msra.mxu0 0.0
  %1551 = vmatpush.msra.mxu0 0.0
  %1552 = vmatpush.msra.mxu0 0.0
  %1553 = vmatpush.msra.mxu0 0.0
  %1554 = vmatpush.msra.mxu0 0.0
  %1555 = vmatpush.msra.mxu0 0.0
  %1556 = vmatpush.msra.mxu0 0.0
  %1557 = vmatpush.msra.mxu0 0.0
  %1558 = vmatpush.msra.mxu0 0.0
  %1559 = vmatpush.msra.mxu0 0.0
  %1560 = vmatpush.msra.mxu0 %v1547
  %1561 = vmatpush.msra.mxu0 %v1546
  %1562 = vmatpush.msra.mxu0 %v1545
  %1563 = vmatpush.msra.mxu0 %v1544
  %1564 = vmatmul.f32.gmra.mxu0 %v1095
  %v1565 = vpop.f32.mrf.mxu0
  %v1566 = vadd.f32 0.0, %v1565
  %1567 = vmatmul.f32.gmra.mxu0 %v1098
  %v1568 = vpop.f32.mrf.mxu0
  %v1569 = vadd.f32 0.0, %v1568
  %1570 = vdwg.mxu0
  %s1571 = scalar_lea.vmem %s4, 240
  %v1572 = vld [vmem:[%s1571] sm:$0xf]
  %v1573 = vld [vmem:[%s1571 + $0x4] sm:$0xf]
  %v1574 = vld [vmem:[%s1571 + $0x8] sm:$0xf]
  %v1575 = vld [vmem:[%s1571 + $0xc] sm:$0xf]
  %v1576 = vunpack.c.l.bf16 %v1572
  %v1577 = vunpack.c.l.bf16 %v1573
  %v1578 = vunpack.c.l.bf16 %v1574
  %v1579 = vunpack.c.l.bf16 %v1575
  %1580 = vmatpush.msra.mxu0 0.0
  %1581 = vmatpush.msra.mxu0 0.0
  %1582 = vmatpush.msra.mxu0 0.0
  %1583 = vmatpush.msra.mxu0 0.0
  %1584 = vmatpush.msra.mxu0 0.0
  %1585 = vmatpush.msra.mxu0 0.0
  %1586 = vmatpush.msra.mxu0 0.0
  %1587 = vmatpush.msra.mxu0 0.0
  %1588 = vmatpush.msra.mxu0 0.0
  %1589 = vmatpush.msra.mxu0 0.0
  %1590 = vmatpush.msra.mxu0 0.0
  %1591 = vmatpush.msra.mxu0 0.0
  %1592 = vmatpush.msra.mxu0 %v1579
  %1593 = vmatpush.msra.mxu0 %v1578
  %1594 = vmatpush.msra.mxu0 %v1577
  %1595 = vmatpush.msra.mxu0 %v1576
  %1596 = vmatmul.f32.gmra.mxu0 %v1095
  %v1597 = vpop.f32.mrf.mxu0
  %v1598 = vadd.f32 0.0, %v1597
  %1599 = vmatmul.f32.gmra.mxu0 %v1098
  %v1600 = vpop.f32.mrf.mxu0
  %v1601 = vadd.f32 0.0, %v1600
  %1602 = vdwg.mxu0
  %v1603 = vld [vmem:[%s5] sm:$0xff]
  %v1604 = vld [vmem:[%s5 + $0x8] sm:$0xff]
  %v1605 = vld [vmem:[%s5 + $0x10] sm:$0xff]
  %v1606 = vld [vmem:[%s5 + $0x18] sm:$0xff]
  %v1607 = vld [vmem:[%s5 + $0x20] sm:$0xff]
  %v1608 = vld [vmem:[%s5 + $0x28] sm:$0xff]
  %v1609 = vld [vmem:[%s5 + $0x30] sm:$0xff]
  %v1610 = vld [vmem:[%s5 + $0x38] sm:$0xff]
  %1612 = vset.pattern.permute.xlu0 0
  %1613 = vperm.xlu0 %1612, %v1082
  %v1614 = vpop.permute.xlu0 %1613
  %1617 = vset.pattern.permute.xlu0 0
  %1618 = vperm.xlu0 %1617, %v1083
  %v1619 = vpop.permute.xlu0 %1618
  %1622 = vset.pattern.permute.xlu0 0
  %1623 = vperm.xlu0 %1622, %v1084
  %v1624 = vpop.permute.xlu0 %1623
  %1627 = vset.pattern.permute.xlu0 0
  %1628 = vperm.xlu0 %1627, %v1085
  %v1629 = vpop.permute.xlu0 %1628
  %1631 = vmatpush.msra.mxu0 %v1345
  %1632 = vmatpush.msra.mxu0 %v1342
  %1633 = vmatpush.msra.mxu0 %v1313
  %1634 = vmatpush.msra.mxu0 %v1310
  %1635 = vmatpush.msra.mxu0 %v1281
  %1636 = vmatpush.msra.mxu0 %v1278
  %1637 = vmatpush.msra.mxu0 %v1249
  %1638 = vmatpush.msra.mxu0 %v1246
  %1639 = vmatpush.msra.mxu0 %v1217
  %1640 = vmatpush.msra.mxu0 %v1214
  %1641 = vmatpush.msra.mxu0 %v1185
  %1642 = vmatpush.msra.mxu0 %v1182
  %1643 = vmatpush.msra.mxu0 %v1153
  %1644 = vmatpush.msra.mxu0 %v1150
  %1645 = vmatpush.msra.mxu0 %v1121
  %1646 = vmatpush.msra.mxu0 %v1118
  %1647 = vmatmul.f32.gmra.mxu0 %v1603
  %v1648 = vpop.f32.mrf.mxu0
  %v1649 = vadd.f32 %v1614, %v1648
  %1650 = vmatmul.f32.gmra.mxu0 %v1605
  %v1651 = vpop.f32.mrf.mxu0
  %v1652 = vadd.f32 %v1619, %v1651
  %1653 = vmatmul.f32.gmra.mxu0 %v1607
  %v1654 = vpop.f32.mrf.mxu0
  %v1655 = vadd.f32 %v1624, %v1654
  %1656 = vmatmul.f32.gmra.mxu0 %v1609
  %v1657 = vpop.f32.mrf.mxu0
  %v1658 = vadd.f32 %v1629, %v1657
  %1659 = vdwg.mxu0
  %1660 = vmatpush.msra.mxu0 %v1601
  %1661 = vmatpush.msra.mxu0 %v1598
  %1662 = vmatpush.msra.mxu0 %v1569
  %1663 = vmatpush.msra.mxu0 %v1566
  %1664 = vmatpush.msra.mxu0 %v1537
  %1665 = vmatpush.msra.mxu0 %v1534
  %1666 = vmatpush.msra.mxu0 %v1505
  %1667 = vmatpush.msra.mxu0 %v1502
  %1668 = vmatpush.msra.mxu0 %v1473
  %1669 = vmatpush.msra.mxu0 %v1470
  %1670 = vmatpush.msra.mxu0 %v1441
  %1671 = vmatpush.msra.mxu0 %v1438
  %1672 = vmatpush.msra.mxu0 %v1409
  %1673 = vmatpush.msra.mxu0 %v1406
  %1674 = vmatpush.msra.mxu0 %v1377
  %1675 = vmatpush.msra.mxu0 %v1374
  %1676 = vmatmul.f32.gmra.mxu0 %v1604
  %v1677 = vpop.f32.mrf.mxu0
  %v1678 = vadd.f32 %v1649, %v1677
  %1679 = vmatmul.f32.gmra.mxu0 %v1606
  %v1680 = vpop.f32.mrf.mxu0
  %v1681 = vadd.f32 %v1652, %v1680
  %1682 = vmatmul.f32.gmra.mxu0 %v1608
  %v1683 = vpop.f32.mrf.mxu0
  %v1684 = vadd.f32 %v1655, %v1683
  %1685 = vmatmul.f32.gmra.mxu0 %v1610
  %v1686 = vpop.f32.mrf.mxu0
  %v1687 = vadd.f32 %v1658, %v1686
  %1688 = vdwg.mxu0
  %vm1689 = vcmp.gt.f32.partialorder %v1678, 0.0
  %vm1690 = vcmp.gt.f32.partialorder %v1681, 0.0
  %vm1691 = vcmp.gt.f32.partialorder %v1684, 0.0
  %vm1692 = vcmp.gt.f32.partialorder %v1687, 0.0
  %v1693 = vmul.f32 %v1678, 0.2
  %v1694 = vmul.f32 %v1681, 0.2
  %v1695 = vmul.f32 %v1684, 0.2
  %v1696 = vmul.f32 %v1687, 0.2
  %v1697 = vsel %vm1689, %v1678, %v1693
  %v1698 = vsel %vm1690, %v1681, %v1694
  %v1699 = vsel %vm1691, %v1684, %v1695
  %v1700 = vsel %vm1692, %v1687, %v1696
  %v1701 = vld [vmem:[%s9 + $0x68] sm:$0xff]
  %v1702 = vld [vmem:[%s9 + $0x70] sm:$0xff]
  %v1703 = vld [vmem:[%s9 + $0x78] sm:$0xff]
  %v1704 = vld [vmem:[%s9 + $0x80] sm:$0xff]
  %v1705 = vld [vmem:[%s9 + $0x88] sm:$0xff]
  %v1706 = vld [vmem:[%s9 + $0x90] sm:$0xff]
  %v1707 = vld [vmem:[%s9 + $0x98] sm:$0xff]
  %v1708 = vld [vmem:[%s9 + $0xa0] sm:$0xff]
  %vm1709 = vcmask 64512
  %v1710 = vsel %vm1709, %v1697, 0.0
  %1711 = vadd.xlane.f32.xlu0 %v1710
  %v1712 = vpop.xlane.xlu0 %1711
  %v1713 = vsel %vm1709, %v1698, 0.0
  %1714 = vadd.xlane.f32.xlu0 %v1713
  %v1715 = vpop.xlane.xlu0 %1714
  %v1716 = vsel %vm1709, %v1699, 0.0
  %1717 = vadd.xlane.f32.xlu0 %v1716
  %v1718 = vpop.xlane.xlu0 %1717
  %v1719 = vsel %vm1709, %v1700, 0.0
  %1720 = vadd.xlane.f32.xlu0 %v1719
  %v1721 = vpop.xlane.xlu0 %1720
  %v1722 = vrcp.pop 8.0
  %v1723 = vmul.f32 8.0, %v1722
  %v1724 = vsub.f32 1.0, %v1723
  %v1725 = vmul.f32 %v1722, %v1724
  %v1726 = vadd.f32 %v1722, %v1725
  %vm1727 = vweird.f32 %v1722
  %v1728 = vsel %vm1727, %v1722, %v1726
  %v1729 = vmul.f32 %v1712, %v1728
  %v1730 = vmul.f32 %v1715, %v1728
  %v1731 = vmul.f32 %v1718, %v1728
  %v1732 = vmul.f32 %v1721, %v1728
  %v1733 = vsub.f32 %v1697, %v1729
  %v1734 = vsub.f32 %v1698, %v1730
  %v1735 = vsub.f32 %v1699, %v1731
  %v1736 = vsub.f32 %v1700, %v1732
  %v1737 = vmul.f32 %v1733, %v1733
  %v1738 = vmul.f32 %v1734, %v1734
  %v1739 = vmul.f32 %v1735, %v1735
  %v1740 = vmul.f32 %v1736, %v1736
  %v1741 = vsel %vm1709, %v1737, 0.0
  %1742 = vadd.xlane.f32.xlu0 %v1741
  %v1743 = vpop.xlane.xlu0 %1742
  %v1744 = vsel %vm1709, %v1738, 0.0
  %1745 = vadd.xlane.f32.xlu0 %v1744
  %v1746 = vpop.xlane.xlu0 %1745
  %v1747 = vsel %vm1709, %v1739, 0.0
  %1748 = vadd.xlane.f32.xlu0 %v1747
  %v1749 = vpop.xlane.xlu0 %1748
  %v1750 = vsel %vm1709, %v1740, 0.0
  %1751 = vadd.xlane.f32.xlu0 %v1750
  %v1752 = vpop.xlane.xlu0 %1751
  %v1753 = vmul.f32 %v1743, %v1728
  %v1754 = vmul.f32 %v1746, %v1728
  %v1755 = vmul.f32 %v1749, %v1728
  %v1756 = vmul.f32 %v1752, %v1728
  %v1757 = vadd.f32 %v1753, 1e-05
  %v1758 = vadd.f32 %v1754, 1e-05
  %v1759 = vadd.f32 %v1755, 1e-05
  %v1760 = vadd.f32 %v1756, 1e-05
  %v1761 = vrsqrt.pop %v1757
  %v1762 = vmul.f32 %v1761, %v1757
  %v1763 = vmul.f32 %v1762, %v1761
  %v1764 = vmul.f32 0.5, %v1763
  %v1765 = vsub.f32 1.5, %v1764
  %v1766 = vmul.f32 %v1761, %v1765
  %vm1767 = vweird.f32 %v1757
  %vm1768 = vweird.f32 %v1761
  %vm1769 = vmor %vm1767, %vm1768
  %v1770 = vsel %vm1769, %v1761, %v1766
  %v1771 = vrsqrt.pop %v1758
  %v1772 = vmul.f32 %v1771, %v1758
  %v1773 = vmul.f32 %v1772, %v1771
  %v1774 = vmul.f32 0.5, %v1773
  %v1775 = vsub.f32 1.5, %v1774
  %v1776 = vmul.f32 %v1771, %v1775
  %vm1777 = vweird.f32 %v1758
  %vm1778 = vweird.f32 %v1771
  %vm1779 = vmor %vm1777, %vm1778
  %v1780 = vsel %vm1779, %v1771, %v1776
  %v1781 = vrsqrt.pop %v1759
  %v1782 = vmul.f32 %v1781, %v1759
  %v1783 = vmul.f32 %v1782, %v1781
  %v1784 = vmul.f32 0.5, %v1783
  %v1785 = vsub.f32 1.5, %v1784
  %v1786 = vmul.f32 %v1781, %v1785
  %vm1787 = vweird.f32 %v1759
  %vm1788 = vweird.f32 %v1781
  %vm1789 = vmor %vm1787, %vm1788
  %v1790 = vsel %vm1789, %v1781, %v1786
  %v1791 = vrsqrt.pop %v1760
  %v1792 = vmul.f32 %v1791, %v1760
  %v1793 = vmul.f32 %v1792, %v1791
  %v1794 = vmul.f32 0.5, %v1793
  %v1795 = vsub.f32 1.5, %v1794
  %v1796 = vmul.f32 %v1791, %v1795
  %vm1797 = vweird.f32 %v1760
  %vm1798 = vweird.f32 %v1791
  %vm1799 = vmor %vm1797, %vm1798
  %v1800 = vsel %vm1799, %v1791, %v1796
  %v1801 = vmul.f32 %v1733, %v1770
  %v1802 = vmul.f32 %v1734, %v1780
  %v1803 = vmul.f32 %v1735, %v1790
  %v1804 = vmul.f32 %v1736, %v1800
  %1806 = vset.pattern.permute.xlu0 0
  %1807 = vperm.xlu0 %1806, %v1701
  %v1808 = vpop.permute.xlu0 %1807
  %1811 = vset.pattern.permute.xlu0 0
  %1812 = vperm.xlu0 %1811, %v1702
  %v1813 = vpop.permute.xlu0 %1812
  %1816 = vset.pattern.permute.xlu0 0
  %1817 = vperm.xlu0 %1816, %v1703
  %v1818 = vpop.permute.xlu0 %1817
  %1821 = vset.pattern.permute.xlu0 0
  %1822 = vperm.xlu0 %1821, %v1704
  %v1823 = vpop.permute.xlu0 %1822
  %v1825 = vmul.f32 %v1801, %v1808
  %v1826 = vmul.f32 %v1802, %v1813
  %v1827 = vmul.f32 %v1803, %v1818
  %v1828 = vmul.f32 %v1804, %v1823
  %1830 = vset.pattern.permute.xlu0 0
  %1831 = vperm.xlu0 %1830, %v1705
  %v1832 = vpop.permute.xlu0 %1831
  %1835 = vset.pattern.permute.xlu0 0
  %1836 = vperm.xlu0 %1835, %v1706
  %v1837 = vpop.permute.xlu0 %1836
  %1840 = vset.pattern.permute.xlu0 0
  %1841 = vperm.xlu0 %1840, %v1707
  %v1842 = vpop.permute.xlu0 %1841
  %1845 = vset.pattern.permute.xlu0 0
  %1846 = vperm.xlu0 %1845, %v1708
  %v1847 = vpop.permute.xlu0 %1846
  %v1849 = vadd.f32 %v1825, %v1832
  %v1850 = vadd.f32 %v1826, %v1837
  %v1851 = vadd.f32 %v1827, %v1842
  %v1852 = vadd.f32 %v1828, %v1847
  %v1853 = vld [vmem:[%s9 + $0xa8] sm:$0xff]
  %v1854 = vld [vmem:[%s9 + $0xb0] sm:$0xff]
  %v1855 = vld [vmem:[%s9 + $0xb8] sm:$0xff]
  %v1856 = vld [vmem:[%s9 + $0xc0] sm:$0xff]
  %v1857 = vld [vmem:[%s9 + $0xc8] sm:$0xff]
  %v1858 = vld [vmem:[%s9 + $0xd0] sm:$0xff]
  %v1859 = vld [vmem:[%s9 + $0xd8] sm:$0xff]
  %v1860 = vld [vmem:[%s9 + $0xe0] sm:$0xff]
  %v1861 = vld [vmem:[%s6] sm:$0xf]
  %v1862 = vunpack.c.l.bf16 %v1861
  %v1864 = vsel %vm1709, %v1849, 0
  %v1867 = vsel %vm1709, %v1850, 0
  %v1870 = vsel %vm1709, %v1851, 0
  %v1873 = vsel %vm1709, %v1852, 0
  %1875 = vmatpush.msra.mxu0 0.0
  %1876 = vmatpush.msra.mxu0 0.0
  %1877 = vmatpush.msra.mxu0 0.0
  %1878 = vmatpush.msra.mxu0 0.0
  %1879 = vmatpush.msra.mxu0 0.0
  %1880 = vmatpush.msra.mxu0 0.0
  %1881 = vmatpush.msra.mxu0 0.0
  %1882 = vmatpush.msra.mxu0 0.0
  %1883 = vmatpush.msra.mxu0 0.0
  %1884 = vmatpush.msra.mxu0 0.0
  %1885 = vmatpush.msra.mxu0 0.0
  %1886 = vmatpush.msra.mxu0 0.0
  %1887 = vmatpush.msra.mxu0 0.0
  %1888 = vmatpush.msra.mxu0 0.0
  %1889 = vmatpush.msra.mxu0 0.0
  %1890 = vmatpush.msra.mxu0 %v1862
  %1891 = vmatmul.f32.gmra.mxu0 %v1864
  %v1892 = vpop.f32.mrf.mxu0
  %v1893 = vadd.f32 0.0, %v1892
  %1894 = vmatmul.f32.gmra.mxu0 %v1867
  %v1895 = vpop.f32.mrf.mxu0
  %v1896 = vadd.f32 0.0, %v1895
  %1897 = vmatmul.f32.gmra.mxu0 %v1870
  %v1898 = vpop.f32.mrf.mxu0
  %v1899 = vadd.f32 0.0, %v1898
  %1900 = vmatmul.f32.gmra.mxu0 %v1873
  %v1901 = vpop.f32.mrf.mxu0
  %v1902 = vadd.f32 0.0, %v1901
  %1903 = vdwg.mxu0
  %s1904 = scalar_lea.vmem %s6, 4
  %v1905 = vld [vmem:[%s1904] sm:$0xf]
  %v1906 = vunpack.c.l.bf16 %v1905
  %1907 = vmatpush.msra.mxu0 0.0
  %1908 = vmatpush.msra.mxu0 0.0
  %1909 = vmatpush.msra.mxu0 0.0
  %1910 = vmatpush.msra.mxu0 0.0
  %1911 = vmatpush.msra.mxu0 0.0
  %1912 = vmatpush.msra.mxu0 0.0
  %1913 = vmatpush.msra.mxu0 0.0
  %1914 = vmatpush.msra.mxu0 0.0
  %1915 = vmatpush.msra.mxu0 0.0
  %1916 = vmatpush.msra.mxu0 0.0
  %1917 = vmatpush.msra.mxu0 0.0
  %1918 = vmatpush.msra.mxu0 0.0
  %1919 = vmatpush.msra.mxu0 0.0
  %1920 = vmatpush.msra.mxu0 0.0
  %1921 = vmatpush.msra.mxu0 0.0
  %1922 = vmatpush.msra.mxu0 %v1906
  %1923 = vmatmul.f32.gmra.mxu0 %v1864
  %v1924 = vpop.f32.mrf.mxu0
  %v1925 = vadd.f32 0.0, %v1924
  %1926 = vmatmul.f32.gmra.mxu0 %v1867
  %v1927 = vpop.f32.mrf.mxu0
  %v1928 = vadd.f32 0.0, %v1927
  %1929 = vmatmul.f32.gmra.mxu0 %v1870
  %v1930 = vpop.f32.mrf.mxu0
  %v1931 = vadd.f32 0.0, %v1930
  %1932 = vmatmul.f32.gmra.mxu0 %v1873
  %v1933 = vpop.f32.mrf.mxu0
  %v1934 = vadd.f32 0.0, %v1933
  %1935 = vdwg.mxu0
  %s1936 = scalar_lea.vmem %s6, 8
  %v1937 = vld [vmem:[%s1936] sm:$0xf]
  %v1938 = vunpack.c.l.bf16 %v1937
  %1939 = vmatpush.msra.mxu0 0.0
  %1940 = vmatpush.msra.mxu0 0.0
  %1941 = vmatpush.msra.mxu0 0.0
  %1942 = vmatpush.msra.mxu0 0.0
  %1943 = vmatpush.msra.mxu0 0.0
  %1944 = vmatpush.msra.mxu0 0.0
  %1945 = vmatpush.msra.mxu0 0.0
  %1946 = vmatpush.msra.mxu0 0.0
  %1947 = vmatpush.msra.mxu0 0.0
  %1948 = vmatpush.msra.mxu0 0.0
  %1949 = vmatpush.msra.mxu0 0.0
  %1950 = vmatpush.msra.mxu0 0.0
  %1951 = vmatpush.msra.mxu0 0.0
  %1952 = vmatpush.msra.mxu0 0.0
  %1953 = vmatpush.msra.mxu0 0.0
  %1954 = vmatpush.msra.mxu0 %v1938
  %1955 = vmatmul.f32.gmra.mxu0 %v1864
  %v1956 = vpop.f32.mrf.mxu0
  %v1957 = vadd.f32 0.0, %v1956
  %1958 = vmatmul.f32.gmra.mxu0 %v1867
  %v1959 = vpop.f32.mrf.mxu0
  %v1960 = vadd.f32 0.0, %v1959
  %1961 = vmatmul.f32.gmra.mxu0 %v1870
  %v1962 = vpop.f32.mrf.mxu0
  %v1963 = vadd.f32 0.0, %v1962
  %1964 = vmatmul.f32.gmra.mxu0 %v1873
  %v1965 = vpop.f32.mrf.mxu0
  %v1966 = vadd.f32 0.0, %v1965
  %1967 = vdwg.mxu0
  %s1968 = scalar_lea.vmem %s6, 12
  %v1969 = vld [vmem:[%s1968] sm:$0xf]
  %v1970 = vunpack.c.l.bf16 %v1969
  %1971 = vmatpush.msra.mxu0 0.0
  %1972 = vmatpush.msra.mxu0 0.0
  %1973 = vmatpush.msra.mxu0 0.0
  %1974 = vmatpush.msra.mxu0 0.0
  %1975 = vmatpush.msra.mxu0 0.0
  %1976 = vmatpush.msra.mxu0 0.0
  %1977 = vmatpush.msra.mxu0 0.0
  %1978 = vmatpush.msra.mxu0 0.0
  %1979 = vmatpush.msra.mxu0 0.0
  %1980 = vmatpush.msra.mxu0 0.0
  %1981 = vmatpush.msra.mxu0 0.0
  %1982 = vmatpush.msra.mxu0 0.0
  %1983 = vmatpush.msra.mxu0 0.0
  %1984 = vmatpush.msra.mxu0 0.0
  %1985 = vmatpush.msra.mxu0 0.0
  %1986 = vmatpush.msra.mxu0 %v1970
  %1987 = vmatmul.f32.gmra.mxu0 %v1864
  %v1988 = vpop.f32.mrf.mxu0
  %v1989 = vadd.f32 0.0, %v1988
  %1990 = vmatmul.f32.gmra.mxu0 %v1867
  %v1991 = vpop.f32.mrf.mxu0
  %v1992 = vadd.f32 0.0, %v1991
  %1993 = vmatmul.f32.gmra.mxu0 %v1870
  %v1994 = vpop.f32.mrf.mxu0
  %v1995 = vadd.f32 0.0, %v1994
  %1996 = vmatmul.f32.gmra.mxu0 %v1873
  %v1997 = vpop.f32.mrf.mxu0
  %v1998 = vadd.f32 0.0, %v1997
  %1999 = vdwg.mxu0
  %s2000 = scalar_lea.vmem %s6, 16
  %v2001 = vld [vmem:[%s2000] sm:$0xf]
  %v2002 = vunpack.c.l.bf16 %v2001
  %2003 = vmatpush.msra.mxu0 0.0
  %2004 = vmatpush.msra.mxu0 0.0
  %2005 = vmatpush.msra.mxu0 0.0
  %2006 = vmatpush.msra.mxu0 0.0
  %2007 = vmatpush.msra.mxu0 0.0
  %2008 = vmatpush.msra.mxu0 0.0
  %2009 = vmatpush.msra.mxu0 0.0
  %2010 = vmatpush.msra.mxu0 0.0
  %2011 = vmatpush.msra.mxu0 0.0
  %2012 = vmatpush.msra.mxu0 0.0
  %2013 = vmatpush.msra.mxu0 0.0
  %2014 = vmatpush.msra.mxu0 0.0
  %2015 = vmatpush.msra.mxu0 0.0
  %2016 = vmatpush.msra.mxu0 0.0
  %2017 = vmatpush.msra.mxu0 0.0
  %2018 = vmatpush.msra.mxu0 %v2002
  %2019 = vmatmul.f32.gmra.mxu0 %v1864
  %v2020 = vpop.f32.mrf.mxu0
  %v2021 = vadd.f32 0.0, %v2020
  %2022 = vmatmul.f32.gmra.mxu0 %v1867
  %v2023 = vpop.f32.mrf.mxu0
  %v2024 = vadd.f32 0.0, %v2023
  %2025 = vmatmul.f32.gmra.mxu0 %v1870
  %v2026 = vpop.f32.mrf.mxu0
  %v2027 = vadd.f32 0.0, %v2026
  %2028 = vmatmul.f32.gmra.mxu0 %v1873
  %v2029 = vpop.f32.mrf.mxu0
  %v2030 = vadd.f32 0.0, %v2029
  %2031 = vdwg.mxu0
  %s2032 = scalar_lea.vmem %s6, 20
  %v2033 = vld [vmem:[%s2032] sm:$0xf]
  %v2034 = vunpack.c.l.bf16 %v2033
  %2035 = vmatpush.msra.mxu0 0.0
  %2036 = vmatpush.msra.mxu0 0.0
  %2037 = vmatpush.msra.mxu0 0.0
  %2038 = vmatpush.msra.mxu0 0.0
  %2039 = vmatpush.msra.mxu0 0.0
  %2040 = vmatpush.msra.mxu0 0.0
  %2041 = vmatpush.msra.mxu0 0.0
  %2042 = vmatpush.msra.mxu0 0.0
  %2043 = vmatpush.msra.mxu0 0.0
  %2044 = vmatpush.msra.mxu0 0.0
  %2045 = vmatpush.msra.mxu0 0.0
  %2046 = vmatpush.msra.mxu0 0.0
  %2047 = vmatpush.msra.mxu0 0.0
  %2048 = vmatpush.msra.mxu0 0.0
  %2049 = vmatpush.msra.mxu0 0.0
  %2050 = vmatpush.msra.mxu0 %v2034
  %2051 = vmatmul.f32.gmra.mxu0 %v1864
  %v2052 = vpop.f32.mrf.mxu0
  %v2053 = vadd.f32 0.0, %v2052
  %2054 = vmatmul.f32.gmra.mxu0 %v1867
  %v2055 = vpop.f32.mrf.mxu0
  %v2056 = vadd.f32 0.0, %v2055
  %2057 = vmatmul.f32.gmra.mxu0 %v1870
  %v2058 = vpop.f32.mrf.mxu0
  %v2059 = vadd.f32 0.0, %v2058
  %2060 = vmatmul.f32.gmra.mxu0 %v1873
  %v2061 = vpop.f32.mrf.mxu0
  %v2062 = vadd.f32 0.0, %v2061
  %2063 = vdwg.mxu0
  %s2064 = scalar_lea.vmem %s6, 24
  %v2065 = vld [vmem:[%s2064] sm:$0xf]
  %v2066 = vunpack.c.l.bf16 %v2065
  %2067 = vmatpush.msra.mxu0 0.0
  %2068 = vmatpush.msra.mxu0 0.0
  %2069 = vmatpush.msra.mxu0 0.0
  %2070 = vmatpush.msra.mxu0 0.0
  %2071 = vmatpush.msra.mxu0 0.0
  %2072 = vmatpush.msra.mxu0 0.0
  %2073 = vmatpush.msra.mxu0 0.0
  %2074 = vmatpush.msra.mxu0 0.0
  %2075 = vmatpush.msra.mxu0 0.0
  %2076 = vmatpush.msra.mxu0 0.0
  %2077 = vmatpush.msra.mxu0 0.0
  %2078 = vmatpush.msra.mxu0 0.0
  %2079 = vmatpush.msra.mxu0 0.0
  %2080 = vmatpush.msra.mxu0 0.0
  %2081 = vmatpush.msra.mxu0 0.0
  %2082 = vmatpush.msra.mxu0 %v2066
  %2083 = vmatmul.f32.gmra.mxu0 %v1864
  %v2084 = vpop.f32.mrf.mxu0
  %v2085 = vadd.f32 0.0, %v2084
  %2086 = vmatmul.f32.gmra.mxu0 %v1867
  %v2087 = vpop.f32.mrf.mxu0
  %v2088 = vadd.f32 0.0, %v2087
  %2089 = vmatmul.f32.gmra.mxu0 %v1870
  %v2090 = vpop.f32.mrf.mxu0
  %v2091 = vadd.f32 0.0, %v2090
  %2092 = vmatmul.f32.gmra.mxu0 %v1873
  %v2093 = vpop.f32.mrf.mxu0
  %v2094 = vadd.f32 0.0, %v2093
  %2095 = vdwg.mxu0
  %s2096 = scalar_lea.vmem %s6, 28
  %v2097 = vld [vmem:[%s2096] sm:$0xf]
  %v2098 = vunpack.c.l.bf16 %v2097
  %2099 = vmatpush.msra.mxu0 0.0
  %2100 = vmatpush.msra.mxu0 0.0
  %2101 = vmatpush.msra.mxu0 0.0
  %2102 = vmatpush.msra.mxu0 0.0
  %2103 = vmatpush.msra.mxu0 0.0
  %2104 = vmatpush.msra.mxu0 0.0
  %2105 = vmatpush.msra.mxu0 0.0
  %2106 = vmatpush.msra.mxu0 0.0
  %2107 = vmatpush.msra.mxu0 0.0
  %2108 = vmatpush.msra.mxu0 0.0
  %2109 = vmatpush.msra.mxu0 0.0
  %2110 = vmatpush.msra.mxu0 0.0
  %2111 = vmatpush.msra.mxu0 0.0
  %2112 = vmatpush.msra.mxu0 0.0
  %2113 = vmatpush.msra.mxu0 0.0
  %2114 = vmatpush.msra.mxu0 %v2098
  %2115 = vmatmul.f32.gmra.mxu0 %v1864
  %v2116 = vpop.f32.mrf.mxu0
  %v2117 = vadd.f32 0.0, %v2116
  %2118 = vmatmul.f32.gmra.mxu0 %v1867
  %v2119 = vpop.f32.mrf.mxu0
  %v2120 = vadd.f32 0.0, %v2119
  %2121 = vmatmul.f32.gmra.mxu0 %v1870
  %v2122 = vpop.f32.mrf.mxu0
  %v2123 = vadd.f32 0.0, %v2122
  %2124 = vmatmul.f32.gmra.mxu0 %v1873
  %v2125 = vpop.f32.mrf.mxu0
  %v2126 = vadd.f32 0.0, %v2125
  %2127 = vdwg.mxu0
  %s2128 = scalar_lea.vmem %s6, 32
  %v2129 = vld [vmem:[%s2128] sm:$0xf]
  %v2130 = vunpack.c.l.bf16 %v2129
  %2131 = vmatpush.msra.mxu0 0.0
  %2132 = vmatpush.msra.mxu0 0.0
  %2133 = vmatpush.msra.mxu0 0.0
  %2134 = vmatpush.msra.mxu0 0.0
  %2135 = vmatpush.msra.mxu0 0.0
  %2136 = vmatpush.msra.mxu0 0.0
  %2137 = vmatpush.msra.mxu0 0.0
  %2138 = vmatpush.msra.mxu0 0.0
  %2139 = vmatpush.msra.mxu0 0.0
  %2140 = vmatpush.msra.mxu0 0.0
  %2141 = vmatpush.msra.mxu0 0.0
  %2142 = vmatpush.msra.mxu0 0.0
  %2143 = vmatpush.msra.mxu0 0.0
  %2144 = vmatpush.msra.mxu0 0.0
  %2145 = vmatpush.msra.mxu0 0.0
  %2146 = vmatpush.msra.mxu0 %v2130
  %2147 = vmatmul.f32.gmra.mxu0 %v1864
  %v2148 = vpop.f32.mrf.mxu0
  %v2149 = vadd.f32 0.0, %v2148
  %2150 = vmatmul.f32.gmra.mxu0 %v1867
  %v2151 = vpop.f32.mrf.mxu0
  %v2152 = vadd.f32 0.0, %v2151
  %2153 = vmatmul.f32.gmra.mxu0 %v1870
  %v2154 = vpop.f32.mrf.mxu0
  %v2155 = vadd.f32 0.0, %v2154
  %2156 = vmatmul.f32.gmra.mxu0 %v1873
  %v2157 = vpop.f32.mrf.mxu0
  %v2158 = vadd.f32 0.0, %v2157
  %2159 = vdwg.mxu0
  %s2160 = scalar_lea.vmem %s6, 36
  %v2161 = vld [vmem:[%s2160] sm:$0xf]
  %v2162 = vunpack.c.l.bf16 %v2161
  %2163 = vmatpush.msra.mxu0 0.0
  %2164 = vmatpush.msra.mxu0 0.0
  %2165 = vmatpush.msra.mxu0 0.0
  %2166 = vmatpush.msra.mxu0 0.0
  %2167 = vmatpush.msra.mxu0 0.0
  %2168 = vmatpush.msra.mxu0 0.0
  %2169 = vmatpush.msra.mxu0 0.0
  %2170 = vmatpush.msra.mxu0 0.0
  %2171 = vmatpush.msra.mxu0 0.0
  %2172 = vmatpush.msra.mxu0 0.0
  %2173 = vmatpush.msra.mxu0 0.0
  %2174 = vmatpush.msra.mxu0 0.0
  %2175 = vmatpush.msra.mxu0 0.0
  %2176 = vmatpush.msra.mxu0 0.0
  %2177 = vmatpush.msra.mxu0 0.0
  %2178 = vmatpush.msra.mxu0 %v2162
  %2179 = vmatmul.f32.gmra.mxu0 %v1864
  %v2180 = vpop.f32.mrf.mxu0
  %v2181 = vadd.f32 0.0, %v2180
  %2182 = vmatmul.f32.gmra.mxu0 %v1867
  %v2183 = vpop.f32.mrf.mxu0
  %v2184 = vadd.f32 0.0, %v2183
  %2185 = vmatmul.f32.gmra.mxu0 %v1870
  %v2186 = vpop.f32.mrf.mxu0
  %v2187 = vadd.f32 0.0, %v2186
  %2188 = vmatmul.f32.gmra.mxu0 %v1873
  %v2189 = vpop.f32.mrf.mxu0
  %v2190 = vadd.f32 0.0, %v2189
  %2191 = vdwg.mxu0
  %s2192 = scalar_lea.vmem %s6, 40
  %v2193 = vld [vmem:[%s2192] sm:$0xf]
  %v2194 = vunpack.c.l.bf16 %v2193
  %2195 = vmatpush.msra.mxu0 0.0
  %2196 = vmatpush.msra.mxu0 0.0
  %2197 = vmatpush.msra.mxu0 0.0
  %2198 = vmatpush.msra.mxu0 0.0
  %2199 = vmatpush.msra.mxu0 0.0
  %2200 = vmatpush.msra.mxu0 0.0
  %2201 = vmatpush.msra.mxu0 0.0
  %2202 = vmatpush.msra.mxu0 0.0
  %2203 = vmatpush.msra.mxu0 0.0
  %2204 = vmatpush.msra.mxu0 0.0
  %2205 = vmatpush.msra.mxu0 0.0
  %2206 = vmatpush.msra.mxu0 0.0
  %2207 = vmatpush.msra.mxu0 0.0
  %2208 = vmatpush.msra.mxu0 0.0
  %2209 = vmatpush.msra.mxu0 0.0
  %2210 = vmatpush.msra.mxu0 %v2194
  %2211 = vmatmul.f32.gmra.mxu0 %v1864
  %v2212 = vpop.f32.mrf.mxu0
  %v2213 = vadd.f32 0.0, %v2212
  %2214 = vmatmul.f32.gmra.mxu0 %v1867
  %v2215 = vpop.f32.mrf.mxu0
  %v2216 = vadd.f32 0.0, %v2215
  %2217 = vmatmul.f32.gmra.mxu0 %v1870
  %v2218 = vpop.f32.mrf.mxu0
  %v2219 = vadd.f32 0.0, %v2218
  %2220 = vmatmul.f32.gmra.mxu0 %v1873
  %v2221 = vpop.f32.mrf.mxu0
  %v2222 = vadd.f32 0.0, %v2221
  %2223 = vdwg.mxu0
  %s2224 = scalar_lea.vmem %s6, 44
  %v2225 = vld [vmem:[%s2224] sm:$0xf]
  %v2226 = vunpack.c.l.bf16 %v2225
  %2227 = vmatpush.msra.mxu0 0.0
  %2228 = vmatpush.msra.mxu0 0.0
  %2229 = vmatpush.msra.mxu0 0.0
  %2230 = vmatpush.msra.mxu0 0.0
  %2231 = vmatpush.msra.mxu0 0.0
  %2232 = vmatpush.msra.mxu0 0.0
  %2233 = vmatpush.msra.mxu0 0.0
  %2234 = vmatpush.msra.mxu0 0.0
  %2235 = vmatpush.msra.mxu0 0.0
  %2236 = vmatpush.msra.mxu0 0.0
  %2237 = vmatpush.msra.mxu0 0.0
  %2238 = vmatpush.msra.mxu0 0.0
  %2239 = vmatpush.msra.mxu0 0.0
  %2240 = vmatpush.msra.mxu0 0.0
  %2241 = vmatpush.msra.mxu0 0.0
  %2242 = vmatpush.msra.mxu0 %v2226
  %2243 = vmatmul.f32.gmra.mxu0 %v1864
  %v2244 = vpop.f32.mrf.mxu0
  %v2245 = vadd.f32 0.0, %v2244
  %2246 = vmatmul.f32.gmra.mxu0 %v1867
  %v2247 = vpop.f32.mrf.mxu0
  %v2248 = vadd.f32 0.0, %v2247
  %2249 = vmatmul.f32.gmra.mxu0 %v1870
  %v2250 = vpop.f32.mrf.mxu0
  %v2251 = vadd.f32 0.0, %v2250
  %2252 = vmatmul.f32.gmra.mxu0 %v1873
  %v2253 = vpop.f32.mrf.mxu0
  %v2254 = vadd.f32 0.0, %v2253
  %2255 = vdwg.mxu0
  %s2256 = scalar_lea.vmem %s6, 48
  %v2257 = vld [vmem:[%s2256] sm:$0xf]
  %v2258 = vunpack.c.l.bf16 %v2257
  %2259 = vmatpush.msra.mxu0 0.0
  %2260 = vmatpush.msra.mxu0 0.0
  %2261 = vmatpush.msra.mxu0 0.0
  %2262 = vmatpush.msra.mxu0 0.0
  %2263 = vmatpush.msra.mxu0 0.0
  %2264 = vmatpush.msra.mxu0 0.0
  %2265 = vmatpush.msra.mxu0 0.0
  %2266 = vmatpush.msra.mxu0 0.0
  %2267 = vmatpush.msra.mxu0 0.0
  %2268 = vmatpush.msra.mxu0 0.0
  %2269 = vmatpush.msra.mxu0 0.0
  %2270 = vmatpush.msra.mxu0 0.0
  %2271 = vmatpush.msra.mxu0 0.0
  %2272 = vmatpush.msra.mxu0 0.0
  %2273 = vmatpush.msra.mxu0 0.0
  %2274 = vmatpush.msra.mxu0 %v2258
  %2275 = vmatmul.f32.gmra.mxu0 %v1864
  %v2276 = vpop.f32.mrf.mxu0
  %v2277 = vadd.f32 0.0, %v2276
  %2278 = vmatmul.f32.gmra.mxu0 %v1867
  %v2279 = vpop.f32.mrf.mxu0
  %v2280 = vadd.f32 0.0, %v2279
  %2281 = vmatmul.f32.gmra.mxu0 %v1870
  %v2282 = vpop.f32.mrf.mxu0
  %v2283 = vadd.f32 0.0, %v2282
  %2284 = vmatmul.f32.gmra.mxu0 %v1873
  %v2285 = vpop.f32.mrf.mxu0
  %v2286 = vadd.f32 0.0, %v2285
  %2287 = vdwg.mxu0
  %s2288 = scalar_lea.vmem %s6, 52
  %v2289 = vld [vmem:[%s2288] sm:$0xf]
  %v2290 = vunpack.c.l.bf16 %v2289
  %2291 = vmatpush.msra.mxu0 0.0
  %2292 = vmatpush.msra.mxu0 0.0
  %2293 = vmatpush.msra.mxu0 0.0
  %2294 = vmatpush.msra.mxu0 0.0
  %2295 = vmatpush.msra.mxu0 0.0
  %2296 = vmatpush.msra.mxu0 0.0
  %2297 = vmatpush.msra.mxu0 0.0
  %2298 = vmatpush.msra.mxu0 0.0
  %2299 = vmatpush.msra.mxu0 0.0
  %2300 = vmatpush.msra.mxu0 0.0
  %2301 = vmatpush.msra.mxu0 0.0
  %2302 = vmatpush.msra.mxu0 0.0
  %2303 = vmatpush.msra.mxu0 0.0
  %2304 = vmatpush.msra.mxu0 0.0
  %2305 = vmatpush.msra.mxu0 0.0
  %2306 = vmatpush.msra.mxu0 %v2290
  %2307 = vmatmul.f32.gmra.mxu0 %v1864
  %v2308 = vpop.f32.mrf.mxu0
  %v2309 = vadd.f32 0.0, %v2308
  %2310 = vmatmul.f32.gmra.mxu0 %v1867
  %v2311 = vpop.f32.mrf.mxu0
  %v2312 = vadd.f32 0.0, %v2311
  %2313 = vmatmul.f32.gmra.mxu0 %v1870
  %v2314 = vpop.f32.mrf.mxu0
  %v2315 = vadd.f32 0.0, %v2314
  %2316 = vmatmul.f32.gmra.mxu0 %v1873
  %v2317 = vpop.f32.mrf.mxu0
  %v2318 = vadd.f32 0.0, %v2317
  %2319 = vdwg.mxu0
  %s2320 = scalar_lea.vmem %s6, 56
  %v2321 = vld [vmem:[%s2320] sm:$0xf]
  %v2322 = vunpack.c.l.bf16 %v2321
  %2323 = vmatpush.msra.mxu0 0.0
  %2324 = vmatpush.msra.mxu0 0.0
  %2325 = vmatpush.msra.mxu0 0.0
  %2326 = vmatpush.msra.mxu0 0.0
  %2327 = vmatpush.msra.mxu0 0.0
  %2328 = vmatpush.msra.mxu0 0.0
  %2329 = vmatpush.msra.mxu0 0.0
  %2330 = vmatpush.msra.mxu0 0.0
  %2331 = vmatpush.msra.mxu0 0.0
  %2332 = vmatpush.msra.mxu0 0.0
  %2333 = vmatpush.msra.mxu0 0.0
  %2334 = vmatpush.msra.mxu0 0.0
  %2335 = vmatpush.msra.mxu0 0.0
  %2336 = vmatpush.msra.mxu0 0.0
  %2337 = vmatpush.msra.mxu0 0.0
  %2338 = vmatpush.msra.mxu0 %v2322
  %2339 = vmatmul.f32.gmra.mxu0 %v1864
  %v2340 = vpop.f32.mrf.mxu0
  %v2341 = vadd.f32 0.0, %v2340
  %2342 = vmatmul.f32.gmra.mxu0 %v1867
  %v2343 = vpop.f32.mrf.mxu0
  %v2344 = vadd.f32 0.0, %v2343
  %2345 = vmatmul.f32.gmra.mxu0 %v1870
  %v2346 = vpop.f32.mrf.mxu0
  %v2347 = vadd.f32 0.0, %v2346
  %2348 = vmatmul.f32.gmra.mxu0 %v1873
  %v2349 = vpop.f32.mrf.mxu0
  %v2350 = vadd.f32 0.0, %v2349
  %2351 = vdwg.mxu0
  %s2352 = scalar_lea.vmem %s6, 60
  %v2353 = vld [vmem:[%s2352] sm:$0xf]
  %v2354 = vunpack.c.l.bf16 %v2353
  %2355 = vmatpush.msra.mxu0 0.0
  %2356 = vmatpush.msra.mxu0 0.0
  %2357 = vmatpush.msra.mxu0 0.0
  %2358 = vmatpush.msra.mxu0 0.0
  %2359 = vmatpush.msra.mxu0 0.0
  %2360 = vmatpush.msra.mxu0 0.0
  %2361 = vmatpush.msra.mxu0 0.0
  %2362 = vmatpush.msra.mxu0 0.0
  %2363 = vmatpush.msra.mxu0 0.0
  %2364 = vmatpush.msra.mxu0 0.0
  %2365 = vmatpush.msra.mxu0 0.0
  %2366 = vmatpush.msra.mxu0 0.0
  %2367 = vmatpush.msra.mxu0 0.0
  %2368 = vmatpush.msra.mxu0 0.0
  %2369 = vmatpush.msra.mxu0 0.0
  %2370 = vmatpush.msra.mxu0 %v2354
  %2371 = vmatmul.f32.gmra.mxu0 %v1864
  %v2372 = vpop.f32.mrf.mxu0
  %v2373 = vadd.f32 0.0, %v2372
  %2374 = vmatmul.f32.gmra.mxu0 %v1867
  %v2375 = vpop.f32.mrf.mxu0
  %v2376 = vadd.f32 0.0, %v2375
  %2377 = vmatmul.f32.gmra.mxu0 %v1870
  %v2378 = vpop.f32.mrf.mxu0
  %v2379 = vadd.f32 0.0, %v2378
  %2380 = vmatmul.f32.gmra.mxu0 %v1873
  %v2381 = vpop.f32.mrf.mxu0
  %v2382 = vadd.f32 0.0, %v2381
  %2383 = vdwg.mxu0
  %v2384 = vld [vmem:[%s7] sm:$0xff]
  %v2385 = vld [vmem:[%s7 + $0x8] sm:$0xff]
  %v2386 = vld [vmem:[%s7 + $0x10] sm:$0xff]
  %v2387 = vld [vmem:[%s7 + $0x18] sm:$0xff]
  %v2388 = vld [vmem:[%s7 + $0x20] sm:$0xff]
  %v2389 = vld [vmem:[%s7 + $0x28] sm:$0xff]
  %v2390 = vld [vmem:[%s7 + $0x30] sm:$0xff]
  %v2391 = vld [vmem:[%s7 + $0x38] sm:$0xff]
  %v2392 = vld [vmem:[%s7 + $0x40] sm:$0xff]
  %v2393 = vld [vmem:[%s7 + $0x48] sm:$0xff]
  %v2394 = vld [vmem:[%s7 + $0x50] sm:$0xff]
  %v2395 = vld [vmem:[%s7 + $0x58] sm:$0xff]
  %v2396 = vld [vmem:[%s7 + $0x60] sm:$0xff]
  %v2397 = vld [vmem:[%s7 + $0x68] sm:$0xff]
  %v2398 = vld [vmem:[%s7 + $0x70] sm:$0xff]
  %v2399 = vld [vmem:[%s7 + $0x78] sm:$0xff]
  %v2400 = vld [vmem:[%s7 + $0x80] sm:$0xff]
  %v2401 = vld [vmem:[%s7 + $0x88] sm:$0xff]
  %v2402 = vld [vmem:[%s7 + $0x90] sm:$0xff]
  %v2403 = vld [vmem:[%s7 + $0x98] sm:$0xff]
  %v2404 = vld [vmem:[%s7 + $0xa0] sm:$0xff]
  %v2405 = vld [vmem:[%s7 + $0xa8] sm:$0xff]
  %v2406 = vld [vmem:[%s7 + $0xb0] sm:$0xff]
  %v2407 = vld [vmem:[%s7 + $0xb8] sm:$0xff]
  %v2408 = vld [vmem:[%s7 + $0xc0] sm:$0xff]
  %v2409 = vld [vmem:[%s7 + $0xc8] sm:$0xff]
  %v2410 = vld [vmem:[%s7 + $0xd0] sm:$0xff]
  %v2411 = vld [vmem:[%s7 + $0xd8] sm:$0xff]
  %v2412 = vld [vmem:[%s7 + $0xe0] sm:$0xff]
  %v2413 = vld [vmem:[%s7 + $0xe8] sm:$0xff]
  %v2414 = vld [vmem:[%s7 + $0xf0] sm:$0xff]
  %v2415 = vld [vmem:[%s7 + $0xf8] sm:$0xff]
  %2417 = vset.pattern.permute.xlu0 0
  %2418 = vperm.xlu0 %2417, %v1853
  %v2419 = vpop.permute.xlu0 %2418
  %2422 = vset.pattern.permute.xlu0 0
  %2423 = vperm.xlu0 %2422, %v1854
  %v2424 = vpop.permute.xlu0 %2423
  %2427 = vset.pattern.permute.xlu0 0
  %2428 = vperm.xlu0 %2427, %v1855
  %v2429 = vpop.permute.xlu0 %2428
  %2432 = vset.pattern.permute.xlu0 0
  %2433 = vperm.xlu0 %2432, %v1856
  %v2434 = vpop.permute.xlu0 %2433
  %2437 = vset.pattern.permute.xlu0 0
  %2438 = vperm.xlu0 %2437, %v1857
  %v2439 = vpop.permute.xlu0 %2438
  %2442 = vset.pattern.permute.xlu0 0
  %2443 = vperm.xlu0 %2442, %v1858
  %v2444 = vpop.permute.xlu0 %2443
  %2447 = vset.pattern.permute.xlu0 0
  %2448 = vperm.xlu0 %2447, %v1859
  %v2449 = vpop.permute.xlu0 %2448
  %2452 = vset.pattern.permute.xlu0 0
  %2453 = vperm.xlu0 %2452, %v1860
  %v2454 = vpop.permute.xlu0 %2453
  %2456 = vmatpush.msra.mxu0 %v1998
  %2457 = vmatpush.msra.mxu0 %v1995
  %2458 = vmatpush.msra.mxu0 %v1992
  %2459 = vmatpush.msra.mxu0 %v1989
  %2460 = vmatpush.msra.mxu0 %v1966
  %2461 = vmatpush.msra.mxu0 %v1963
  %2462 = vmatpush.msra.mxu0 %v1960
  %2463 = vmatpush.msra.mxu0 %v1957
  %2464 = vmatpush.msra.mxu0 %v1934
  %2465 = vmatpush.msra.mxu0 %v1931
  %2466 = vmatpush.msra.mxu0 %v1928
  %2467 = vmatpush.msra.mxu0 %v1925
  %2468 = vmatpush.msra.mxu0 %v1902
  %2469 = vmatpush.msra.mxu0 %v1899
  %2470 = vmatpush.msra.mxu0 %v1896
  %2471 = vmatpush.msra.mxu0 %v1893
  %2472 = vmatmul.f32.gmra.mxu0 %v2384
  %v2473 = vpop.f32.mrf.mxu0
  %v2474 = vadd.f32 %v2419, %v2473
  %2475 = vmatmul.f32.gmra.mxu0 %v2388
  %v2476 = vpop.f32.mrf.mxu0
  %v2477 = vadd.f32 %v2424, %v2476
  %2478 = vmatmul.f32.gmra.mxu0 %v2392
  %v2479 = vpop.f32.mrf.mxu0
  %v2480 = vadd.f32 %v2429, %v2479
  %2481 = vmatmul.f32.gmra.mxu0 %v2396
  %v2482 = vpop.f32.mrf.mxu0
  %v2483 = vadd.f32 %v2434, %v2482
  %2484 = vmatmul.f32.gmra.mxu0 %v2400
  %v2485 = vpop.f32.mrf.mxu0
  %v2486 = vadd.f32 %v2439, %v2485
  %2487 = vmatmul.f32.gmra.mxu0 %v2404
  %v2488 = vpop.f32.mrf.mxu0
  %v2489 = vadd.f32 %v2444, %v2488
  %2490 = vmatmul.f32.gmra.mxu0 %v2408
  %v2491 = vpop.f32.mrf.mxu0
  %v2492 = vadd.f32 %v2449, %v2491
  %2493 = vmatmul.f32.gmra.mxu0 %v2412
  %v2494 = vpop.f32.mrf.mxu0
  %v2495 = vadd.f32 %v2454, %v2494
  %2496 = vdwg.mxu0
  %2497 = vmatpush.msra.mxu0 %v2126
  %2498 = vmatpush.msra.mxu0 %v2123
  %2499 = vmatpush.msra.mxu0 %v2120
  %2500 = vmatpush.msra.mxu0 %v2117
  %2501 = vmatpush.msra.mxu0 %v2094
  %2502 = vmatpush.msra.mxu0 %v2091
  %2503 = vmatpush.msra.mxu0 %v2088
  %2504 = vmatpush.msra.mxu0 %v2085
  %2505 = vmatpush.msra.mxu0 %v2062
  %2506 = vmatpush.msra.mxu0 %v2059
  %2507 = vmatpush.msra.mxu0 %v2056
  %2508 = vmatpush.msra.mxu0 %v2053
  %2509 = vmatpush.msra.mxu0 %v2030
  %2510 = vmatpush.msra.mxu0 %v2027
  %2511 = vmatpush.msra.mxu0 %v2024
  %2512 = vmatpush.msra.mxu0 %v2021
  %2513 = vmatmul.f32.gmra.mxu0 %v2385
  %v2514 = vpop.f32.mrf.mxu0
  %v2515 = vadd.f32 %v2474, %v2514
  %2516 = vmatmul.f32.gmra.mxu0 %v2389
  %v2517 = vpop.f32.mrf.mxu0
  %v2518 = vadd.f32 %v2477, %v2517
  %2519 = vmatmul.f32.gmra.mxu0 %v2393
  %v2520 = vpop.f32.mrf.mxu0
  %v2521 = vadd.f32 %v2480, %v2520
  %2522 = vmatmul.f32.gmra.mxu0 %v2397
  %v2523 = vpop.f32.mrf.mxu0
  %v2524 = vadd.f32 %v2483, %v2523
  %2525 = vmatmul.f32.gmra.mxu0 %v2401
  %v2526 = vpop.f32.mrf.mxu0
  %v2527 = vadd.f32 %v2486, %v2526
  %2528 = vmatmul.f32.gmra.mxu0 %v2405
  %v2529 = vpop.f32.mrf.mxu0
  %v2530 = vadd.f32 %v2489, %v2529
  %2531 = vmatmul.f32.gmra.mxu0 %v2409
  %v2532 = vpop.f32.mrf.mxu0
  %v2533 = vadd.f32 %v2492, %v2532
  %2534 = vmatmul.f32.gmra.mxu0 %v2413
  %v2535 = vpop.f32.mrf.mxu0
  %v2536 = vadd.f32 %v2495, %v2535
  %2537 = vdwg.mxu0
  %2538 = vmatpush.msra.mxu0 %v2254
  %2539 = vmatpush.msra.mxu0 %v2251
  %2540 = vmatpush.msra.mxu0 %v2248
  %2541 = vmatpush.msra.mxu0 %v2245
  %2542 = vmatpush.msra.mxu0 %v2222
  %2543 = vmatpush.msra.mxu0 %v2219
  %2544 = vmatpush.msra.mxu0 %v2216
  %2545 = vmatpush.msra.mxu0 %v2213
  %2546 = vmatpush.msra.mxu0 %v2190
  %2547 = vmatpush.msra.mxu0 %v2187
  %2548 = vmatpush.msra.mxu0 %v2184
  %2549 = vmatpush.msra.mxu0 %v2181
  %2550 = vmatpush.msra.mxu0 %v2158
  %2551 = vmatpush.msra.mxu0 %v2155
  %2552 = vmatpush.msra.mxu0 %v2152
  %2553 = vmatpush.msra.mxu0 %v2149
  %2554 = vmatmul.f32.gmra.mxu0 %v2386
  %v2555 = vpop.f32.mrf.mxu0
  %v2556 = vadd.f32 %v2515, %v2555
  %2557 = vmatmul.f32.gmra.mxu0 %v2390
  %v2558 = vpop.f32.mrf.mxu0
  %v2559 = vadd.f32 %v2518, %v2558
  %2560 = vmatmul.f32.gmra.mxu0 %v2394
  %v2561 = vpop.f32.mrf.mxu0
  %v2562 = vadd.f32 %v2521, %v2561
  %2563 = vmatmul.f32.gmra.mxu0 %v2398
  %v2564 = vpop.f32.mrf.mxu0
  %v2565 = vadd.f32 %v2524, %v2564
  %2566 = vmatmul.f32.gmra.mxu0 %v2402
  %v2567 = vpop.f32.mrf.mxu0
  %v2568 = vadd.f32 %v2527, %v2567
  %2569 = vmatmul.f32.gmra.mxu0 %v2406
  %v2570 = vpop.f32.mrf.mxu0
  %v2571 = vadd.f32 %v2530, %v2570
  %2572 = vmatmul.f32.gmra.mxu0 %v2410
  %v2573 = vpop.f32.mrf.mxu0
  %v2574 = vadd.f32 %v2533, %v2573
  %2575 = vmatmul.f32.gmra.mxu0 %v2414
  %v2576 = vpop.f32.mrf.mxu0
  %v2577 = vadd.f32 %v2536, %v2576
  %2578 = vdwg.mxu0
  %2579 = vmatpush.msra.mxu0 %v2382
  %2580 = vmatpush.msra.mxu0 %v2379
  %2581 = vmatpush.msra.mxu0 %v2376
  %2582 = vmatpush.msra.mxu0 %v2373
  %2583 = vmatpush.msra.mxu0 %v2350
  %2584 = vmatpush.msra.mxu0 %v2347
  %2585 = vmatpush.msra.mxu0 %v2344
  %2586 = vmatpush.msra.mxu0 %v2341
  %2587 = vmatpush.msra.mxu0 %v2318
  %2588 = vmatpush.msra.mxu0 %v2315
  %2589 = vmatpush.msra.mxu0 %v2312
  %2590 = vmatpush.msra.mxu0 %v2309
  %2591 = vmatpush.msra.mxu0 %v2286
  %2592 = vmatpush.msra.mxu0 %v2283
  %2593 = vmatpush.msra.mxu0 %v2280
  %2594 = vmatpush.msra.mxu0 %v2277
  %2595 = vmatmul.f32.gmra.mxu0 %v2387
  %v2596 = vpop.f32.mrf.mxu0
  %v2597 = vadd.f32 %v2556, %v2596
  %2598 = vmatmul.f32.gmra.mxu0 %v2391
  %v2599 = vpop.f32.mrf.mxu0
  %v2600 = vadd.f32 %v2559, %v2599
  %2601 = vmatmul.f32.gmra.mxu0 %v2395
  %v2602 = vpop.f32.mrf.mxu0
  %v2603 = vadd.f32 %v2562, %v2602
  %2604 = vmatmul.f32.gmra.mxu0 %v2399
  %v2605 = vpop.f32.mrf.mxu0
  %v2606 = vadd.f32 %v2565, %v2605
  %2607 = vmatmul.f32.gmra.mxu0 %v2403
  %v2608 = vpop.f32.mrf.mxu0
  %v2609 = vadd.f32 %v2568, %v2608
  %2610 = vmatmul.f32.gmra.mxu0 %v2407
  %v2611 = vpop.f32.mrf.mxu0
  %v2612 = vadd.f32 %v2571, %v2611
  %2613 = vmatmul.f32.gmra.mxu0 %v2411
  %v2614 = vpop.f32.mrf.mxu0
  %v2615 = vadd.f32 %v2574, %v2614
  %2616 = vmatmul.f32.gmra.mxu0 %v2415
  %v2617 = vpop.f32.mrf.mxu0
  %v2618 = vadd.f32 %v2577, %v2617
  %2619 = vdwg.mxu0
  %v2620 = vsub.f32 0.0, %v2597
  %v2621 = vsub.f32 0.0, %v2600
  %v2622 = vsub.f32 0.0, %v2603
  %v2623 = vsub.f32 0.0, %v2606
  %v2624 = vsub.f32 0.0, %v2609
  %v2625 = vsub.f32 0.0, %v2612
  %v2626 = vsub.f32 0.0, %v2615
  %v2627 = vsub.f32 0.0, %v2618
  %v2628 = vmul.f32 %v2620, 1.442695
  %v2629 = vpow.pop %v2628
  %v2630 = vmul.f32 %v2621, 1.442695
  %v2631 = vpow.pop %v2630
  %v2632 = vmul.f32 %v2622, 1.442695
  %v2633 = vpow.pop %v2632
  %v2634 = vmul.f32 %v2623, 1.442695
  %v2635 = vpow.pop %v2634
  %v2636 = vmul.f32 %v2624, 1.442695
  %v2637 = vpow.pop %v2636
  %v2638 = vmul.f32 %v2625, 1.442695
  %v2639 = vpow.pop %v2638
  %v2640 = vmul.f32 %v2626, 1.442695
  %v2641 = vpow.pop %v2640
  %v2642 = vmul.f32 %v2627, 1.442695
  %v2643 = vpow.pop %v2642
  %v2644 = vadd.f32 %v2629, 1.0
  %v2645 = vadd.f32 %v2631, 1.0
  %v2646 = vadd.f32 %v2633, 1.0
  %v2647 = vadd.f32 %v2635, 1.0
  %v2648 = vadd.f32 %v2637, 1.0
  %v2649 = vadd.f32 %v2639, 1.0
  %v2650 = vadd.f32 %v2641, 1.0
  %v2651 = vadd.f32 %v2643, 1.0
  %v2652 = vrcp.pop %v2644
  %v2653 = vmul.f32 %v2644, %v2652
  %v2654 = vsub.f32 1.0, %v2653
  %v2655 = vmul.f32 %v2652, %v2654
  %v2656 = vadd.f32 %v2652, %v2655
  %vm2657 = vweird.f32 %v2644
  %vm2658 = vweird.f32 %v2652
  %vm2659 = vmor %vm2657, %vm2658
  %v2660 = vsel %vm2659, %v2652, %v2656
  %v2661 = vand.u32 2147483647, %v2644
  %vm2662 = vcmp.eq.f32.partialorder %v2661, 8.507059e+37
  %v2663 = vand.u32 %v2644, 2147483648
  %v2664 = vor.u32 1.1754944e-38, %v2663
  %v2665 = vsel %vm2662, %v2664, %v2660
  %v2666 = vrcp.pop %v2645
  %v2667 = vmul.f32 %v2645, %v2666
  %v2668 = vsub.f32 1.0, %v2667
  %v2669 = vmul.f32 %v2666, %v2668
  %v2670 = vadd.f32 %v2666, %v2669
  %vm2671 = vweird.f32 %v2645
  %vm2672 = vweird.f32 %v2666
  %vm2673 = vmor %vm2671, %vm2672
  %v2674 = vsel %vm2673, %v2666, %v2670
  %v2675 = vand.u32 2147483647, %v2645
  %vm2676 = vcmp.eq.f32.partialorder %v2675, 8.507059e+37
  %v2677 = vand.u32 %v2645, 2147483648
  %v2678 = vor.u32 1.1754944e-38, %v2677
  %v2679 = vsel %vm2676, %v2678, %v2674
  %v2680 = vrcp.pop %v2646
  %v2681 = vmul.f32 %v2646, %v2680
  %v2682 = vsub.f32 1.0, %v2681
  %v2683 = vmul.f32 %v2680, %v2682
  %v2684 = vadd.f32 %v2680, %v2683
  %vm2685 = vweird.f32 %v2646
  %vm2686 = vweird.f32 %v2680
  %vm2687 = vmor %vm2685, %vm2686
  %v2688 = vsel %vm2687, %v2680, %v2684
  %v2689 = vand.u32 2147483647, %v2646
  %vm2690 = vcmp.eq.f32.partialorder %v2689, 8.507059e+37
  %v2691 = vand.u32 %v2646, 2147483648
  %v2692 = vor.u32 1.1754944e-38, %v2691
  %v2693 = vsel %vm2690, %v2692, %v2688
  %v2694 = vrcp.pop %v2647
  %v2695 = vmul.f32 %v2647, %v2694
  %v2696 = vsub.f32 1.0, %v2695
  %v2697 = vmul.f32 %v2694, %v2696
  %v2698 = vadd.f32 %v2694, %v2697
  %vm2699 = vweird.f32 %v2647
  %vm2700 = vweird.f32 %v2694
  %vm2701 = vmor %vm2699, %vm2700
  %v2702 = vsel %vm2701, %v2694, %v2698
  %v2703 = vand.u32 2147483647, %v2647
  %vm2704 = vcmp.eq.f32.partialorder %v2703, 8.507059e+37
  %v2705 = vand.u32 %v2647, 2147483648
  %v2706 = vor.u32 1.1754944e-38, %v2705
  %v2707 = vsel %vm2704, %v2706, %v2702
  %v2708 = vrcp.pop %v2648
  %v2709 = vmul.f32 %v2648, %v2708
  %v2710 = vsub.f32 1.0, %v2709
  %v2711 = vmul.f32 %v2708, %v2710
  %v2712 = vadd.f32 %v2708, %v2711
  %vm2713 = vweird.f32 %v2648
  %vm2714 = vweird.f32 %v2708
  %vm2715 = vmor %vm2713, %vm2714
  %v2716 = vsel %vm2715, %v2708, %v2712
  %v2717 = vand.u32 2147483647, %v2648
  %vm2718 = vcmp.eq.f32.partialorder %v2717, 8.507059e+37
  %v2719 = vand.u32 %v2648, 2147483648
  %v2720 = vor.u32 1.1754944e-38, %v2719
  %v2721 = vsel %vm2718, %v2720, %v2716
  %v2722 = vrcp.pop %v2649
  %v2723 = vmul.f32 %v2649, %v2722
  %v2724 = vsub.f32 1.0, %v2723
  %v2725 = vmul.f32 %v2722, %v2724
  %v2726 = vadd.f32 %v2722, %v2725
  %vm2727 = vweird.f32 %v2649
  %vm2728 = vweird.f32 %v2722
  %vm2729 = vmor %vm2727, %vm2728
  %v2730 = vsel %vm2729, %v2722, %v2726
  %v2731 = vand.u32 2147483647, %v2649
  %vm2732 = vcmp.eq.f32.partialorder %v2731, 8.507059e+37
  %v2733 = vand.u32 %v2649, 2147483648
  %v2734 = vor.u32 1.1754944e-38, %v2733
  %v2735 = vsel %vm2732, %v2734, %v2730
  %v2736 = vrcp.pop %v2650
  %v2737 = vmul.f32 %v2650, %v2736
  %v2738 = vsub.f32 1.0, %v2737
  %v2739 = vmul.f32 %v2736, %v2738
  %v2740 = vadd.f32 %v2736, %v2739
  %vm2741 = vweird.f32 %v2650
  %vm2742 = vweird.f32 %v2736
  %vm2743 = vmor %vm2741, %vm2742
  %v2744 = vsel %vm2743, %v2736, %v2740
  %v2745 = vand.u32 2147483647, %v2650
  %vm2746 = vcmp.eq.f32.partialorder %v2745, 8.507059e+37
  %v2747 = vand.u32 %v2650, 2147483648
  %v2748 = vor.u32 1.1754944e-38, %v2747
  %v2749 = vsel %vm2746, %v2748, %v2744
  %v2750 = vrcp.pop %v2651
  %v2751 = vmul.f32 %v2651, %v2750
  %v2752 = vsub.f32 1.0, %v2751
  %v2753 = vmul.f32 %v2750, %v2752
  %v2754 = vadd.f32 %v2750, %v2753
  %vm2755 = vweird.f32 %v2651
  %vm2756 = vweird.f32 %v2750
  %vm2757 = vmor %vm2755, %vm2756
  %v2758 = vsel %vm2757, %v2750, %v2754
  %v2759 = vand.u32 2147483647, %v2651
  %vm2760 = vcmp.eq.f32.partialorder %v2759, 8.507059e+37
  %v2761 = vand.u32 %v2651, 2147483648
  %v2762 = vor.u32 1.1754944e-38, %v2761
  %v2763 = vsel %vm2760, %v2762, %v2758
  %v2764 = vld [vmem:[%s8] sm:$0xff]
  %v2765 = vld [vmem:[%s9 + $0xe8] sm:$0xff]
  %2767 = vset.pattern.permute.xlu0 0
  %2768 = vperm.xlu0 %2767, %v2765
  %v2769 = vpop.permute.xlu0 %2768
  %vm2771 = vcmask 523264
  %v2773 = vsel %vm2771, %v2764, 0
  %2775 = vmatpush.msra.mxu0 0.0
  %2776 = vmatpush.msra.mxu0 0.0
  %2777 = vmatpush.msra.mxu0 0.0
  %2778 = vmatpush.msra.mxu0 0.0
  %2779 = vmatpush.msra.mxu0 0.0
  %2780 = vmatpush.msra.mxu0 0.0
  %2781 = vmatpush.msra.mxu0 0.0
  %2782 = vmatpush.msra.mxu0 0.0
  %2783 = vmatpush.msra.mxu0 %v2763
  %2784 = vmatpush.msra.mxu0 %v2749
  %2785 = vmatpush.msra.mxu0 %v2735
  %2786 = vmatpush.msra.mxu0 %v2721
  %2787 = vmatpush.msra.mxu0 %v2707
  %2788 = vmatpush.msra.mxu0 %v2693
  %2789 = vmatpush.msra.mxu0 %v2679
  %2790 = vmatpush.msra.mxu0 %v2665
  %2791 = vmatmul.f32.gmra.mxu0 %v2773
  %v2792 = vpop.f32.mrf.mxu0
  %v2793 = vadd.f32 %v2769, %v2792
  %2794 = vdwg.mxu0
  %v2795 = vtanh.pop %v2793
  %vm2796 = vcmask 15360
  %2797 = vst.msk [vmem:[%s10] sm:$0xff] %vm2796, %v2795
  // Predicated region
  $region42: #{encoder_forward.1} parent=0 // pred_check
    _
  $region43: #{encoder_forward.1} parent=0 // pred_check_branch
    %2799 = sbr.rel (0) target = $region45
  $region44: #{encoder_forward.1} parent=0 // pred_region
    _
  $region45: #{encoder_forward.1} parent=0 // pred_fallthru
    _
  // Predicated region
  $region46: #{encoder_forward.1} parent=0 // pred_check
    _
  $region47: #{encoder_forward.1} parent=0 // pred_check_branch
    %2801 = sbr.rel (0) target = $region49
  $region48: #{encoder_forward.1} parent=0 // pred_region
    _
  $region49: #{encoder_forward.1} parent=0 // pred_fallthru
    _

</llo_original>
